<compile_context>
chip_gen: v7x
topology: tpu7x:2x2x1
jax: 0.10.0
libtpu: 0.0.40
codegen_flags: <defaults>
</compile_context>

<pallas_src>
import jax
import jax.numpy as jnp
from jax.experimental import pallas as pl
from jax.experimental.pallas import tpu as pltpu

H = W = 28
KH = KW = 3
CO = 32              # conv1 output channels
CH = 26              # conv output spatial (28 - 3 + 1)
PH = 13              # pooled spatial (26 / 2)
PP = PH * PH         # 169 pooled positions
PPAD = 256           # pooled positions padded to a 128-lane multiple
WPAD = 176           # fc1 weight per-channel row pad (16-sublane multiple; zeros p>=169)
FEAT = CO * PP       # 5408
HID = 128
NCLS = 2
CB = 8               # channels of w1 streamed per grid step (grid = 32 / 8 = 4)


# ---------------- fused Pallas kernel ----------------

def _net_kernel(p_ref, wct_ref, bc_ref, w1_ref, b1_ref, w2_ref, b2_ref,
                wnc_ref, bnc_ref, o_ref, pooled_ref, h_ref):
    # p_ref:   (9, 4*N*PPAD)   im2col patches, col = w*(N*PPAD) + n*PPAD + p
    # wct_ref: (32, 9)         conv weight transposed (channel-major rows)
    # bc_ref:  (32, 1)         conv bias
    # w1_ref:  (CB, WPAD, HID) bf16 fc1 weight block, w1r[c, p, :] = w1[c*169 + p, :]
    # b1_ref:  (1, HID)   w2_ref: (HID, 2)   b2_ref: (1, 2)
    # wnc_ref: (out_f, in_f)   bnc_ref: (out_f, 2)   o_ref: (out_f, 2)
    # pooled_ref (scratch): (N*32, PPAD) f32, row = n*32 + c (persists across grid)
    # h_ref      (scratch): (N, HID) f32 fc1 accumulator
    k = pl.program_id(0)
    n_img = h_ref.shape[0]
    cols = n_img * PPAD

    # ---- step 0: conv1 + 2x2 max-pool + bias/ReLU, stash pooled activations ----
    @pl.when(k == 0)
    def _():
        pooled = jnp.dot(wct_ref[...], p_ref[:, 0:cols],
                         preferred_element_type=jnp.float32)          # (32, N*PPAD)
        for wdx in range(1, 4):
            rw = jnp.dot(wct_ref[...], p_ref[:, wdx * cols:(wdx + 1) * cols],
                         preferred_element_type=jnp.float32)
            pooled = jnp.maximum(pooled, rw)
        # bias + ReLU hoisted after the max (per-channel constant bias, monotone ReLU)
        pooled = jnp.maximum(pooled + bc_ref[...], 0.0)               # (32, N*PPAD)
        for n in range(n_img):
            pooled_ref[n * CO:(n + 1) * CO, :] = pooled[:, n * PPAD:(n + 1) * PPAD]
        h_ref[...] = jnp.zeros_like(h_ref)

    # ---- every step: fc1 partial sums for channels [k*CB, (k+1)*CB) ----
    c0 = pl.multiple_of(k * CB, CB)
    for n in range(n_img):
        slab = pooled_ref[pl.ds(n * CO + c0, CB), :]                  # (CB, PPAD) f32
        slab = slab[:, :WPAD].astype(jnp.bfloat16)                    # (CB, WPAD) bf16
        part = jnp.dot(slab[0:1, :], w1_ref[0],
                       preferred_element_type=jnp.float32)            # (1, HID) f32
        for c in range(1, CB):
            part = part + jnp.dot(slab[c:c + 1, :], w1_ref[c],
                                  preferred_element_type=jnp.float32)
        h_ref[n:n + 1, :] = h_ref[n:n + 1, :] + part

    # ---- last step: fc1 bias/ReLU, fc2, noisy-label correction, softmax ----
    @pl.when(k == pl.num_programs(0) - 1)
    def _():
        h = jnp.maximum(h_ref[...] + b1_ref[...], 0.0)                # (N, HID)
        logits = jnp.dot(h, w2_ref[...],
                         preferred_element_type=jnp.float32) + b2_ref[...]   # (N, 2)
        expo = jnp.exp(logits * logits)        # exp(y_i * y_hat_i), y_i = y_hat_i = logits
        denom = 1.0 + jnp.exp(logits)          # 1 + exp(y_hat_i)
        wnc = wnc_ref[...]                     # (out_f, in_f); module needs in_f == N
        in_f = wnc.shape[1]
        # tiny (out_f x in_f) @ (in_f x 2) on the VPU (in_f == N == 2 here)
        acc = wnc[:, 0:1] * expo[0:1, :]
        for i in range(1, in_f):
            acc = acc + wnc[:, i:i + 1] * expo[i:i + 1, :]
        nc = acc / denom + bnc_ref[...]        # (out_f, 2); module needs out_f == N
        m = jnp.max(nc, axis=1, keepdims=True)
        e = jnp.exp(nc - m)
        o_ref[...] = e / jnp.sum(e, axis=1, keepdims=True)


# ---------------- wrappers ----------------

def build_patches(x):
    """Glue (pure data movement): x [N,1,28,28] -> patches [9, 4*N*PPAD].

    Column index = w*(N*PPAD) + n*PPAD + p, with w = 2*di + dj the pool-window
    position, p = 13*pi + pj the pooled position, and taps t = 3*ki + kj on the
    rows. Positions are zero-padded 169 -> 256 so every slab/slice offset used
    in the kernel is a multiple of 128 lanes.
    """
    n = x.shape[0]
    x2 = x[:, 0]                                                         # (N, 28, 28)
    taps = jnp.stack([x2[:, ki:ki + CH, kj:kj + CH]
                      for ki in range(KH) for kj in range(KW)], axis=0)  # (9, N, 26, 26)
    taps = taps.reshape(KH * KW, n, PH, 2, PH, 2)                        # (9,N,13,2,13,2)
    taps = taps.transpose(0, 3, 5, 1, 2, 4)                              # (9,2,2,N,13,13)
    taps = taps.reshape(KH * KW, 4, n, PP)                               # (9,4,N,169)
    taps = jnp.pad(taps, ((0, 0), (0, 0), (0, 0), (0, PPAD - PP)))       # (9,4,N,256)
    return taps.reshape(KH * KW, 4 * n * PPAD)


def prepare_params(params):
    """One-time static weight prep (outside the jitted forward)."""
    wc, bc, w1, b1, w2, b2, wnc, bnc = params
    wct = wc.T                                   # (32, 9)
    bcc = bc.T                                   # (32, 1)
    # Fold the NCHW-flatten permutation + position padding into fc1's weight and
    # stream it in bf16 (the kernel accumulates in f32).
    w1r = w1.reshape(CO, PP, HID)                                        # (32,169,128)
    w1r = jnp.pad(w1r, ((0, 0), (0, WPAD - PP), (0, 0))).astype(jnp.bfloat16)
    return (wct, bcc, w1r, b1, w2, b2, wnc, bnc)


@jax.jit
def net_forward(x, packed):
    wct, bcc, w1r, b1, w2, b2, wnc, bnc = packed
    n = x.shape[0]
    out_f = wnc.shape[0]
    patches = build_patches(x)                   # (9, 4*N*PPAD)
    n_steps = CO // CB                           # 4 grid steps

    return pl.pallas_call(
        _net_kernel,
        out_shape=jax.ShapeDtypeStruct((out_f, NCLS), jnp.float32),
        grid=(n_steps,),
        in_specs=[
            pl.BlockSpec(patches.shape, lambda k: (0, 0)),
            pl.BlockSpec(wct.shape, lambda k: (0, 0)),
            pl.BlockSpec(bcc.shape, lambda k: (0, 0)),
            pl.BlockSpec((CB, WPAD, HID), lambda k: (k, 0, 0)),   # streamed fc1 weight
            pl.BlockSpec(b1.shape, lambda k: (0, 0)),
            pl.BlockSpec(w2.shape, lambda k: (0, 0)),
            pl.BlockSpec(b2.shape, lambda k: (0, 0)),
            pl.BlockSpec(wnc.shape, lambda k: (0, 0)),
            pl.BlockSpec(bnc.shape, lambda k: (0, 0)),
        ],
        out_specs=pl.BlockSpec((out_f, NCLS), lambda k: (0, 0)),
        scratch_shapes=[pltpu.VMEM((n * CO, PPAD), jnp.float32),   # pooled activations
                        pltpu.VMEM((n, HID), jnp.float32)],        # fc1 accumulator
        compiler_params=pltpu.CompilerParams(dimension_semantics=("arbitrary",)),
    )(patches, wct, bcc, w1r, b1, w2, b2, wnc, bnc)


# ---------------- deterministic parameter init ----------------
# Note: the PyTorch module builds uninitialized nn.Parameters (torch.Tensor(...));
# here we init them deterministically instead.

def init_params(key, in_features, out_features):
    ks = jax.random.split(key, 8)
    # conv1.weight[c, 0, ki, kj] laid out as wc[3*ki+kj, c]
    wc = jax.random.normal(ks[0], (KH * KW, CO), jnp.float32) * 0.1
    bc = jax.random.normal(ks[1], (1, CO), jnp.float32) * 0.1
    w1 = jax.random.normal(ks[2], (FEAT, HID), jnp.float32) * (1.0 / jnp.sqrt(FEAT))
    b1 = jax.random.normal(ks[3], (1, HID), jnp.float32) * 0.05
    w2 = jax.random.normal(ks[4], (HID, NCLS), jnp.float32) * (1.0 / jnp.sqrt(HID))
    b2 = jax.random.normal(ks[5], (1, NCLS), jnp.float32) * 0.05
    wnc = jax.random.normal(ks[6], (out_features, in_features), jnp.float32) * 0.5
    bnc = jax.random.normal(ks[7], (out_features, NCLS), jnp.float32) * 0.1
    return (wc, bc, w1, b1, w2, b2, wnc, bnc)


# ---------------- pure-JAX reference (for verification) ----------------

def reference_forward(x, params):
    wc, bc, w1, b1, w2, b2, wnc, bnc = params
    n = x.shape[0]
    x2 = x[:, 0]
    conv = jnp.zeros((n, CH, CH, CO), jnp.float32)
    for ki in range(KH):
        for kj in range(KW):
            conv = conv + x2[:, ki:ki + CH, kj:kj + CH, None] * wc[KH * ki + kj][None, None, None, :]
    conv = jnp.maximum(conv + bc[0], 0.0)
    pooled = jnp.max(conv.reshape(n, PH, 2, PH, 2, CO), axis=(2, 4))     # (N,13,13,32)
    feat = pooled.transpose(0, 3, 1, 2).reshape(n, FEAT)                 # NCHW flatten
    h = jnp.maximum(feat @ w1 + b1, 0.0)
    logits = h @ w2 + b2
    expo = jnp.exp(logits * logits)
    denom = 1.0 + jnp.exp(logits)
    nc = (wnc @ expo) / denom + bnc
    return jax.nn.softmax(nc, axis=1)


if __name__ == "__main__":
    N = 2
    # torch.mm(weight[out,in], x[N,2]) requires in_features == N, and the
    # /denominator broadcast requires out_features == N (inherited from the module).
    in_features = N
    out_features = N

    key = jax.random.PRNGKey(0)
    kx, kp = jax.random.split(key)
    x = jax.random.normal(kx, (N, 1, H, W), jnp.float32)
    params = init_params(kp, in_features, out_features)
    packed = prepare_params(params)

    out = net_forward(x, packed)
    out = jax.block_until_ready(out)

    ref = reference_forward(x, params)
    assert out.shape == (out_features, NCLS)
    assert bool(jnp.all(jnp.isfinite(out)))
    # bf16 streaming of w1 / fc1 activations keeps the softmax output well inside 2e-3.
    assert bool(jnp.allclose(out, ref, atol=2e-3, rtol=2e-3)), (out, ref)
    print("KERNEL_OK")
</pallas_src>

<mosaic_0001>
module attributes {stable_mosaic.version = 11 : i64} {
  func.func @_net_kernel(%arg0: i32, %arg1: memref<9x2048xf32, #tpu.memory_space<vmem>>, %arg2: memref<32x9xf32, #tpu.memory_space<vmem>>, %arg3: memref<32x1xf32, #tpu.memory_space<vmem>>, %arg4: memref<8x176x128xbf16, #tpu.memory_space<vmem>>, %arg5: memref<1x128xf32, #tpu.memory_space<vmem>>, %arg6: memref<128x2xf32, #tpu.memory_space<vmem>>, %arg7: memref<1x2xf32, #tpu.memory_space<vmem>>, %arg8: memref<2x2xf32, #tpu.memory_space<vmem>>, %arg9: memref<2x2xf32, #tpu.memory_space<vmem>>, %arg10: memref<2x2xf32, #tpu.memory_space<vmem>>, %arg11: memref<64x256xf32, #tpu.memory_space<vmem>>, %arg12: memref<2x128xf32, #tpu.memory_space<vmem>>) attributes {dimension_semantics = [#tpu.dimension_semantics<arbitrary>], iteration_bounds = array<i64: 4>, scalar_prefetch = 0 : i64, scratch_operands = 2 : i64, tpu.core_type = #tpu.core_type<tc>, window_params = [{pipeline_mode = #tpu.pipeline_mode<synchronous>, transform_indices = @transform_0, window_bounds = array<i64: 9, 2048>}, {pipeline_mode = #tpu.pipeline_mode<synchronous>, transform_indices = @transform_1, window_bounds = array<i64: 32, 9>}, {pipeline_mode = #tpu.pipeline_mode<synchronous>, transform_indices = @transform_2, window_bounds = array<i64: 32, 1>}, {transform_indices = @transform_3, window_bounds = array<i64: 8, 176, 128>}, {pipeline_mode = #tpu.pipeline_mode<synchronous>, transform_indices = @transform_4, window_bounds = array<i64: 1, 128>}, {pipeline_mode = #tpu.pipeline_mode<synchronous>, transform_indices = @transform_5, window_bounds = array<i64: 128, 2>}, {pipeline_mode = #tpu.pipeline_mode<synchronous>, transform_indices = @transform_6, window_bounds = array<i64: 1, 2>}, {pipeline_mode = #tpu.pipeline_mode<synchronous>, transform_indices = @transform_7, window_bounds = array<i64: 2, 2>}, {pipeline_mode = #tpu.pipeline_mode<synchronous>, transform_indices = @transform_8, window_bounds = array<i64: 2, 2>}, {pipeline_mode = #tpu.pipeline_mode<synchronous>, transform_indices = @transform_9, window_bounds = array<i64: 2, 2>}]} {
    %c0_i32 = arith.constant 0 : i32
    %0 = arith.cmpi eq, %arg0, %c0_i32 : i32
    %1 = arith.extui %0 : i1 to i32
    %c0_i32_0 = arith.constant 0 : i32
    %2 = arith.cmpi ne, %1, %c0_i32_0 : i32
    scf.if %2 {
      %c0_68 = arith.constant 0 : index
      %c0_69 = arith.constant 0 : index
      %102 = vector.load %arg2[%c0_68, %c0_69] : memref<32x9xf32, #tpu.memory_space<vmem>>, vector<32x9xf32>
      %c0_70 = arith.constant 0 : index
      %c0_71 = arith.constant 0 : index
      %103 = vector.load %arg1[%c0_70, %c0_71] : memref<9x2048xf32, #tpu.memory_space<vmem>>, vector<9x512xf32>
      %cst_72 = arith.constant dense<0.000000e+00> : vector<32x512xf32>
      %104 = tpu.matmul %102, %103, %cst_72 {dimension_numbers = #tpu.dot_dimension_numbers<[1], [0], [0], [1], [0, 0, 1, 1], [], []>} : vector<32x9xf32>, vector<9x512xf32>, vector<32x512xf32> -> vector<32x512xf32>
      %c0_73 = arith.constant 0 : index
      %c0_74 = arith.constant 0 : index
      %105 = vector.load %arg2[%c0_73, %c0_74] : memref<32x9xf32, #tpu.memory_space<vmem>>, vector<32x9xf32>
      %c0_75 = arith.constant 0 : index
      %c512 = arith.constant 512 : index
      %106 = vector.load %arg1[%c0_75, %c512] : memref<9x2048xf32, #tpu.memory_space<vmem>>, vector<9x512xf32>
      %cst_76 = arith.constant dense<0.000000e+00> : vector<32x512xf32>
      %107 = tpu.matmul %105, %106, %cst_76 {dimension_numbers = #tpu.dot_dimension_numbers<[1], [0], [0], [1], [0, 0, 1, 1], [], []>} : vector<32x9xf32>, vector<9x512xf32>, vector<32x512xf32> -> vector<32x512xf32>
      %108 = arith.maximumf %104, %107 : vector<32x512xf32>
      %c0_77 = arith.constant 0 : index
      %c0_78 = arith.constant 0 : index
      %109 = vector.load %arg2[%c0_77, %c0_78] : memref<32x9xf32, #tpu.memory_space<vmem>>, vector<32x9xf32>
      %c0_79 = arith.constant 0 : index
      %c1024 = arith.constant 1024 : index
      %110 = vector.load %arg1[%c0_79, %c1024] : memref<9x2048xf32, #tpu.memory_space<vmem>>, vector<9x512xf32>
      %cst_80 = arith.constant dense<0.000000e+00> : vector<32x512xf32>
      %111 = tpu.matmul %109, %110, %cst_80 {dimension_numbers = #tpu.dot_dimension_numbers<[1], [0], [0], [1], [0, 0, 1, 1], [], []>} : vector<32x9xf32>, vector<9x512xf32>, vector<32x512xf32> -> vector<32x512xf32>
      %112 = arith.maximumf %108, %111 : vector<32x512xf32>
      %c0_81 = arith.constant 0 : index
      %c0_82 = arith.constant 0 : index
      %113 = vector.load %arg2[%c0_81, %c0_82] : memref<32x9xf32, #tpu.memory_space<vmem>>, vector<32x9xf32>
      %c0_83 = arith.constant 0 : index
      %c1536 = arith.constant 1536 : index
      %114 = vector.load %arg1[%c0_83, %c1536] : memref<9x2048xf32, #tpu.memory_space<vmem>>, vector<9x512xf32>
      %cst_84 = arith.constant dense<0.000000e+00> : vector<32x512xf32>
      %115 = tpu.matmul %113, %114, %cst_84 {dimension_numbers = #tpu.dot_dimension_numbers<[1], [0], [0], [1], [0, 0, 1, 1], [], []>} : vector<32x9xf32>, vector<9x512xf32>, vector<32x512xf32> -> vector<32x512xf32>
      %116 = arith.maximumf %112, %115 : vector<32x512xf32>
      %c0_85 = arith.constant 0 : index
      %c0_86 = arith.constant 0 : index
      %117 = vector.load %arg3[%c0_85, %c0_86] : memref<32x1xf32, #tpu.memory_space<vmem>>, vector<32x1xf32>
      %118 = vector.broadcast %117 : vector<32x1xf32> to vector<32x512xf32>
      %119 = arith.addf %116, %118 : vector<32x512xf32>
      %cst_87 = arith.constant 0.000000e+00 : f32
      %120 = vector.broadcast %cst_87 : f32 to vector<32x512xf32>
      %121 = arith.maximumf %119, %120 : vector<32x512xf32>
      %122 = vector.extract_strided_slice %121 {offsets = [0, 0], sizes = [32, 256], strides = [1, 1]} : vector<32x512xf32> to vector<32x256xf32>
      %c0_88 = arith.constant 0 : index
      %c0_89 = arith.constant 0 : index
      %123 = vector.load %arg11[%c0_88, %c0_89] : memref<64x256xf32, #tpu.memory_space<vmem>>, vector<32x256xf32>
      tpu.vector_store %arg11[%c0_88, %c0_89], %122 {strides = array<i32>} : memref<64x256xf32, #tpu.memory_space<vmem>>, vector<32x256xf32>,
      %124 = vector.extract_strided_slice %121 {offsets = [0, 256], sizes = [32, 256], strides = [1, 1]} : vector<32x512xf32> to vector<32x256xf32>
      %c32 = arith.constant 32 : index
      %c0_90 = arith.constant 0 : index
      %125 = vector.load %arg11[%c32, %c0_90] : memref<64x256xf32, #tpu.memory_space<vmem>>, vector<32x256xf32>
      tpu.vector_store %arg11[%c32, %c0_90], %124 {strides = array<i32>} : memref<64x256xf32, #tpu.memory_space<vmem>>, vector<32x256xf32>,
      %cst_91 = arith.constant 0.000000e+00 : f32
      %126 = vector.broadcast %cst_91 : f32 to vector<2x128xf32>
      %c0_92 = arith.constant 0 : index
      %c0_93 = arith.constant 0 : index
      %127 = vector.load %arg12[%c0_92, %c0_93] : memref<2x128xf32, #tpu.memory_space<vmem>>, vector<2x128xf32>
      tpu.vector_store %arg12[%c0_92, %c0_93], %126 {strides = array<i32>} : memref<2x128xf32, #tpu.memory_space<vmem>>, vector<2x128xf32>,
    } else {
    }
    %c8_i32 = arith.constant 8 : i32
    %3 = arith.muli %arg0, %c8_i32 : i32
    %4 = tpu.assume_multiple %3, 8 : i32
    %c0_i32_1 = arith.constant 0 : i32
    %5 = arith.addi %c0_i32_1, %4 : i32
    %6 = arith.index_cast %5 : i32 to index
    %c0 = arith.constant 0 : index
    %7 = vector.load %arg11[%6, %c0] : memref<64x256xf32, #tpu.memory_space<vmem>>, vector<8x256xf32>
    %8 = vector.extract_strided_slice %7 {offsets = [0, 0], sizes = [8, 176], strides = [1, 1]} : vector<8x256xf32> to vector<8x176xf32>
    %9 = arith.truncf %8 : vector<8x176xf32> to vector<8x176xbf16>
    %10 = vector.extract_strided_slice %9 {offsets = [0, 0], sizes = [1, 176], strides = [1, 1]} : vector<8x176xbf16> to vector<1x176xbf16>
    %c0_2 = arith.constant 0 : index
    %c0_3 = arith.constant 0 : index
    %c0_4 = arith.constant 0 : index
    %11 = vector.load %arg4[%c0_2, %c0_3, %c0_4] : memref<8x176x128xbf16, #tpu.memory_space<vmem>>, vector<1x176x128xbf16>
    %12 = vector.shape_cast %11 : vector<1x176x128xbf16> to vector<176x128xbf16>
    %cst = arith.constant dense<0.000000e+00> : vector<1x128xf32>
    %13 = tpu.matmul %10, %12, %cst {dimension_numbers = #tpu.dot_dimension_numbers<[1], [0], [0], [1], [0, 0, 1, 1], [], []>} : vector<1x176xbf16>, vector<176x128xbf16>, vector<1x128xf32> -> vector<1x128xf32>
    %14 = vector.extract_strided_slice %9 {offsets = [1, 0], sizes = [1, 176], strides = [1, 1]} : vector<8x176xbf16> to vector<1x176xbf16>
    %c1 = arith.constant 1 : index
    %c0_5 = arith.constant 0 : index
    %c0_6 = arith.constant 0 : index
    %15 = vector.load %arg4[%c1, %c0_5, %c0_6] : memref<8x176x128xbf16, #tpu.memory_space<vmem>>, vector<1x176x128xbf16>
    %16 = vector.shape_cast %15 : vector<1x176x128xbf16> to vector<176x128xbf16>
    %cst_7 = arith.constant dense<0.000000e+00> : vector<1x128xf32>
    %17 = tpu.matmul %14, %16, %cst_7 {dimension_numbers = #tpu.dot_dimension_numbers<[1], [0], [0], [1], [0, 0, 1, 1], [], []>} : vector<1x176xbf16>, vector<176x128xbf16>, vector<1x128xf32> -> vector<1x128xf32>
    %18 = arith.addf %13, %17 : vector<1x128xf32>
    %19 = vector.extract_strided_slice %9 {offsets = [2, 0], sizes = [1, 176], strides = [1, 1]} : vector<8x176xbf16> to vector<1x176xbf16>
    %c2 = arith.constant 2 : index
    %c0_8 = arith.constant 0 : index
    %c0_9 = arith.constant 0 : index
    %20 = vector.load %arg4[%c2, %c0_8, %c0_9] : memref<8x176x128xbf16, #tpu.memory_space<vmem>>, vector<1x176x128xbf16>
    %21 = vector.shape_cast %20 : vector<1x176x128xbf16> to vector<176x128xbf16>
    %cst_10 = arith.constant dense<0.000000e+00> : vector<1x128xf32>
    %22 = tpu.matmul %19, %21, %cst_10 {dimension_numbers = #tpu.dot_dimension_numbers<[1], [0], [0], [1], [0, 0, 1, 1], [], []>} : vector<1x176xbf16>, vector<176x128xbf16>, vector<1x128xf32> -> vector<1x128xf32>
    %23 = arith.addf %18, %22 : vector<1x128xf32>
    %24 = vector.extract_strided_slice %9 {offsets = [3, 0], sizes = [1, 176], strides = [1, 1]} : vector<8x176xbf16> to vector<1x176xbf16>
    %c3 = arith.constant 3 : index
    %c0_11 = arith.constant 0 : index
    %c0_12 = arith.constant 0 : index
    %25 = vector.load %arg4[%c3, %c0_11, %c0_12] : memref<8x176x128xbf16, #tpu.memory_space<vmem>>, vector<1x176x128xbf16>
    %26 = vector.shape_cast %25 : vector<1x176x128xbf16> to vector<176x128xbf16>
    %cst_13 = arith.constant dense<0.000000e+00> : vector<1x128xf32>
    %27 = tpu.matmul %24, %26, %cst_13 {dimension_numbers = #tpu.dot_dimension_numbers<[1], [0], [0], [1], [0, 0, 1, 1], [], []>} : vector<1x176xbf16>, vector<176x128xbf16>, vector<1x128xf32> -> vector<1x128xf32>
    %28 = arith.addf %23, %27 : vector<1x128xf32>
    %29 = vector.extract_strided_slice %9 {offsets = [4, 0], sizes = [1, 176], strides = [1, 1]} : vector<8x176xbf16> to vector<1x176xbf16>
    %c4 = arith.constant 4 : index
    %c0_14 = arith.constant 0 : index
    %c0_15 = arith.constant 0 : index
    %30 = vector.load %arg4[%c4, %c0_14, %c0_15] : memref<8x176x128xbf16, #tpu.memory_space<vmem>>, vector<1x176x128xbf16>
    %31 = vector.shape_cast %30 : vector<1x176x128xbf16> to vector<176x128xbf16>
    %cst_16 = arith.constant dense<0.000000e+00> : vector<1x128xf32>
    %32 = tpu.matmul %29, %31, %cst_16 {dimension_numbers = #tpu.dot_dimension_numbers<[1], [0], [0], [1], [0, 0, 1, 1], [], []>} : vector<1x176xbf16>, vector<176x128xbf16>, vector<1x128xf32> -> vector<1x128xf32>
    %33 = arith.addf %28, %32 : vector<1x128xf32>
    %34 = vector.extract_strided_slice %9 {offsets = [5, 0], sizes = [1, 176], strides = [1, 1]} : vector<8x176xbf16> to vector<1x176xbf16>
    %c5 = arith.constant 5 : index
    %c0_17 = arith.constant 0 : index
    %c0_18 = arith.constant 0 : index
    %35 = vector.load %arg4[%c5, %c0_17, %c0_18] : memref<8x176x128xbf16, #tpu.memory_space<vmem>>, vector<1x176x128xbf16>
    %36 = vector.shape_cast %35 : vector<1x176x128xbf16> to vector<176x128xbf16>
    %cst_19 = arith.constant dense<0.000000e+00> : vector<1x128xf32>
    %37 = tpu.matmul %34, %36, %cst_19 {dimension_numbers = #tpu.dot_dimension_numbers<[1], [0], [0], [1], [0, 0, 1, 1], [], []>} : vector<1x176xbf16>, vector<176x128xbf16>, vector<1x128xf32> -> vector<1x128xf32>
    %38 = arith.addf %33, %37 : vector<1x128xf32>
    %39 = vector.extract_strided_slice %9 {offsets = [6, 0], sizes = [1, 176], strides = [1, 1]} : vector<8x176xbf16> to vector<1x176xbf16>
    %c6 = arith.constant 6 : index
    %c0_20 = arith.constant 0 : index
    %c0_21 = arith.constant 0 : index
    %40 = vector.load %arg4[%c6, %c0_20, %c0_21] : memref<8x176x128xbf16, #tpu.memory_space<vmem>>, vector<1x176x128xbf16>
    %41 = vector.shape_cast %40 : vector<1x176x128xbf16> to vector<176x128xbf16>
    %cst_22 = arith.constant dense<0.000000e+00> : vector<1x128xf32>
    %42 = tpu.matmul %39, %41, %cst_22 {dimension_numbers = #tpu.dot_dimension_numbers<[1], [0], [0], [1], [0, 0, 1, 1], [], []>} : vector<1x176xbf16>, vector<176x128xbf16>, vector<1x128xf32> -> vector<1x128xf32>
    %43 = arith.addf %38, %42 : vector<1x128xf32>
    %44 = vector.extract_strided_slice %9 {offsets = [7, 0], sizes = [1, 176], strides = [1, 1]} : vector<8x176xbf16> to vector<1x176xbf16>
    %c7 = arith.constant 7 : index
    %c0_23 = arith.constant 0 : index
    %c0_24 = arith.constant 0 : index
    %45 = vector.load %arg4[%c7, %c0_23, %c0_24] : memref<8x176x128xbf16, #tpu.memory_space<vmem>>, vector<1x176x128xbf16>
    %46 = vector.shape_cast %45 : vector<1x176x128xbf16> to vector<176x128xbf16>
    %cst_25 = arith.constant dense<0.000000e+00> : vector<1x128xf32>
    %47 = tpu.matmul %44, %46, %cst_25 {dimension_numbers = #tpu.dot_dimension_numbers<[1], [0], [0], [1], [0, 0, 1, 1], [], []>} : vector<1x176xbf16>, vector<176x128xbf16>, vector<1x128xf32> -> vector<1x128xf32>
    %48 = arith.addf %43, %47 : vector<1x128xf32>
    %c0_26 = arith.constant 0 : index
    %c0_27 = arith.constant 0 : index
    %49 = vector.load %arg12[%c0_26, %c0_27] : memref<2x128xf32, #tpu.memory_space<vmem>>, vector<1x128xf32>
    %50 = arith.addf %49, %48 : vector<1x128xf32>
    %c0_28 = arith.constant 0 : index
    %c0_29 = arith.constant 0 : index
    %51 = vector.load %arg12[%c0_28, %c0_29] : memref<2x128xf32, #tpu.memory_space<vmem>>, vector<1x128xf32>
    tpu.vector_store %arg12[%c0_28, %c0_29], %50 {strides = array<i32>} : memref<2x128xf32, #tpu.memory_space<vmem>>, vector<1x128xf32>,
    %c32_i32 = arith.constant 32 : i32
    %52 = arith.addi %c32_i32, %4 : i32
    %53 = arith.index_cast %52 : i32 to index
    %c0_30 = arith.constant 0 : index
    %54 = vector.load %arg11[%53, %c0_30] : memref<64x256xf32, #tpu.memory_space<vmem>>, vector<8x256xf32>
    %55 = vector.extract_strided_slice %54 {offsets = [0, 0], sizes = [8, 176], strides = [1, 1]} : vector<8x256xf32> to vector<8x176xf32>
    %56 = arith.truncf %55 : vector<8x176xf32> to vector<8x176xbf16>
    %57 = vector.extract_strided_slice %56 {offsets = [0, 0], sizes = [1, 176], strides = [1, 1]} : vector<8x176xbf16> to vector<1x176xbf16>
    %c0_31 = arith.constant 0 : index
    %c0_32 = arith.constant 0 : index
    %c0_33 = arith.constant 0 : index
    %58 = vector.load %arg4[%c0_31, %c0_32, %c0_33] : memref<8x176x128xbf16, #tpu.memory_space<vmem>>, vector<1x176x128xbf16>
    %59 = vector.shape_cast %58 : vector<1x176x128xbf16> to vector<176x128xbf16>
    %cst_34 = arith.constant dense<0.000000e+00> : vector<1x128xf32>
    %60 = tpu.matmul %57, %59, %cst_34 {dimension_numbers = #tpu.dot_dimension_numbers<[1], [0], [0], [1], [0, 0, 1, 1], [], []>} : vector<1x176xbf16>, vector<176x128xbf16>, vector<1x128xf32> -> vector<1x128xf32>
    %61 = vector.extract_strided_slice %56 {offsets = [1, 0], sizes = [1, 176], strides = [1, 1]} : vector<8x176xbf16> to vector<1x176xbf16>
    %c1_35 = arith.constant 1 : index
    %c0_36 = arith.constant 0 : index
    %c0_37 = arith.constant 0 : index
    %62 = vector.load %arg4[%c1_35, %c0_36, %c0_37] : memref<8x176x128xbf16, #tpu.memory_space<vmem>>, vector<1x176x128xbf16>
    %63 = vector.shape_cast %62 : vector<1x176x128xbf16> to vector<176x128xbf16>
    %cst_38 = arith.constant dense<0.000000e+00> : vector<1x128xf32>
    %64 = tpu.matmul %61, %63, %cst_38 {dimension_numbers = #tpu.dot_dimension_numbers<[1], [0], [0], [1], [0, 0, 1, 1], [], []>} : vector<1x176xbf16>, vector<176x128xbf16>, vector<1x128xf32> -> vector<1x128xf32>
    %65 = arith.addf %60, %64 : vector<1x128xf32>
    %66 = vector.extract_strided_slice %56 {offsets = [2, 0], sizes = [1, 176], strides = [1, 1]} : vector<8x176xbf16> to vector<1x176xbf16>
    %c2_39 = arith.constant 2 : index
    %c0_40 = arith.constant 0 : index
    %c0_41 = arith.constant 0 : index
    %67 = vector.load %arg4[%c2_39, %c0_40, %c0_41] : memref<8x176x128xbf16, #tpu.memory_space<vmem>>, vector<1x176x128xbf16>
    %68 = vector.shape_cast %67 : vector<1x176x128xbf16> to vector<176x128xbf16>
    %cst_42 = arith.constant dense<0.000000e+00> : vector<1x128xf32>
    %69 = tpu.matmul %66, %68, %cst_42 {dimension_numbers = #tpu.dot_dimension_numbers<[1], [0], [0], [1], [0, 0, 1, 1], [], []>} : vector<1x176xbf16>, vector<176x128xbf16>, vector<1x128xf32> -> vector<1x128xf32>
    %70 = arith.addf %65, %69 : vector<1x128xf32>
    %71 = vector.extract_strided_slice %56 {offsets = [3, 0], sizes = [1, 176], strides = [1, 1]} : vector<8x176xbf16> to vector<1x176xbf16>
    %c3_43 = arith.constant 3 : index
    %c0_44 = arith.constant 0 : index
    %c0_45 = arith.constant 0 : index
    %72 = vector.load %arg4[%c3_43, %c0_44, %c0_45] : memref<8x176x128xbf16, #tpu.memory_space<vmem>>, vector<1x176x128xbf16>
    %73 = vector.shape_cast %72 : vector<1x176x128xbf16> to vector<176x128xbf16>
    %cst_46 = arith.constant dense<0.000000e+00> : vector<1x128xf32>
    %74 = tpu.matmul %71, %73, %cst_46 {dimension_numbers = #tpu.dot_dimension_numbers<[1], [0], [0], [1], [0, 0, 1, 1], [], []>} : vector<1x176xbf16>, vector<176x128xbf16>, vector<1x128xf32> -> vector<1x128xf32>
    %75 = arith.addf %70, %74 : vector<1x128xf32>
    %76 = vector.extract_strided_slice %56 {offsets = [4, 0], sizes = [1, 176], strides = [1, 1]} : vector<8x176xbf16> to vector<1x176xbf16>
    %c4_47 = arith.constant 4 : index
    %c0_48 = arith.constant 0 : index
    %c0_49 = arith.constant 0 : index
    %77 = vector.load %arg4[%c4_47, %c0_48, %c0_49] : memref<8x176x128xbf16, #tpu.memory_space<vmem>>, vector<1x176x128xbf16>
    %78 = vector.shape_cast %77 : vector<1x176x128xbf16> to vector<176x128xbf16>
    %cst_50 = arith.constant dense<0.000000e+00> : vector<1x128xf32>
    %79 = tpu.matmul %76, %78, %cst_50 {dimension_numbers = #tpu.dot_dimension_numbers<[1], [0], [0], [1], [0, 0, 1, 1], [], []>} : vector<1x176xbf16>, vector<176x128xbf16>, vector<1x128xf32> -> vector<1x128xf32>
    %80 = arith.addf %75, %79 : vector<1x128xf32>
    %81 = vector.extract_strided_slice %56 {offsets = [5, 0], sizes = [1, 176], strides = [1, 1]} : vector<8x176xbf16> to vector<1x176xbf16>
    %c5_51 = arith.constant 5 : index
    %c0_52 = arith.constant 0 : index
    %c0_53 = arith.constant 0 : index
    %82 = vector.load %arg4[%c5_51, %c0_52, %c0_53] : memref<8x176x128xbf16, #tpu.memory_space<vmem>>, vector<1x176x128xbf16>
    %83 = vector.shape_cast %82 : vector<1x176x128xbf16> to vector<176x128xbf16>
    %cst_54 = arith.constant dense<0.000000e+00> : vector<1x128xf32>
    %84 = tpu.matmul %81, %83, %cst_54 {dimension_numbers = #tpu.dot_dimension_numbers<[1], [0], [0], [1], [0, 0, 1, 1], [], []>} : vector<1x176xbf16>, vector<176x128xbf16>, vector<1x128xf32> -> vector<1x128xf32>
    %85 = arith.addf %80, %84 : vector<1x128xf32>
    %86 = vector.extract_strided_slice %56 {offsets = [6, 0], sizes = [1, 176], strides = [1, 1]} : vector<8x176xbf16> to vector<1x176xbf16>
    %c6_55 = arith.constant 6 : index
    %c0_56 = arith.constant 0 : index
    %c0_57 = arith.constant 0 : index
    %87 = vector.load %arg4[%c6_55, %c0_56, %c0_57] : memref<8x176x128xbf16, #tpu.memory_space<vmem>>, vector<1x176x128xbf16>
    %88 = vector.shape_cast %87 : vector<1x176x128xbf16> to vector<176x128xbf16>
    %cst_58 = arith.constant dense<0.000000e+00> : vector<1x128xf32>
    %89 = tpu.matmul %86, %88, %cst_58 {dimension_numbers = #tpu.dot_dimension_numbers<[1], [0], [0], [1], [0, 0, 1, 1], [], []>} : vector<1x176xbf16>, vector<176x128xbf16>, vector<1x128xf32> -> vector<1x128xf32>
    %90 = arith.addf %85, %89 : vector<1x128xf32>
    %91 = vector.extract_strided_slice %56 {offsets = [7, 0], sizes = [1, 176], strides = [1, 1]} : vector<8x176xbf16> to vector<1x176xbf16>
    %c7_59 = arith.constant 7 : index
    %c0_60 = arith.constant 0 : index
    %c0_61 = arith.constant 0 : index
    %92 = vector.load %arg4[%c7_59, %c0_60, %c0_61] : memref<8x176x128xbf16, #tpu.memory_space<vmem>>, vector<1x176x128xbf16>
    %93 = vector.shape_cast %92 : vector<1x176x128xbf16> to vector<176x128xbf16>
    %cst_62 = arith.constant dense<0.000000e+00> : vector<1x128xf32>
    %94 = tpu.matmul %91, %93, %cst_62 {dimension_numbers = #tpu.dot_dimension_numbers<[1], [0], [0], [1], [0, 0, 1, 1], [], []>} : vector<1x176xbf16>, vector<176x128xbf16>, vector<1x128xf32> -> vector<1x128xf32>
    %95 = arith.addf %90, %94 : vector<1x128xf32>
    %c1_63 = arith.constant 1 : index
    %c0_64 = arith.constant 0 : index
    %96 = vector.load %arg12[%c1_63, %c0_64] : memref<2x128xf32, #tpu.memory_space<vmem>>, vector<1x128xf32>
    %97 = arith.addf %96, %95 : vector<1x128xf32>
    %c1_65 = arith.constant 1 : index
    %c0_66 = arith.constant 0 : index
    %98 = vector.load %arg12[%c1_65, %c0_66] : memref<2x128xf32, #tpu.memory_space<vmem>>, vector<1x128xf32>
    tpu.vector_store %arg12[%c1_65, %c0_66], %97 {strides = array<i32>} : memref<2x128xf32, #tpu.memory_space<vmem>>, vector<1x128xf32>,
    %c3_i32 = arith.constant 3 : i32
    %99 = arith.cmpi eq, %arg0, %c3_i32 : i32
    %100 = arith.extui %99 : i1 to i32
    %c0_i32_67 = arith.constant 0 : i32
    %101 = arith.cmpi ne, %100, %c0_i32_67 : i32
    scf.if %101 {
      %c0_68 = arith.constant 0 : index
      %c0_69 = arith.constant 0 : index
      %102 = vector.load %arg12[%c0_68, %c0_69] : memref<2x128xf32, #tpu.memory_space<vmem>>, vector<2x128xf32>
      %c0_70 = arith.constant 0 : index
      %c0_71 = arith.constant 0 : index
      %103 = vector.load %arg5[%c0_70, %c0_71] : memref<1x128xf32, #tpu.memory_space<vmem>>, vector<1x128xf32>
      %104 = vector.broadcast %103 : vector<1x128xf32> to vector<2x128xf32>
      %105 = arith.addf %102, %104 : vector<2x128xf32>
      %cst_72 = arith.constant 0.000000e+00 : f32
      %106 = vector.broadcast %cst_72 : f32 to vector<2x128xf32>
      %107 = arith.maximumf %105, %106 : vector<2x128xf32>
      %c0_73 = arith.constant 0 : index
      %c0_74 = arith.constant 0 : index
      %108 = vector.load %arg6[%c0_73, %c0_74] : memref<128x2xf32, #tpu.memory_space<vmem>>, vector<128x2xf32>
      %cst_75 = arith.constant dense<0.000000e+00> : vector<2x2xf32>
      %109 = tpu.matmul %107, %108, %cst_75 {dimension_numbers = #tpu.dot_dimension_numbers<[1], [0], [0], [1], [0, 0, 1, 1], [], []>} : vector<2x128xf32>, vector<128x2xf32>, vector<2x2xf32> -> vector<2x2xf32>
      %c0_76 = arith.constant 0 : index
      %c0_77 = arith.constant 0 : index
      %110 = vector.load %arg7[%c0_76, %c0_77] : memref<1x2xf32, #tpu.memory_space<vmem>>, vector<1x2xf32>
      %111 = vector.broadcast %110 : vector<1x2xf32> to vector<2x2xf32>
      %112 = arith.addf %109, %111 : vector<2x2xf32>
      %113 = arith.mulf %112, %112 : vector<2x2xf32>
      %114 = math.exp %113 : vector<2x2xf32>
      %115 = math.exp %112 : vector<2x2xf32>
      %cst_78 = arith.constant 1.000000e+00 : f32
      %116 = vector.broadcast %cst_78 : f32 to vector<2x2xf32>
      %117 = arith.addf %116, %115 : vector<2x2xf32>
      %c0_79 = arith.constant 0 : index
      %c0_80 = arith.constant 0 : index
      %118 = vector.load %arg8[%c0_79, %c0_80] : memref<2x2xf32, #tpu.memory_space<vmem>>, vector<2x2xf32>
      %119 = vector.extract_strided_slice %118 {offsets = [0, 0], sizes = [2, 1], strides = [1, 1]} : vector<2x2xf32> to vector<2x1xf32>
      %120 = vector.extract_strided_slice %114 {offsets = [0, 0], sizes = [1, 2], strides = [1, 1]} : vector<2x2xf32> to vector<1x2xf32>
      %121 = vector.broadcast %119 : vector<2x1xf32> to vector<2x2xf32>
      %122 = vector.broadcast %120 : vector<1x2xf32> to vector<2x2xf32>
      %123 = arith.mulf %121, %122 : vector<2x2xf32>
      %124 = vector.extract_strided_slice %118 {offsets = [0, 1], sizes = [2, 1], strides = [1, 1]} : vector<2x2xf32> to vector<2x1xf32>
      %125 = vector.extract_strided_slice %114 {offsets = [1, 0], sizes = [1, 2], strides = [1, 1]} : vector<2x2xf32> to vector<1x2xf32>
      %126 = vector.broadcast %124 : vector<2x1xf32> to vector<2x2xf32>
      %127 = vector.broadcast %125 : vector<1x2xf32> to vector<2x2xf32>
      %128 = arith.mulf %126, %127 : vector<2x2xf32>
      %129 = arith.addf %123, %128 : vector<2x2xf32>
      %130 = arith.divf %129, %117 : vector<2x2xf32>
      %c0_81 = arith.constant 0 : index
      %c0_82 = arith.constant 0 : index
      %131 = vector.load %arg9[%c0_81, %c0_82] : memref<2x2xf32, #tpu.memory_space<vmem>>, vector<2x2xf32>
      %132 = arith.addf %130, %131 : vector<2x2xf32>
      %cst_83 = arith.constant dense<0xFF800000> : vector<2xf32>
      %133 = vector.multi_reduction <maximumf>, %132, %cst_83 [1] : vector<2x2xf32> to vector<2xf32>
      %134 = vector.shape_cast %133 : vector<2xf32> to vector<2x1xf32>
      %135 = vector.broadcast %134 : vector<2x1xf32> to vector<2x2xf32>
      %136 = arith.subf %132, %135 : vector<2x2xf32>
      %137 = math.exp %136 : vector<2x2xf32>
      %cst_84 = arith.constant dense<0.000000e+00> : vector<2xf32>
      %138 = vector.multi_reduction <add>, %137, %cst_84 [1] : vector<2x2xf32> to vector<2xf32>
      %139 = vector.shape_cast %138 : vector<2xf32> to vector<2x1xf32>
      %140 = vector.broadcast %139 : vector<2x1xf32> to vector<2x2xf32>
      %141 = arith.divf %137, %140 : vector<2x2xf32>
      %c0_85 = arith.constant 0 : index
      %c0_86 = arith.constant 0 : index
      %142 = vector.load %arg10[%c0_85, %c0_86] : memref<2x2xf32, #tpu.memory_space<vmem>>, vector<2x2xf32>
      tpu.vector_store %arg10[%c0_85, %c0_86], %141 {strides = array<i32>} : memref<2x2xf32, #tpu.memory_space<vmem>>, vector<2x2xf32>,
    } else {
    }
    return
  }
  func.func @transform_0(%arg0: i32) -> (i32, i32) {
    %c0_i32 = arith.constant 0 : i32
    %c0_i32_0 = arith.constant 0 : i32
    %c0_i32_1 = arith.constant 0 : i32
    return %c0_i32, %c0_i32_0 : i32, i32
  }
  func.func @transform_1(%arg0: i32) -> (i32, i32) {
    %c0_i32 = arith.constant 0 : i32
    %c0_i32_0 = arith.constant 0 : i32
    %c0_i32_1 = arith.constant 0 : i32
    return %c0_i32, %c0_i32_0 : i32, i32
  }
  func.func @transform_2(%arg0: i32) -> (i32, i32) {
    %c0_i32 = arith.constant 0 : i32
    %c0_i32_0 = arith.constant 0 : i32
    %c0_i32_1 = arith.constant 0 : i32
    return %c0_i32, %c0_i32_0 : i32, i32
  }
  func.func @transform_3(%arg0: i32) -> (i32, i32, i32) {
    %c0_i32 = arith.constant 0 : i32
    %c0_i32_0 = arith.constant 0 : i32
    %c0_i32_1 = arith.constant 0 : i32
    return %arg0, %c0_i32, %c0_i32_0 : i32, i32, i32
  }
  func.func @transform_4(%arg0: i32) -> (i32, i32) {
    %c0_i32 = arith.constant 0 : i32
    %c0_i32_0 = arith.constant 0 : i32
    %c0_i32_1 = arith.constant 0 : i32
    return %c0_i32, %c0_i32_0 : i32, i32
  }
  func.func @transform_5(%arg0: i32) -> (i32, i32) {
    %c0_i32 = arith.constant 0 : i32
    %c0_i32_0 = arith.constant 0 : i32
    %c0_i32_1 = arith.constant 0 : i32
    return %c0_i32, %c0_i32_0 : i32, i32
  }
  func.func @transform_6(%arg0: i32) -> (i32, i32) {
    %c0_i32 = arith.constant 0 : i32
    %c0_i32_0 = arith.constant 0 : i32
    %c0_i32_1 = arith.constant 0 : i32
    return %c0_i32, %c0_i32_0 : i32, i32
  }
  func.func @transform_7(%arg0: i32) -> (i32, i32) {
    %c0_i32 = arith.constant 0 : i32
    %c0_i32_0 = arith.constant 0 : i32
    %c0_i32_1 = arith.constant 0 : i32
    return %c0_i32, %c0_i32_0 : i32, i32
  }
  func.func @transform_8(%arg0: i32) -> (i32, i32) {
    %c0_i32 = arith.constant 0 : i32
    %c0_i32_0 = arith.constant 0 : i32
    %c0_i32_1 = arith.constant 0 : i32
    return %c0_i32, %c0_i32_0 : i32, i32
  }
  func.func @transform_9(%arg0: i32) -> (i32, i32) {
    %c0_i32 = arith.constant 0 : i32
    %c0_i32_0 = arith.constant 0 : i32
    %c0_i32_1 = arith.constant 0 : i32
    return %c0_i32, %c0_i32_0 : i32, i32
  }
}

</mosaic_0001>

<llo_original>
// kernel: net_forward.1
$region0: #{net_forward.1}
  #allocation0 [shape = 'u32[]', space=smem, size = 0x4, offset = 0x4, fixed_abs, tag = 'smem constant byte address 0x4 - core index']
  #allocation1 [shape = 'u32[144,128]{1,0:T(1,128)}', space=vmem, size = 0x12000, scoped, tag = 'internal scratch']
  #allocation2 [shape = 'f32[64,256]{1,0:T(8,128)}', space=vmem, size = 0x10000, scoped, tag = 'scratch operand']
  #allocation3 [shape = 'f32[2,128]{1,0:T(2,128)}', space=vmem, size = 0x400, scoped, tag = 'scratch operand']
  %s0 = inlined_call_operand.vmem [shape: f32[9,2048], index: 0, kind: input, shape index: {}]
  %s1 = inlined_call_operand.vmem [shape: f32[32,9], index: 1, kind: input, shape index: {}]
  %s2 = inlined_call_operand.vmem [shape: f32[32,1], index: 2, kind: input, shape index: {}]
  %s3 = inlined_call_operand.vmem [shape: bf16[32,176,128], index: 3, kind: input, shape index: {}]
  %s4 = inlined_call_operand.vmem [shape: f32[1,128], index: 4, kind: input, shape index: {}]
  %s5 = inlined_call_operand.vmem [shape: f32[128,2], index: 5, kind: input, shape index: {}]
  %s6 = inlined_call_operand.vmem [shape: f32[1,2], index: 6, kind: input, shape index: {}]
  %s7 = inlined_call_operand.vmem [shape: f32[2,2], index: 7, kind: input, shape index: {}]
  %s8 = inlined_call_operand.vmem [shape: f32[2,2], index: 8, kind: input, shape index: {}]
  %s9 = inlined_call_operand.hbm [shape: f32[2,2], index: 9, kind: output, shape index: {}]
  %s10 = sld [smem:[#allocation0]]
  $region77: #{net_forward.1} parent=0
    _
  %s12 = ssub.s32 1, %s10
  %s13 = scalar_select 0, %s12, %s10
  $region1: #{net_forward.1} parent=0
    #allocation4 [shape = 'u8[1024]{0}', space=vmem, size = 0x400, scoped, tag = 'output window, operand 0, single buffered']
    #allocation5 [shape = 's32[2]{0}', space=sflag, size = 0x8, scoped, tag = 'scoped memory for net_forward.1']
    %14 = vsyncpa [#allocation5], 0
    loop: start=0, step=1, limit=6
    $region2: #{net_forward.1} parent=1 // loop_pre_header
      _
    $region3: #{net_forward.1} parent=1 // loop_header
      %s16 = sphi 0, %s20
      %p17 = scmp.ge.s32.totalorder %s16, 6
      %s24 = sphi 0, %s24
      %s26 = sphi 0, %s24
      %s27 = sphi 0, %s26
      %s41 = sphi 0, %s27
      %s45 = sphi 0, %s45
      %s47 = sphi 0, %s45
      %s48 = sphi 0, %s47
      %s62 = sphi 0, %s48
      %s66 = sphi 0, %s66
      %s68 = sphi 0, %s66
      %s69 = sphi 0, %s68
      %s83 = sphi 0, %s69
      %s89 = sphi 0, %s91
      %s92 = sphi 0, %s89
      %s93 = sphi 0, %s92
      %s109 = sphi 0, %s93
      %s113 = sphi 0, %s113
      %s115 = sphi 0, %s113
      %s116 = sphi 0, %s115
      %s130 = sphi 0, %s116
      %s134 = sphi 0, %s134
      %s136 = sphi 0, %s134
      %s137 = sphi 0, %s136
      %s151 = sphi 0, %s137
      %s155 = sphi 0, %s155
      %s157 = sphi 0, %s155
      %s158 = sphi 0, %s157
      %s172 = sphi 0, %s158
      %s176 = sphi 0, %s176
      %s178 = sphi 0, %s176
      %s179 = sphi 0, %s178
      %s193 = sphi 0, %s179
      %s197 = sphi 0, %s197
      %s199 = sphi 0, %s197
      %s200 = sphi 0, %s199
      %s214 = sphi 0, %s200
      %s218 = sphi 0, %s218
      %s220 = sphi 0, %s218
      %s221 = sphi 0, %s220
      %s235 = sphi 0, %s221
    $region4: #{net_forward.1} parent=1 // loop_header_branch
      %19 = sbr.rel (%p17) target = $region8
    $region5: #{net_forward.1} parent=1 // loop_body
      %s21 = ssub.s32 %s16, 1
      %s22 = ssub.s32 %s16, 2
      %s23 = sadd.s32 %s16, 1
      %s25 = sadd.s32 %s24, 1
      %p28 = scmp.eq.s32.totalorder %s16, 3
      %p29 = scmp.ne.s32.totalorder %s24, %s26
      %p30 = scmp.eq.s32.totalorder %s16, 0
      %p31 = por %p29, %p30
      %p32 = scmp.ne.s32.totalorder %s24, %s26
      %p33 = scmp.eq.s32.totalorder %s21, 3
      %p34 = por %p32, %p33
      %p35 = scmp.ne.s32.totalorder %s26, %s27
      %p36 = scmp.eq.s32.totalorder %s21, 0
      %p37 = por %p35, %p36
      %p38 = scmp.ne.s32.totalorder %s26, %s27
      %p39 = scmp.eq.s32.totalorder %s22, 3
      %p40 = por %p38, %p39
      %p42 = scmp.ne.s32.totalorder %s27, %s41
      %p43 = scmp.eq.s32.totalorder %s22, 0
      %p44 = por %p42, %p43
      %s46 = sadd.s32 %s45, 1
      %p49 = scmp.eq.s32.totalorder %s16, 3
      %p50 = scmp.ne.s32.totalorder %s45, %s47
      %p51 = scmp.eq.s32.totalorder %s16, 0
      %p52 = por %p50, %p51
      %p53 = scmp.ne.s32.totalorder %s45, %s47
      %p54 = scmp.eq.s32.totalorder %s21, 3
      %p55 = por %p53, %p54
      %p56 = scmp.ne.s32.totalorder %s47, %s48
      %p57 = scmp.eq.s32.totalorder %s21, 0
      %p58 = por %p56, %p57
      %p59 = scmp.ne.s32.totalorder %s47, %s48
      %p60 = scmp.eq.s32.totalorder %s22, 3
      %p61 = por %p59, %p60
      %p63 = scmp.ne.s32.totalorder %s48, %s62
      %p64 = scmp.eq.s32.totalorder %s22, 0
      %p65 = por %p63, %p64
      %s67 = sadd.s32 %s66, 1
      %p70 = scmp.eq.s32.totalorder %s16, 3
      %p71 = scmp.ne.s32.totalorder %s66, %s68
      %p72 = scmp.eq.s32.totalorder %s16, 0
      %p73 = por %p71, %p72
      %p74 = scmp.ne.s32.totalorder %s66, %s68
      %p75 = scmp.eq.s32.totalorder %s21, 3
      %p76 = por %p74, %p75
      %p77 = scmp.ne.s32.totalorder %s68, %s69
      %p78 = scmp.eq.s32.totalorder %s21, 0
      %p79 = por %p77, %p78
      %p80 = scmp.ne.s32.totalorder %s68, %s69
      %p81 = scmp.eq.s32.totalorder %s22, 3
      %p82 = por %p80, %p81
      %p84 = scmp.ne.s32.totalorder %s69, %s83
      %p85 = scmp.eq.s32.totalorder %s22, 0
      %p86 = por %p84, %p85
      %s87 = ssub.s32 %s16, %s23
      %p88 = scmp.eq.s32.totalorder %s87, 0
      %s90 = sadd.s32 %s89, 1
      %s91 = scalar_select %p88, %s89, %s90
      %p94 = pneg %p88
      %p95 = scmp.eq.s32.totalorder %s16, 3
      %p96 = por %p94, %p95
      %p97 = scmp.ne.s32.totalorder %s89, %s92
      %p98 = scmp.eq.s32.totalorder %s16, 0
      %p99 = por %p97, %p98
      %p100 = scmp.ne.s32.totalorder %s89, %s92
      %p101 = scmp.eq.s32.totalorder %s21, 3
      %p102 = por %p100, %p101
      %p103 = scmp.ne.s32.totalorder %s92, %s93
      %p104 = scmp.eq.s32.totalorder %s21, 0
      %p105 = por %p103, %p104
      %p106 = scmp.ne.s32.totalorder %s92, %s93
      %p107 = scmp.eq.s32.totalorder %s22, 3
      %p108 = por %p106, %p107
      %p110 = scmp.ne.s32.totalorder %s93, %s109
      %p111 = scmp.eq.s32.totalorder %s22, 0
      %p112 = por %p110, %p111
      %s114 = sadd.s32 %s113, 1
      %p117 = scmp.eq.s32.totalorder %s16, 3
      %p118 = scmp.ne.s32.totalorder %s113, %s115
      %p119 = scmp.eq.s32.totalorder %s16, 0
      %p120 = por %p118, %p119
      %p121 = scmp.ne.s32.totalorder %s113, %s115
      %p122 = scmp.eq.s32.totalorder %s21, 3
      %p123 = por %p121, %p122
      %p124 = scmp.ne.s32.totalorder %s115, %s116
      %p125 = scmp.eq.s32.totalorder %s21, 0
      %p126 = por %p124, %p125
      %p127 = scmp.ne.s32.totalorder %s115, %s116
      %p128 = scmp.eq.s32.totalorder %s22, 3
      %p129 = por %p127, %p128
      %p131 = scmp.ne.s32.totalorder %s116, %s130
      %p132 = scmp.eq.s32.totalorder %s22, 0
      %p133 = por %p131, %p132
      %s135 = sadd.s32 %s134, 1
      %p138 = scmp.eq.s32.totalorder %s16, 3
      %p139 = scmp.ne.s32.totalorder %s134, %s136
      %p140 = scmp.eq.s32.totalorder %s16, 0
      %p141 = por %p139, %p140
      %p142 = scmp.ne.s32.totalorder %s134, %s136
      %p143 = scmp.eq.s32.totalorder %s21, 3
      %p144 = por %p142, %p143
      %p145 = scmp.ne.s32.totalorder %s136, %s137
      %p146 = scmp.eq.s32.totalorder %s21, 0
      %p147 = por %p145, %p146
      %p148 = scmp.ne.s32.totalorder %s136, %s137
      %p149 = scmp.eq.s32.totalorder %s22, 3
      %p150 = por %p148, %p149
      %p152 = scmp.ne.s32.totalorder %s137, %s151
      %p153 = scmp.eq.s32.totalorder %s22, 0
      %p154 = por %p152, %p153
      %s156 = sadd.s32 %s155, 1
      %p159 = scmp.eq.s32.totalorder %s16, 3
      %p160 = scmp.ne.s32.totalorder %s155, %s157
      %p161 = scmp.eq.s32.totalorder %s16, 0
      %p162 = por %p160, %p161
      %p163 = scmp.ne.s32.totalorder %s155, %s157
      %p164 = scmp.eq.s32.totalorder %s21, 3
      %p165 = por %p163, %p164
      %p166 = scmp.ne.s32.totalorder %s157, %s158
      %p167 = scmp.eq.s32.totalorder %s21, 0
      %p168 = por %p166, %p167
      %p169 = scmp.ne.s32.totalorder %s157, %s158
      %p170 = scmp.eq.s32.totalorder %s22, 3
      %p171 = por %p169, %p170
      %p173 = scmp.ne.s32.totalorder %s158, %s172
      %p174 = scmp.eq.s32.totalorder %s22, 0
      %p175 = por %p173, %p174
      %s177 = sadd.s32 %s176, 1
      %p180 = scmp.eq.s32.totalorder %s16, 3
      %p181 = scmp.ne.s32.totalorder %s176, %s178
      %p182 = scmp.eq.s32.totalorder %s16, 0
      %p183 = por %p181, %p182
      %p184 = scmp.ne.s32.totalorder %s176, %s178
      %p185 = scmp.eq.s32.totalorder %s21, 3
      %p186 = por %p184, %p185
      %p187 = scmp.ne.s32.totalorder %s178, %s179
      %p188 = scmp.eq.s32.totalorder %s21, 0
      %p189 = por %p187, %p188
      %p190 = scmp.ne.s32.totalorder %s178, %s179
      %p191 = scmp.eq.s32.totalorder %s22, 3
      %p192 = por %p190, %p191
      %p194 = scmp.ne.s32.totalorder %s179, %s193
      %p195 = scmp.eq.s32.totalorder %s22, 0
      %p196 = por %p194, %p195
      %s198 = sadd.s32 %s197, 1
      %p201 = scmp.eq.s32.totalorder %s16, 3
      %p202 = scmp.ne.s32.totalorder %s197, %s199
      %p203 = scmp.eq.s32.totalorder %s16, 0
      %p204 = por %p202, %p203
      %p205 = scmp.ne.s32.totalorder %s197, %s199
      %p206 = scmp.eq.s32.totalorder %s21, 3
      %p207 = por %p205, %p206
      %p208 = scmp.ne.s32.totalorder %s199, %s200
      %p209 = scmp.eq.s32.totalorder %s21, 0
      %p210 = por %p208, %p209
      %p211 = scmp.ne.s32.totalorder %s199, %s200
      %p212 = scmp.eq.s32.totalorder %s22, 3
      %p213 = por %p211, %p212
      %p215 = scmp.ne.s32.totalorder %s200, %s214
      %p216 = scmp.eq.s32.totalorder %s22, 0
      %p217 = por %p215, %p216
      %s219 = sadd.s32 %s218, 1
      %p222 = scmp.eq.s32.totalorder %s16, 3
      %p223 = scmp.ne.s32.totalorder %s218, %s220
      %p224 = scmp.eq.s32.totalorder %s16, 0
      %p225 = por %p223, %p224
      %p226 = scmp.ne.s32.totalorder %s218, %s220
      %p227 = scmp.eq.s32.totalorder %s21, 3
      %p228 = por %p226, %p227
      %p229 = scmp.ne.s32.totalorder %s220, %s221
      %p230 = scmp.eq.s32.totalorder %s21, 0
      %p231 = por %p229, %p230
      %p232 = scmp.ne.s32.totalorder %s220, %s221
      %p233 = scmp.eq.s32.totalorder %s22, 3
      %p234 = por %p232, %p233
      %p236 = scmp.ne.s32.totalorder %s221, %s235
      %p237 = scmp.eq.s32.totalorder %s22, 0
      %p238 = por %p236, %p237
      %p239 = scmp.le.s32.totalorder 1, %s16
      %p240 = scmp.lt.s32.totalorder %s16, 5
      %p241 = pnand %p239, %p240
      %p242 = pneg %p241
      // Predicated region
      $region9: #{net_forward.1} parent=5 // pred_check
        _
      $region10: #{net_forward.1} parent=5 // pred_check_branch
        %244 = sbr.rel (%p241) target = $region12
      $region11: #{net_forward.1} parent=5 // pred_region
        %s245 = ssub.s32 %s16, 1
        // Predicated region
        $region13: #{net_forward.1} parent=11 // pred_check
          %p246 = pneg %p37
        $region14: #{net_forward.1} parent=11 // pred_check_branch
          %248 = sbr.rel (%p246) target = $region16
        $region15: #{net_forward.1} parent=11 // pred_region
          _
        $region16: #{net_forward.1} parent=11 // pred_fallthru
          _
        // Predicated region
        $region17: #{net_forward.1} parent=11 // pred_check
          %p249 = pneg %p58
        $region18: #{net_forward.1} parent=11 // pred_check_branch
          %251 = sbr.rel (%p249) target = $region20
        $region19: #{net_forward.1} parent=11 // pred_region
          _
        $region20: #{net_forward.1} parent=11 // pred_fallthru
          _
        // Predicated region
        $region21: #{net_forward.1} parent=11 // pred_check
          %p252 = pneg %p79
        $region22: #{net_forward.1} parent=11 // pred_check_branch
          %254 = sbr.rel (%p252) target = $region24
        $region23: #{net_forward.1} parent=11 // pred_region
          _
        $region24: #{net_forward.1} parent=11 // pred_fallthru
          _
        // Predicated region
        $region25: #{net_forward.1} parent=11 // pred_check
          %p255 = pneg %p126
        $region26: #{net_forward.1} parent=11 // pred_check_branch
          %257 = sbr.rel (%p255) target = $region28
        $region27: #{net_forward.1} parent=11 // pred_region
          _
        $region28: #{net_forward.1} parent=11 // pred_fallthru
          _
        // Predicated region
        $region29: #{net_forward.1} parent=11 // pred_check
          %p258 = pneg %p147
        $region30: #{net_forward.1} parent=11 // pred_check_branch
          %260 = sbr.rel (%p258) target = $region32
        $region31: #{net_forward.1} parent=11 // pred_region
          _
        $region32: #{net_forward.1} parent=11 // pred_fallthru
          _
        // Predicated region
        $region33: #{net_forward.1} parent=11 // pred_check
          %p261 = pneg %p168
        $region34: #{net_forward.1} parent=11 // pred_check_branch
          %263 = sbr.rel (%p261) target = $region36
        $region35: #{net_forward.1} parent=11 // pred_region
          _
        $region36: #{net_forward.1} parent=11 // pred_fallthru
          _
        // Predicated region
        $region37: #{net_forward.1} parent=11 // pred_check
          %p264 = pneg %p189
        $region38: #{net_forward.1} parent=11 // pred_check_branch
          %266 = sbr.rel (%p264) target = $region40
        $region39: #{net_forward.1} parent=11 // pred_region
          _
        $region40: #{net_forward.1} parent=11 // pred_fallthru
          _
        // Predicated region
        $region41: #{net_forward.1} parent=11 // pred_check
          %p267 = pneg %p210
        $region42: #{net_forward.1} parent=11 // pred_check_branch
          %269 = sbr.rel (%p267) target = $region44
        $region43: #{net_forward.1} parent=11 // pred_region
          _
        $region44: #{net_forward.1} parent=11 // pred_fallthru
          _
      $region12: #{net_forward.1} parent=5 // pred_fallthru
        _
      %p270 = scmp.lt.s32.totalorder %s16, 4
      // Predicated region
      $region45: #{net_forward.1} parent=5 // pred_check
        %p271 = pneg %p270
      $region46: #{net_forward.1} parent=5 // pred_check_branch
        %273 = sbr.rel (%p271) target = $region48
      $region47: #{net_forward.1} parent=5 // pred_region
        // Predicated region
        $region49: #{net_forward.1} parent=47 // pred_check
          %p274 = pneg %p99
        $region50: #{net_forward.1} parent=47 // pred_check_branch
          %276 = sbr.rel (%p274) target = $region52
        $region51: #{net_forward.1} parent=47 // pred_region
          %s277 = smul.u32 8, %s16
          %p278 = scmp.lt.s32.totalorder %s277, 31
          %s279 = scalar_select %p278, %s277, 31
          %s280 = smul.addr %s279, 22
          %s281 = smul.addr %s280, 4
          %s282 = scalar_lea.vmem %s3, %s281
          %s283 = smul.u32 8, %s16
        $region52: #{net_forward.1} parent=47 // pred_fallthru
          _
      $region48: #{net_forward.1} parent=5 // pred_fallthru
        _
      %p284 = scmp.le.s32.totalorder 1, %s16
      %p285 = scmp.lt.s32.totalorder %s16, 5
      %p286 = pnand %p284, %p285
      %p287 = pneg %p286
      // Predicated region
      $region53: #{net_forward.1} parent=5 // pred_check
        _
      $region54: #{net_forward.1} parent=5 // pred_check_branch
        %289 = sbr.rel (%p286) target = $region56
      $region55: #{net_forward.1} parent=5 // pred_region
        %s290 = ssub.s32 %s16, 1
        %p291 = pneg %p37
        %p292 = pneg %p34
        %p293 = pneg %p58
        %p294 = pneg %p55
        %p295 = pneg %p79
        %p296 = pneg %p76
        %s297 = smul.u32 8, %s21
        %p298 = scmp.lt.s32.totalorder %s297, 31
        %s299 = scalar_select %p298, %s297, 31
        %s300 = smul.addr %s299, 22
        %s301 = smul.addr %s300, 4
        %s302 = scalar_lea.vmem %s3, %s301
        %p303 = pneg %p105
        %p304 = pneg %p102
        %p305 = pneg %p126
        %p306 = pneg %p123
        %p307 = pneg %p147
        %p308 = pneg %p144
        %p309 = pneg %p168
        %p310 = pneg %p165
        %p311 = pneg %p189
        %p312 = pneg %p186
        %p313 = pneg %p210
        %p314 = pneg %p207
        %p315 = pneg %p231
        %p316 = pneg %p228
        %s317 = smul.u32 8, %s21
        %p318 = scmp.lt.s32.totalorder %s317, 31
        %s319 = scalar_select %p318, %s317, 31
        %s320 = smul.addr %s319, 22
        %s321 = smul.addr %s320, 4
        %s322 = scalar_lea.vmem %s3, %s321
        %s323 = smul.u32 8, %s21
        %p325 = scmp.eq.s32.totalorder %s21, 0
        // Predicated region
        $region57: #{net_forward.1} parent=55 // pred_check
          %p326 = pneg %p325
        $region58: #{net_forward.1} parent=55 // pred_check_branch
          %328 = sbr.rel (%p326) target = $region60
        $region59: #{net_forward.1} parent=55 // pred_region
          %v329 = vld [vmem:[%s1] sm:$0xff]
          %v330 = vld [vmem:[%s1 + $0x8] sm:$0xff]
          %v331 = vld [vmem:[%s1 + $0x10] sm:$0xff]
          %v332 = vld [vmem:[%s1 + $0x18] sm:$0xff]
          %v333 = vld [vmem:[%s0] sm:$0xff]
          %v334 = vld [vmem:[%s0 + $0x8] sm:$0xff]
          %v335 = vld [vmem:[%s0 + $0x10] sm:$0xff]
          %v336 = vld [vmem:[%s0 + $0x18] sm:$0xff]
          %v337 = vld [vmem:[%s0 + $0x80] sm:$0x1]
          %v338 = vld [vmem:[%s0 + $0x88] sm:$0x1]
          %v339 = vld [vmem:[%s0 + $0x90] sm:$0x1]
          %v340 = vld [vmem:[%s0 + $0x98] sm:$0x1]
          %vm341 = vcmask 72704
          %v343 = vsel %vm341, %v329, 0
          %v346 = vsel %vm341, %v330, 0
          %v349 = vsel %vm341, %v331, 0
          %v352 = vsel %vm341, %v332, 0
          %vm354 = vcmask 1040384
          %v356 = vsel %vm354, %v337, 0
          %v359 = vsel %vm354, %v338, 0
          %v362 = vsel %vm354, %v339, 0
          %v365 = vsel %vm354, %v340, 0
          %367 = vmatprep.subr.mxu0 %v334
          %368 = vmatpush1.msra.mxu0 %v333
          %369 = vmatprep.subr.mxu0 %v359
          %370 = vmatpush1.msra.mxu0 %v356
          %371 = vmatprep.subr.mxu0 0.0
          %372 = vmatpush1.msra.mxu0 0.0
          %373 = vmatprep.subr.mxu0 0.0
          %374 = vmatpush1.msra.mxu0 0.0
          %375 = vmatprep.subr.mxu0 0.0
          %376 = vmatpush1.msra.mxu0 0.0
          %377 = vmatprep.subr.mxu0 0.0
          %378 = vmatpush1.msra.mxu0 0.0
          %379 = vmatprep.subr.mxu0 0.0
          %380 = vmatpush1.msra.mxu0 0.0
          %381 = vmatprep.subr.mxu0 0.0
          %382 = vmatpush1.msra.mxu0 0.0
          %383 = vmatprep.subr.mxu0 0.0
          %384 = vmatpush1.msra.mxu0 0.0
          %385 = vmatprep.subr.mxu0 0.0
          %386 = vmatpush1.msra.mxu0 0.0
          %387 = vmatprep.subr.mxu0 0.0
          %388 = vmatpush1.msra.mxu0 0.0
          %389 = vmatprep.subr.mxu0 0.0
          %390 = vmatpush1.msra.mxu0 0.0
          %391 = vmatprep.subr.mxu0 0.0
          %392 = vmatpush1.msra.mxu0 0.0
          %393 = vmatprep.subr.mxu0 0.0
          %394 = vmatpush1.msra.mxu0 0.0
          %395 = vmatprep.subr.mxu0 0.0
          %396 = vmatpush1.msra.mxu0 0.0
          %397 = vmatprep.subr.mxu0 0.0
          %398 = vmatpush1.msra.mxu0 0.0
          %399 = vmatprep.subr.mxu0 0.0
          %400 = vmatpush1.msra.mxu0 0.0
          %401 = vmatprep.subr.mxu0 0.0
          %402 = vmatpush1.msra.mxu0 0.0
          %403 = vmatprep.subr.mxu0 0.0
          %404 = vmatpush1.msra.mxu0 0.0
          %405 = vmatprep.subr.mxu0 0.0
          %406 = vmatpush1.msra.mxu0 0.0
          %407 = vmatprep.subr.mxu0 0.0
          %408 = vmatpush1.msra.mxu0 0.0
          %409 = vmatprep.subr.mxu0 0.0
          %410 = vmatpush1.msra.mxu0 0.0
          %411 = vmatprep.subr.mxu0 0.0
          %412 = vmatpush1.msra.mxu0 0.0
          %413 = vmatprep.subr.mxu0 0.0
          %414 = vmatpush1.msra.mxu0 0.0
          %415 = vmatprep.subr.mxu0 0.0
          %416 = vmatpush1.msra.mxu0 0.0
          %417 = vmatprep.subr.mxu0 0.0
          %418 = vmatpush1.msra.mxu0 0.0
          %419 = vmatprep.subr.mxu0 0.0
          %420 = vmatpush1.msra.mxu0 0.0
          %421 = vmatprep.subr.mxu0 0.0
          %422 = vmatpush1.msra.mxu0 0.0
          %423 = vmatprep.subr.mxu0 0.0
          %424 = vmatpush1.msra.mxu0 0.0
          %425 = vmatprep.subr.mxu0 0.0
          %426 = vmatpush1.msra.mxu0 0.0
          %427 = vmatprep.subr.mxu0 0.0
          %428 = vmatpush1.msra.mxu0 0.0
          %429 = vmatprep.subr.mxu0 0.0
          %430 = vmatpush1.msra.mxu0 0.0
          %431 = vmatprep.mubr.f32.mxu0 0.0
          %432 = vmatmul.mubr.f32.gmra.mrb[0].mxu0 %v343
          %v433 = vpop.f32.mrb[0].mxu0
          %v434 = vadd.f32 0.0, %v433
          %v435 = vpop.f32.mrb[0].mxu0
          %v436 = vadd.f32 0.0, %v435
          %437 = vmatprep.mubr.f32.mxu0 0.0
          %438 = vmatmul.mubr.f32.gmra.mrb[0].mxu0 %v346
          %v439 = vpop.f32.mrb[0].mxu0
          %v440 = vadd.f32 0.0, %v439
          %v441 = vpop.f32.mrb[0].mxu0
          %v442 = vadd.f32 0.0, %v441
          %443 = vmatprep.mubr.f32.mxu0 0.0
          %444 = vmatmul.mubr.f32.gmra.mrb[0].mxu0 %v349
          %v445 = vpop.f32.mrb[0].mxu0
          %v446 = vadd.f32 0.0, %v445
          %v447 = vpop.f32.mrb[0].mxu0
          %v448 = vadd.f32 0.0, %v447
          %449 = vmatprep.mubr.f32.mxu0 0.0
          %450 = vmatmul.mubr.f32.gmra.mrb[0].mxu0 %v352
          %v451 = vpop.f32.mrb[0].mxu0
          %v452 = vadd.f32 0.0, %v451
          %v453 = vpop.f32.mrb[0].mxu0
          %v454 = vadd.f32 0.0, %v453
          %455 = vdwg.mxu0
          %456 = vmatprep.subr.mxu0 %v336
          %457 = vmatpush1.msra.mxu0 %v335
          %458 = vmatprep.subr.mxu0 %v365
          %459 = vmatpush1.msra.mxu0 %v362
          %460 = vmatprep.subr.mxu0 0.0
          %461 = vmatpush1.msra.mxu0 0.0
          %462 = vmatprep.subr.mxu0 0.0
          %463 = vmatpush1.msra.mxu0 0.0
          %464 = vmatprep.subr.mxu0 0.0
          %465 = vmatpush1.msra.mxu0 0.0
          %466 = vmatprep.subr.mxu0 0.0
          %467 = vmatpush1.msra.mxu0 0.0
          %468 = vmatprep.subr.mxu0 0.0
          %469 = vmatpush1.msra.mxu0 0.0
          %470 = vmatprep.subr.mxu0 0.0
          %471 = vmatpush1.msra.mxu0 0.0
          %472 = vmatprep.subr.mxu0 0.0
          %473 = vmatpush1.msra.mxu0 0.0
          %474 = vmatprep.subr.mxu0 0.0
          %475 = vmatpush1.msra.mxu0 0.0
          %476 = vmatprep.subr.mxu0 0.0
          %477 = vmatpush1.msra.mxu0 0.0
          %478 = vmatprep.subr.mxu0 0.0
          %479 = vmatpush1.msra.mxu0 0.0
          %480 = vmatprep.subr.mxu0 0.0
          %481 = vmatpush1.msra.mxu0 0.0
          %482 = vmatprep.subr.mxu0 0.0
          %483 = vmatpush1.msra.mxu0 0.0
          %484 = vmatprep.subr.mxu0 0.0
          %485 = vmatpush1.msra.mxu0 0.0
          %486 = vmatprep.subr.mxu0 0.0
          %487 = vmatpush1.msra.mxu0 0.0
          %488 = vmatprep.subr.mxu0 0.0
          %489 = vmatpush1.msra.mxu0 0.0
          %490 = vmatprep.subr.mxu0 0.0
          %491 = vmatpush1.msra.mxu0 0.0
          %492 = vmatprep.subr.mxu0 0.0
          %493 = vmatpush1.msra.mxu0 0.0
          %494 = vmatprep.subr.mxu0 0.0
          %495 = vmatpush1.msra.mxu0 0.0
          %496 = vmatprep.subr.mxu0 0.0
          %497 = vmatpush1.msra.mxu0 0.0
          %498 = vmatprep.subr.mxu0 0.0
          %499 = vmatpush1.msra.mxu0 0.0
          %500 = vmatprep.subr.mxu0 0.0
          %501 = vmatpush1.msra.mxu0 0.0
          %502 = vmatprep.subr.mxu0 0.0
          %503 = vmatpush1.msra.mxu0 0.0
          %504 = vmatprep.subr.mxu0 0.0
          %505 = vmatpush1.msra.mxu0 0.0
          %506 = vmatprep.subr.mxu0 0.0
          %507 = vmatpush1.msra.mxu0 0.0
          %508 = vmatprep.subr.mxu0 0.0
          %509 = vmatpush1.msra.mxu0 0.0
          %510 = vmatprep.subr.mxu0 0.0
          %511 = vmatpush1.msra.mxu0 0.0
          %512 = vmatprep.subr.mxu0 0.0
          %513 = vmatpush1.msra.mxu0 0.0
          %514 = vmatprep.subr.mxu0 0.0
          %515 = vmatpush1.msra.mxu0 0.0
          %516 = vmatprep.subr.mxu0 0.0
          %517 = vmatpush1.msra.mxu0 0.0
          %518 = vmatprep.subr.mxu0 0.0
          %519 = vmatpush1.msra.mxu0 0.0
          %520 = vmatprep.mubr.f32.mxu0 0.0
          %521 = vmatmul.mubr.f32.gmra.mrb[0].mxu0 %v343
          %v522 = vpop.f32.mrb[0].mxu0
          %v523 = vadd.f32 0.0, %v522
          %v524 = vpop.f32.mrb[0].mxu0
          %v525 = vadd.f32 0.0, %v524
          %526 = vmatprep.mubr.f32.mxu0 0.0
          %527 = vmatmul.mubr.f32.gmra.mrb[0].mxu0 %v346
          %v528 = vpop.f32.mrb[0].mxu0
          %v529 = vadd.f32 0.0, %v528
          %v530 = vpop.f32.mrb[0].mxu0
          %v531 = vadd.f32 0.0, %v530
          %532 = vmatprep.mubr.f32.mxu0 0.0
          %533 = vmatmul.mubr.f32.gmra.mrb[0].mxu0 %v349
          %v534 = vpop.f32.mrb[0].mxu0
          %v535 = vadd.f32 0.0, %v534
          %v536 = vpop.f32.mrb[0].mxu0
          %v537 = vadd.f32 0.0, %v536
          %538 = vmatprep.mubr.f32.mxu0 0.0
          %539 = vmatmul.mubr.f32.gmra.mrb[0].mxu0 %v352
          %v540 = vpop.f32.mrb[0].mxu0
          %v541 = vadd.f32 0.0, %v540
          %v542 = vpop.f32.mrb[0].mxu0
          %v543 = vadd.f32 0.0, %v542
          %544 = vdwg.mxu0
          %v545 = vld [vmem:[%s0 + $0x20] sm:$0xff]
          %v546 = vld [vmem:[%s0 + $0x28] sm:$0xff]
          %v547 = vld [vmem:[%s0 + $0x30] sm:$0xff]
          %v548 = vld [vmem:[%s0 + $0x38] sm:$0xff]
          %v549 = vld [vmem:[%s0 + $0xa0] sm:$0x1]
          %v550 = vld [vmem:[%s0 + $0xa8] sm:$0x1]
          %v551 = vld [vmem:[%s0 + $0xb0] sm:$0x1]
          %v552 = vld [vmem:[%s0 + $0xb8] sm:$0x1]
          %v554 = vsel %vm354, %v549, 0
          %v557 = vsel %vm354, %v550, 0
          %v560 = vsel %vm354, %v551, 0
          %v563 = vsel %vm354, %v552, 0
          %565 = vmatprep.subr.mxu0 %v546
          %566 = vmatpush1.msra.mxu0 %v545
          %567 = vmatprep.subr.mxu0 %v557
          %568 = vmatpush1.msra.mxu0 %v554
          %569 = vmatprep.subr.mxu0 0.0
          %570 = vmatpush1.msra.mxu0 0.0
          %571 = vmatprep.subr.mxu0 0.0
          %572 = vmatpush1.msra.mxu0 0.0
          %573 = vmatprep.subr.mxu0 0.0
          %574 = vmatpush1.msra.mxu0 0.0
          %575 = vmatprep.subr.mxu0 0.0
          %576 = vmatpush1.msra.mxu0 0.0
          %577 = vmatprep.subr.mxu0 0.0
          %578 = vmatpush1.msra.mxu0 0.0
          %579 = vmatprep.subr.mxu0 0.0
          %580 = vmatpush1.msra.mxu0 0.0
          %581 = vmatprep.subr.mxu0 0.0
          %582 = vmatpush1.msra.mxu0 0.0
          %583 = vmatprep.subr.mxu0 0.0
          %584 = vmatpush1.msra.mxu0 0.0
          %585 = vmatprep.subr.mxu0 0.0
          %586 = vmatpush1.msra.mxu0 0.0
          %587 = vmatprep.subr.mxu0 0.0
          %588 = vmatpush1.msra.mxu0 0.0
          %589 = vmatprep.subr.mxu0 0.0
          %590 = vmatpush1.msra.mxu0 0.0
          %591 = vmatprep.subr.mxu0 0.0
          %592 = vmatpush1.msra.mxu0 0.0
          %593 = vmatprep.subr.mxu0 0.0
          %594 = vmatpush1.msra.mxu0 0.0
          %595 = vmatprep.subr.mxu0 0.0
          %596 = vmatpush1.msra.mxu0 0.0
          %597 = vmatprep.subr.mxu0 0.0
          %598 = vmatpush1.msra.mxu0 0.0
          %599 = vmatprep.subr.mxu0 0.0
          %600 = vmatpush1.msra.mxu0 0.0
          %601 = vmatprep.subr.mxu0 0.0
          %602 = vmatpush1.msra.mxu0 0.0
          %603 = vmatprep.subr.mxu0 0.0
          %604 = vmatpush1.msra.mxu0 0.0
          %605 = vmatprep.subr.mxu0 0.0
          %606 = vmatpush1.msra.mxu0 0.0
          %607 = vmatprep.subr.mxu0 0.0
          %608 = vmatpush1.msra.mxu0 0.0
          %609 = vmatprep.subr.mxu0 0.0
          %610 = vmatpush1.msra.mxu0 0.0
          %611 = vmatprep.subr.mxu0 0.0
          %612 = vmatpush1.msra.mxu0 0.0
          %613 = vmatprep.subr.mxu0 0.0
          %614 = vmatpush1.msra.mxu0 0.0
          %615 = vmatprep.subr.mxu0 0.0
          %616 = vmatpush1.msra.mxu0 0.0
          %617 = vmatprep.subr.mxu0 0.0
          %618 = vmatpush1.msra.mxu0 0.0
          %619 = vmatprep.subr.mxu0 0.0
          %620 = vmatpush1.msra.mxu0 0.0
          %621 = vmatprep.subr.mxu0 0.0
          %622 = vmatpush1.msra.mxu0 0.0
          %623 = vmatprep.subr.mxu0 0.0
          %624 = vmatpush1.msra.mxu0 0.0
          %625 = vmatprep.subr.mxu0 0.0
          %626 = vmatpush1.msra.mxu0 0.0
          %627 = vmatprep.subr.mxu0 0.0
          %628 = vmatpush1.msra.mxu0 0.0
          %629 = vmatprep.mubr.f32.mxu0 0.0
          %630 = vmatmul.mubr.f32.gmra.mrb[0].mxu0 %v343
          %v631 = vpop.f32.mrb[0].mxu0
          %v632 = vadd.f32 0.0, %v631
          %v633 = vpop.f32.mrb[0].mxu0
          %v634 = vadd.f32 0.0, %v633
          %635 = vmatprep.mubr.f32.mxu0 0.0
          %636 = vmatmul.mubr.f32.gmra.mrb[0].mxu0 %v346
          %v637 = vpop.f32.mrb[0].mxu0
          %v638 = vadd.f32 0.0, %v637
          %v639 = vpop.f32.mrb[0].mxu0
          %v640 = vadd.f32 0.0, %v639
          %641 = vmatprep.mubr.f32.mxu0 0.0
          %642 = vmatmul.mubr.f32.gmra.mrb[0].mxu0 %v349
          %v643 = vpop.f32.mrb[0].mxu0
          %v644 = vadd.f32 0.0, %v643
          %v645 = vpop.f32.mrb[0].mxu0
          %v646 = vadd.f32 0.0, %v645
          %647 = vmatprep.mubr.f32.mxu0 0.0
          %648 = vmatmul.mubr.f32.gmra.mrb[0].mxu0 %v352
          %v649 = vpop.f32.mrb[0].mxu0
          %v650 = vadd.f32 0.0, %v649
          %v651 = vpop.f32.mrb[0].mxu0
          %v652 = vadd.f32 0.0, %v651
          %653 = vdwg.mxu0
          %654 = vmatprep.subr.mxu0 %v548
          %655 = vmatpush1.msra.mxu0 %v547
          %656 = vmatprep.subr.mxu0 %v563
          %657 = vmatpush1.msra.mxu0 %v560
          %658 = vmatprep.subr.mxu0 0.0
          %659 = vmatpush1.msra.mxu0 0.0
          %660 = vmatprep.subr.mxu0 0.0
          %661 = vmatpush1.msra.mxu0 0.0
          %662 = vmatprep.subr.mxu0 0.0
          %663 = vmatpush1.msra.mxu0 0.0
          %664 = vmatprep.subr.mxu0 0.0
          %665 = vmatpush1.msra.mxu0 0.0
          %666 = vmatprep.subr.mxu0 0.0
          %667 = vmatpush1.msra.mxu0 0.0
          %668 = vmatprep.subr.mxu0 0.0
          %669 = vmatpush1.msra.mxu0 0.0
          %670 = vmatprep.subr.mxu0 0.0
          %671 = vmatpush1.msra.mxu0 0.0
          %672 = vmatprep.subr.mxu0 0.0
          %673 = vmatpush1.msra.mxu0 0.0
          %674 = vmatprep.subr.mxu0 0.0
          %675 = vmatpush1.msra.mxu0 0.0
          %676 = vmatprep.subr.mxu0 0.0
          %677 = vmatpush1.msra.mxu0 0.0
          %678 = vmatprep.subr.mxu0 0.0
          %679 = vmatpush1.msra.mxu0 0.0
          %680 = vmatprep.subr.mxu0 0.0
          %681 = vmatpush1.msra.mxu0 0.0
          %682 = vmatprep.subr.mxu0 0.0
          %683 = vmatpush1.msra.mxu0 0.0
          %684 = vmatprep.subr.mxu0 0.0
          %685 = vmatpush1.msra.mxu0 0.0
          %686 = vmatprep.subr.mxu0 0.0
          %687 = vmatpush1.msra.mxu0 0.0
          %688 = vmatprep.subr.mxu0 0.0
          %689 = vmatpush1.msra.mxu0 0.0
          %690 = vmatprep.subr.mxu0 0.0
          %691 = vmatpush1.msra.mxu0 0.0
          %692 = vmatprep.subr.mxu0 0.0
          %693 = vmatpush1.msra.mxu0 0.0
          %694 = vmatprep.subr.mxu0 0.0
          %695 = vmatpush1.msra.mxu0 0.0
          %696 = vmatprep.subr.mxu0 0.0
          %697 = vmatpush1.msra.mxu0 0.0
          %698 = vmatprep.subr.mxu0 0.0
          %699 = vmatpush1.msra.mxu0 0.0
          %700 = vmatprep.subr.mxu0 0.0
          %701 = vmatpush1.msra.mxu0 0.0
          %702 = vmatprep.subr.mxu0 0.0
          %703 = vmatpush1.msra.mxu0 0.0
          %704 = vmatprep.subr.mxu0 0.0
          %705 = vmatpush1.msra.mxu0 0.0
          %706 = vmatprep.subr.mxu0 0.0
          %707 = vmatpush1.msra.mxu0 0.0
          %708 = vmatprep.subr.mxu0 0.0
          %709 = vmatpush1.msra.mxu0 0.0
          %710 = vmatprep.subr.mxu0 0.0
          %711 = vmatpush1.msra.mxu0 0.0
          %712 = vmatprep.subr.mxu0 0.0
          %713 = vmatpush1.msra.mxu0 0.0
          %714 = vmatprep.subr.mxu0 0.0
          %715 = vmatpush1.msra.mxu0 0.0
          %716 = vmatprep.subr.mxu0 0.0
          %717 = vmatpush1.msra.mxu0 0.0
          %718 = vmatprep.mubr.f32.mxu0 0.0
          %719 = vmatmul.mubr.f32.gmra.mrb[0].mxu0 %v343
          %v720 = vpop.f32.mrb[0].mxu0
          %v721 = vadd.f32 0.0, %v720
          %v722 = vpop.f32.mrb[0].mxu0
          %v723 = vadd.f32 0.0, %v722
          %724 = vmatprep.mubr.f32.mxu0 0.0
          %725 = vmatmul.mubr.f32.gmra.mrb[0].mxu0 %v346
          %v726 = vpop.f32.mrb[0].mxu0
          %v727 = vadd.f32 0.0, %v726
          %v728 = vpop.f32.mrb[0].mxu0
          %v729 = vadd.f32 0.0, %v728
          %730 = vmatprep.mubr.f32.mxu0 0.0
          %731 = vmatmul.mubr.f32.gmra.mrb[0].mxu0 %v349
          %v732 = vpop.f32.mrb[0].mxu0
          %v733 = vadd.f32 0.0, %v732
          %v734 = vpop.f32.mrb[0].mxu0
          %v735 = vadd.f32 0.0, %v734
          %736 = vmatprep.mubr.f32.mxu0 0.0
          %737 = vmatmul.mubr.f32.gmra.mrb[0].mxu0 %v352
          %v738 = vpop.f32.mrb[0].mxu0
          %v739 = vadd.f32 0.0, %v738
          %v740 = vpop.f32.mrb[0].mxu0
          %v741 = vadd.f32 0.0, %v740
          %742 = vdwg.mxu0
          %v743 = vmax.f32 %v434, %v632
          %v744 = vmax.f32 %v436, %v634
          %v745 = vmax.f32 %v523, %v721
          %v746 = vmax.f32 %v525, %v723
          %v747 = vmax.f32 %v440, %v638
          %v748 = vmax.f32 %v442, %v640
          %v749 = vmax.f32 %v529, %v727
          %v750 = vmax.f32 %v531, %v729
          %v751 = vmax.f32 %v446, %v644
          %v752 = vmax.f32 %v448, %v646
          %v753 = vmax.f32 %v535, %v733
          %v754 = vmax.f32 %v537, %v735
          %v755 = vmax.f32 %v452, %v650
          %v756 = vmax.f32 %v454, %v652
          %v757 = vmax.f32 %v541, %v739
          %v758 = vmax.f32 %v543, %v741
          %v759 = vld [vmem:[%s0 + $0x40] sm:$0xff]
          %v760 = vld [vmem:[%s0 + $0x48] sm:$0xff]
          %v761 = vld [vmem:[%s0 + $0x50] sm:$0xff]
          %v762 = vld [vmem:[%s0 + $0x58] sm:$0xff]
          %v763 = vld [vmem:[%s0 + $0xc0] sm:$0x1]
          %v764 = vld [vmem:[%s0 + $0xc8] sm:$0x1]
          %v765 = vld [vmem:[%s0 + $0xd0] sm:$0x1]
          %v766 = vld [vmem:[%s0 + $0xd8] sm:$0x1]
          %v768 = vsel %vm354, %v763, 0
          %v771 = vsel %vm354, %v764, 0
          %v774 = vsel %vm354, %v765, 0
          %v777 = vsel %vm354, %v766, 0
          %779 = vmatprep.subr.mxu0 %v760
          %780 = vmatpush1.msra.mxu0 %v759
          %781 = vmatprep.subr.mxu0 %v771
          %782 = vmatpush1.msra.mxu0 %v768
          %783 = vmatprep.subr.mxu0 0.0
          %784 = vmatpush1.msra.mxu0 0.0
          %785 = vmatprep.subr.mxu0 0.0
          %786 = vmatpush1.msra.mxu0 0.0
          %787 = vmatprep.subr.mxu0 0.0
          %788 = vmatpush1.msra.mxu0 0.0
          %789 = vmatprep.subr.mxu0 0.0
          %790 = vmatpush1.msra.mxu0 0.0
          %791 = vmatprep.subr.mxu0 0.0
          %792 = vmatpush1.msra.mxu0 0.0
          %793 = vmatprep.subr.mxu0 0.0
          %794 = vmatpush1.msra.mxu0 0.0
          %795 = vmatprep.subr.mxu0 0.0
          %796 = vmatpush1.msra.mxu0 0.0
          %797 = vmatprep.subr.mxu0 0.0
          %798 = vmatpush1.msra.mxu0 0.0
          %799 = vmatprep.subr.mxu0 0.0
          %800 = vmatpush1.msra.mxu0 0.0
          %801 = vmatprep.subr.mxu0 0.0
          %802 = vmatpush1.msra.mxu0 0.0
          %803 = vmatprep.subr.mxu0 0.0
          %804 = vmatpush1.msra.mxu0 0.0
          %805 = vmatprep.subr.mxu0 0.0
          %806 = vmatpush1.msra.mxu0 0.0
          %807 = vmatprep.subr.mxu0 0.0
          %808 = vmatpush1.msra.mxu0 0.0
          %809 = vmatprep.subr.mxu0 0.0
          %810 = vmatpush1.msra.mxu0 0.0
          %811 = vmatprep.subr.mxu0 0.0
          %812 = vmatpush1.msra.mxu0 0.0
          %813 = vmatprep.subr.mxu0 0.0
          %814 = vmatpush1.msra.mxu0 0.0
          %815 = vmatprep.subr.mxu0 0.0
          %816 = vmatpush1.msra.mxu0 0.0
          %817 = vmatprep.subr.mxu0 0.0
          %818 = vmatpush1.msra.mxu0 0.0
          %819 = vmatprep.subr.mxu0 0.0
          %820 = vmatpush1.msra.mxu0 0.0
          %821 = vmatprep.subr.mxu0 0.0
          %822 = vmatpush1.msra.mxu0 0.0
          %823 = vmatprep.subr.mxu0 0.0
          %824 = vmatpush1.msra.mxu0 0.0
          %825 = vmatprep.subr.mxu0 0.0
          %826 = vmatpush1.msra.mxu0 0.0
          %827 = vmatprep.subr.mxu0 0.0
          %828 = vmatpush1.msra.mxu0 0.0
          %829 = vmatprep.subr.mxu0 0.0
          %830 = vmatpush1.msra.mxu0 0.0
          %831 = vmatprep.subr.mxu0 0.0
          %832 = vmatpush1.msra.mxu0 0.0
          %833 = vmatprep.subr.mxu0 0.0
          %834 = vmatpush1.msra.mxu0 0.0
          %835 = vmatprep.subr.mxu0 0.0
          %836 = vmatpush1.msra.mxu0 0.0
          %837 = vmatprep.subr.mxu0 0.0
          %838 = vmatpush1.msra.mxu0 0.0
          %839 = vmatprep.subr.mxu0 0.0
          %840 = vmatpush1.msra.mxu0 0.0
          %841 = vmatprep.subr.mxu0 0.0
          %842 = vmatpush1.msra.mxu0 0.0
          %843 = vmatprep.mubr.f32.mxu0 0.0
          %844 = vmatmul.mubr.f32.gmra.mrb[0].mxu0 %v343
          %v845 = vpop.f32.mrb[0].mxu0
          %v846 = vadd.f32 0.0, %v845
          %v847 = vpop.f32.mrb[0].mxu0
          %v848 = vadd.f32 0.0, %v847
          %849 = vmatprep.mubr.f32.mxu0 0.0
          %850 = vmatmul.mubr.f32.gmra.mrb[0].mxu0 %v346
          %v851 = vpop.f32.mrb[0].mxu0
          %v852 = vadd.f32 0.0, %v851
          %v853 = vpop.f32.mrb[0].mxu0
          %v854 = vadd.f32 0.0, %v853
          %855 = vmatprep.mubr.f32.mxu0 0.0
          %856 = vmatmul.mubr.f32.gmra.mrb[0].mxu0 %v349
          %v857 = vpop.f32.mrb[0].mxu0
          %v858 = vadd.f32 0.0, %v857
          %v859 = vpop.f32.mrb[0].mxu0
          %v860 = vadd.f32 0.0, %v859
          %861 = vmatprep.mubr.f32.mxu0 0.0
          %862 = vmatmul.mubr.f32.gmra.mrb[0].mxu0 %v352
          %v863 = vpop.f32.mrb[0].mxu0
          %v864 = vadd.f32 0.0, %v863
          %v865 = vpop.f32.mrb[0].mxu0
          %v866 = vadd.f32 0.0, %v865
          %867 = vdwg.mxu0
          %868 = vmatprep.subr.mxu0 %v762
          %869 = vmatpush1.msra.mxu0 %v761
          %870 = vmatprep.subr.mxu0 %v777
          %871 = vmatpush1.msra.mxu0 %v774
          %872 = vmatprep.subr.mxu0 0.0
          %873 = vmatpush1.msra.mxu0 0.0
          %874 = vmatprep.subr.mxu0 0.0
          %875 = vmatpush1.msra.mxu0 0.0
          %876 = vmatprep.subr.mxu0 0.0
          %877 = vmatpush1.msra.mxu0 0.0
          %878 = vmatprep.subr.mxu0 0.0
          %879 = vmatpush1.msra.mxu0 0.0
          %880 = vmatprep.subr.mxu0 0.0
          %881 = vmatpush1.msra.mxu0 0.0
          %882 = vmatprep.subr.mxu0 0.0
          %883 = vmatpush1.msra.mxu0 0.0
          %884 = vmatprep.subr.mxu0 0.0
          %885 = vmatpush1.msra.mxu0 0.0
          %886 = vmatprep.subr.mxu0 0.0
          %887 = vmatpush1.msra.mxu0 0.0
          %888 = vmatprep.subr.mxu0 0.0
          %889 = vmatpush1.msra.mxu0 0.0
          %890 = vmatprep.subr.mxu0 0.0
          %891 = vmatpush1.msra.mxu0 0.0
          %892 = vmatprep.subr.mxu0 0.0
          %893 = vmatpush1.msra.mxu0 0.0
          %894 = vmatprep.subr.mxu0 0.0
          %895 = vmatpush1.msra.mxu0 0.0
          %896 = vmatprep.subr.mxu0 0.0
          %897 = vmatpush1.msra.mxu0 0.0
          %898 = vmatprep.subr.mxu0 0.0
          %899 = vmatpush1.msra.mxu0 0.0
          %900 = vmatprep.subr.mxu0 0.0
          %901 = vmatpush1.msra.mxu0 0.0
          %902 = vmatprep.subr.mxu0 0.0
          %903 = vmatpush1.msra.mxu0 0.0
          %904 = vmatprep.subr.mxu0 0.0
          %905 = vmatpush1.msra.mxu0 0.0
          %906 = vmatprep.subr.mxu0 0.0
          %907 = vmatpush1.msra.mxu0 0.0
          %908 = vmatprep.subr.mxu0 0.0
          %909 = vmatpush1.msra.mxu0 0.0
          %910 = vmatprep.subr.mxu0 0.0
          %911 = vmatpush1.msra.mxu0 0.0
          %912 = vmatprep.subr.mxu0 0.0
          %913 = vmatpush1.msra.mxu0 0.0
          %914 = vmatprep.subr.mxu0 0.0
          %915 = vmatpush1.msra.mxu0 0.0
          %916 = vmatprep.subr.mxu0 0.0
          %917 = vmatpush1.msra.mxu0 0.0
          %918 = vmatprep.subr.mxu0 0.0
          %919 = vmatpush1.msra.mxu0 0.0
          %920 = vmatprep.subr.mxu0 0.0
          %921 = vmatpush1.msra.mxu0 0.0
          %922 = vmatprep.subr.mxu0 0.0
          %923 = vmatpush1.msra.mxu0 0.0
          %924 = vmatprep.subr.mxu0 0.0
          %925 = vmatpush1.msra.mxu0 0.0
          %926 = vmatprep.subr.mxu0 0.0
          %927 = vmatpush1.msra.mxu0 0.0
          %928 = vmatprep.subr.mxu0 0.0
          %929 = vmatpush1.msra.mxu0 0.0
          %930 = vmatprep.subr.mxu0 0.0
          %931 = vmatpush1.msra.mxu0 0.0
          %932 = vmatprep.mubr.f32.mxu0 0.0
          %933 = vmatmul.mubr.f32.gmra.mrb[0].mxu0 %v343
          %v934 = vpop.f32.mrb[0].mxu0
          %v935 = vadd.f32 0.0, %v934
          %v936 = vpop.f32.mrb[0].mxu0
          %v937 = vadd.f32 0.0, %v936
          %938 = vmatprep.mubr.f32.mxu0 0.0
          %939 = vmatmul.mubr.f32.gmra.mrb[0].mxu0 %v346
          %v940 = vpop.f32.mrb[0].mxu0
          %v941 = vadd.f32 0.0, %v940
          %v942 = vpop.f32.mrb[0].mxu0
          %v943 = vadd.f32 0.0, %v942
          %944 = vmatprep.mubr.f32.mxu0 0.0
          %945 = vmatmul.mubr.f32.gmra.mrb[0].mxu0 %v349
          %v946 = vpop.f32.mrb[0].mxu0
          %v947 = vadd.f32 0.0, %v946
          %v948 = vpop.f32.mrb[0].mxu0
          %v949 = vadd.f32 0.0, %v948
          %950 = vmatprep.mubr.f32.mxu0 0.0
          %951 = vmatmul.mubr.f32.gmra.mrb[0].mxu0 %v352
          %v952 = vpop.f32.mrb[0].mxu0
          %v953 = vadd.f32 0.0, %v952
          %v954 = vpop.f32.mrb[0].mxu0
          %v955 = vadd.f32 0.0, %v954
          %956 = vdwg.mxu0
          %v957 = vmax.f32 %v743, %v846
          %v958 = vmax.f32 %v744, %v848
          %v959 = vmax.f32 %v745, %v935
          %v960 = vmax.f32 %v746, %v937
          %v961 = vmax.f32 %v747, %v852
          %v962 = vmax.f32 %v748, %v854
          %v963 = vmax.f32 %v749, %v941
          %v964 = vmax.f32 %v750, %v943
          %v965 = vmax.f32 %v751, %v858
          %v966 = vmax.f32 %v752, %v860
          %v967 = vmax.f32 %v753, %v947
          %v968 = vmax.f32 %v754, %v949
          %v969 = vmax.f32 %v755, %v864
          %v970 = vmax.f32 %v756, %v866
          %v971 = vmax.f32 %v757, %v953
          %v972 = vmax.f32 %v758, %v955
          %v973 = vld [vmem:[%s0 + $0x60] sm:$0xff]
          %v974 = vld [vmem:[%s0 + $0x68] sm:$0xff]
          %v975 = vld [vmem:[%s0 + $0x70] sm:$0xff]
          %v976 = vld [vmem:[%s0 + $0x78] sm:$0xff]
          %v977 = vld [vmem:[%s0 + $0xe0] sm:$0x1]
          %v978 = vld [vmem:[%s0 + $0xe8] sm:$0x1]
          %v979 = vld [vmem:[%s0 + $0xf0] sm:$0x1]
          %v980 = vld [vmem:[%s0 + $0xf8] sm:$0x1]
          %v982 = vsel %vm354, %v977, 0
          %v985 = vsel %vm354, %v978, 0
          %v988 = vsel %vm354, %v979, 0
          %v991 = vsel %vm354, %v980, 0
          %993 = vmatprep.subr.mxu0 %v974
          %994 = vmatpush1.msra.mxu0 %v973
          %995 = vmatprep.subr.mxu0 %v985
          %996 = vmatpush1.msra.mxu0 %v982
          %997 = vmatprep.subr.mxu0 0.0
          %998 = vmatpush1.msra.mxu0 0.0
          %999 = vmatprep.subr.mxu0 0.0
          %1000 = vmatpush1.msra.mxu0 0.0
          %1001 = vmatprep.subr.mxu0 0.0
          %1002 = vmatpush1.msra.mxu0 0.0
          %1003 = vmatprep.subr.mxu0 0.0
          %1004 = vmatpush1.msra.mxu0 0.0
          %1005 = vmatprep.subr.mxu0 0.0
          %1006 = vmatpush1.msra.mxu0 0.0
          %1007 = vmatprep.subr.mxu0 0.0
          %1008 = vmatpush1.msra.mxu0 0.0
          %1009 = vmatprep.subr.mxu0 0.0
          %1010 = vmatpush1.msra.mxu0 0.0
          %1011 = vmatprep.subr.mxu0 0.0
          %1012 = vmatpush1.msra.mxu0 0.0
          %1013 = vmatprep.subr.mxu0 0.0
          %1014 = vmatpush1.msra.mxu0 0.0
          %1015 = vmatprep.subr.mxu0 0.0
          %1016 = vmatpush1.msra.mxu0 0.0
          %1017 = vmatprep.subr.mxu0 0.0
          %1018 = vmatpush1.msra.mxu0 0.0
          %1019 = vmatprep.subr.mxu0 0.0
          %1020 = vmatpush1.msra.mxu0 0.0
          %1021 = vmatprep.subr.mxu0 0.0
          %1022 = vmatpush1.msra.mxu0 0.0
          %1023 = vmatprep.subr.mxu0 0.0
          %1024 = vmatpush1.msra.mxu0 0.0
          %1025 = vmatprep.subr.mxu0 0.0
          %1026 = vmatpush1.msra.mxu0 0.0
          %1027 = vmatprep.subr.mxu0 0.0
          %1028 = vmatpush1.msra.mxu0 0.0
          %1029 = vmatprep.subr.mxu0 0.0
          %1030 = vmatpush1.msra.mxu0 0.0
          %1031 = vmatprep.subr.mxu0 0.0
          %1032 = vmatpush1.msra.mxu0 0.0
          %1033 = vmatprep.subr.mxu0 0.0
          %1034 = vmatpush1.msra.mxu0 0.0
          %1035 = vmatprep.subr.mxu0 0.0
          %1036 = vmatpush1.msra.mxu0 0.0
          %1037 = vmatprep.subr.mxu0 0.0
          %1038 = vmatpush1.msra.mxu0 0.0
          %1039 = vmatprep.subr.mxu0 0.0
          %1040 = vmatpush1.msra.mxu0 0.0
          %1041 = vmatprep.subr.mxu0 0.0
          %1042 = vmatpush1.msra.mxu0 0.0
          %1043 = vmatprep.subr.mxu0 0.0
          %1044 = vmatpush1.msra.mxu0 0.0
          %1045 = vmatprep.subr.mxu0 0.0
          %1046 = vmatpush1.msra.mxu0 0.0
          %1047 = vmatprep.subr.mxu0 0.0
          %1048 = vmatpush1.msra.mxu0 0.0
          %1049 = vmatprep.subr.mxu0 0.0
          %1050 = vmatpush1.msra.mxu0 0.0
          %1051 = vmatprep.subr.mxu0 0.0
          %1052 = vmatpush1.msra.mxu0 0.0
          %1053 = vmatprep.subr.mxu0 0.0
          %1054 = vmatpush1.msra.mxu0 0.0
          %1055 = vmatprep.subr.mxu0 0.0
          %1056 = vmatpush1.msra.mxu0 0.0
          %1057 = vmatprep.mubr.f32.mxu0 0.0
          %1058 = vmatmul.mubr.f32.gmra.mrb[0].mxu0 %v343
          %v1059 = vpop.f32.mrb[0].mxu0
          %v1060 = vadd.f32 0.0, %v1059
          %v1061 = vpop.f32.mrb[0].mxu0
          %v1062 = vadd.f32 0.0, %v1061
          %1063 = vmatprep.mubr.f32.mxu0 0.0
          %1064 = vmatmul.mubr.f32.gmra.mrb[0].mxu0 %v346
          %v1065 = vpop.f32.mrb[0].mxu0
          %v1066 = vadd.f32 0.0, %v1065
          %v1067 = vpop.f32.mrb[0].mxu0
          %v1068 = vadd.f32 0.0, %v1067
          %1069 = vmatprep.mubr.f32.mxu0 0.0
          %1070 = vmatmul.mubr.f32.gmra.mrb[0].mxu0 %v349
          %v1071 = vpop.f32.mrb[0].mxu0
          %v1072 = vadd.f32 0.0, %v1071
          %v1073 = vpop.f32.mrb[0].mxu0
          %v1074 = vadd.f32 0.0, %v1073
          %1075 = vmatprep.mubr.f32.mxu0 0.0
          %1076 = vmatmul.mubr.f32.gmra.mrb[0].mxu0 %v352
          %v1077 = vpop.f32.mrb[0].mxu0
          %v1078 = vadd.f32 0.0, %v1077
          %v1079 = vpop.f32.mrb[0].mxu0
          %v1080 = vadd.f32 0.0, %v1079
          %1081 = vdwg.mxu0
          %1082 = vmatprep.subr.mxu0 %v976
          %1083 = vmatpush1.msra.mxu0 %v975
          %1084 = vmatprep.subr.mxu0 %v991
          %1085 = vmatpush1.msra.mxu0 %v988
          %1086 = vmatprep.subr.mxu0 0.0
          %1087 = vmatpush1.msra.mxu0 0.0
          %1088 = vmatprep.subr.mxu0 0.0
          %1089 = vmatpush1.msra.mxu0 0.0
          %1090 = vmatprep.subr.mxu0 0.0
          %1091 = vmatpush1.msra.mxu0 0.0
          %1092 = vmatprep.subr.mxu0 0.0
          %1093 = vmatpush1.msra.mxu0 0.0
          %1094 = vmatprep.subr.mxu0 0.0
          %1095 = vmatpush1.msra.mxu0 0.0
          %1096 = vmatprep.subr.mxu0 0.0
          %1097 = vmatpush1.msra.mxu0 0.0
          %1098 = vmatprep.subr.mxu0 0.0
          %1099 = vmatpush1.msra.mxu0 0.0
          %1100 = vmatprep.subr.mxu0 0.0
          %1101 = vmatpush1.msra.mxu0 0.0
          %1102 = vmatprep.subr.mxu0 0.0
          %1103 = vmatpush1.msra.mxu0 0.0
          %1104 = vmatprep.subr.mxu0 0.0
          %1105 = vmatpush1.msra.mxu0 0.0
          %1106 = vmatprep.subr.mxu0 0.0
          %1107 = vmatpush1.msra.mxu0 0.0
          %1108 = vmatprep.subr.mxu0 0.0
          %1109 = vmatpush1.msra.mxu0 0.0
          %1110 = vmatprep.subr.mxu0 0.0
          %1111 = vmatpush1.msra.mxu0 0.0
          %1112 = vmatprep.subr.mxu0 0.0
          %1113 = vmatpush1.msra.mxu0 0.0
          %1114 = vmatprep.subr.mxu0 0.0
          %1115 = vmatpush1.msra.mxu0 0.0
          %1116 = vmatprep.subr.mxu0 0.0
          %1117 = vmatpush1.msra.mxu0 0.0
          %1118 = vmatprep.subr.mxu0 0.0
          %1119 = vmatpush1.msra.mxu0 0.0
          %1120 = vmatprep.subr.mxu0 0.0
          %1121 = vmatpush1.msra.mxu0 0.0
          %1122 = vmatprep.subr.mxu0 0.0
          %1123 = vmatpush1.msra.mxu0 0.0
          %1124 = vmatprep.subr.mxu0 0.0
          %1125 = vmatpush1.msra.mxu0 0.0
          %1126 = vmatprep.subr.mxu0 0.0
          %1127 = vmatpush1.msra.mxu0 0.0
          %1128 = vmatprep.subr.mxu0 0.0
          %1129 = vmatpush1.msra.mxu0 0.0
          %1130 = vmatprep.subr.mxu0 0.0
          %1131 = vmatpush1.msra.mxu0 0.0
          %1132 = vmatprep.subr.mxu0 0.0
          %1133 = vmatpush1.msra.mxu0 0.0
          %1134 = vmatprep.subr.mxu0 0.0
          %1135 = vmatpush1.msra.mxu0 0.0
          %1136 = vmatprep.subr.mxu0 0.0
          %1137 = vmatpush1.msra.mxu0 0.0
          %1138 = vmatprep.subr.mxu0 0.0
          %1139 = vmatpush1.msra.mxu0 0.0
          %1140 = vmatprep.subr.mxu0 0.0
          %1141 = vmatpush1.msra.mxu0 0.0
          %1142 = vmatprep.subr.mxu0 0.0
          %1143 = vmatpush1.msra.mxu0 0.0
          %1144 = vmatprep.subr.mxu0 0.0
          %1145 = vmatpush1.msra.mxu0 0.0
          %1146 = vmatprep.mubr.f32.mxu0 0.0
          %1147 = vmatmul.mubr.f32.gmra.mrb[0].mxu0 %v343
          %v1148 = vpop.f32.mrb[0].mxu0
          %v1149 = vadd.f32 0.0, %v1148
          %v1150 = vpop.f32.mrb[0].mxu0
          %v1151 = vadd.f32 0.0, %v1150
          %1152 = vmatprep.mubr.f32.mxu0 0.0
          %1153 = vmatmul.mubr.f32.gmra.mrb[0].mxu0 %v346
          %v1154 = vpop.f32.mrb[0].mxu0
          %v1155 = vadd.f32 0.0, %v1154
          %v1156 = vpop.f32.mrb[0].mxu0
          %v1157 = vadd.f32 0.0, %v1156
          %1158 = vmatprep.mubr.f32.mxu0 0.0
          %1159 = vmatmul.mubr.f32.gmra.mrb[0].mxu0 %v349
          %v1160 = vpop.f32.mrb[0].mxu0
          %v1161 = vadd.f32 0.0, %v1160
          %v1162 = vpop.f32.mrb[0].mxu0
          %v1163 = vadd.f32 0.0, %v1162
          %1164 = vmatprep.mubr.f32.mxu0 0.0
          %1165 = vmatmul.mubr.f32.gmra.mrb[0].mxu0 %v352
          %v1166 = vpop.f32.mrb[0].mxu0
          %v1167 = vadd.f32 0.0, %v1166
          %v1168 = vpop.f32.mrb[0].mxu0
          %v1169 = vadd.f32 0.0, %v1168
          %1170 = vdwg.mxu0
          %v1171 = vmax.f32 %v957, %v1060
          %v1172 = vmax.f32 %v958, %v1062
          %v1173 = vmax.f32 %v959, %v1149
          %v1174 = vmax.f32 %v960, %v1151
          %v1175 = vmax.f32 %v961, %v1066
          %v1176 = vmax.f32 %v962, %v1068
          %v1177 = vmax.f32 %v963, %v1155
          %v1178 = vmax.f32 %v964, %v1157
          %v1179 = vmax.f32 %v965, %v1072
          %v1180 = vmax.f32 %v966, %v1074
          %v1181 = vmax.f32 %v967, %v1161
          %v1182 = vmax.f32 %v968, %v1163
          %v1183 = vmax.f32 %v969, %v1078
          %v1184 = vmax.f32 %v970, %v1080
          %v1185 = vmax.f32 %v971, %v1167
          %v1186 = vmax.f32 %v972, %v1169
          %v1187 = vld [vmem:[%s2] sm:$0xff]
          %v1188 = vld [vmem:[%s2 + $0x8] sm:$0xff]
          %v1189 = vld [vmem:[%s2 + $0x10] sm:$0xff]
          %v1190 = vld [vmem:[%s2 + $0x18] sm:$0xff]
          %1192 = vset.pattern.permute.xlu0 0
          %1193 = vperm.xlu0 %1192, %v1187
          %v1194 = vpop.permute.xlu0 %1193
          %1197 = vset.pattern.permute.xlu0 0
          %1198 = vperm.xlu0 %1197, %v1188
          %v1199 = vpop.permute.xlu0 %1198
          %1202 = vset.pattern.permute.xlu0 0
          %1203 = vperm.xlu0 %1202, %v1189
          %v1204 = vpop.permute.xlu0 %1203
          %1207 = vset.pattern.permute.xlu0 0
          %1208 = vperm.xlu0 %1207, %v1190
          %v1209 = vpop.permute.xlu0 %1208
          %v1211 = vadd.f32 %v1171, %v1194
          %v1212 = vadd.f32 %v1172, %v1194
          %v1213 = vadd.f32 %v1173, %v1194
          %v1214 = vadd.f32 %v1174, %v1194
          %v1215 = vadd.f32 %v1175, %v1199
          %v1216 = vadd.f32 %v1176, %v1199
          %v1217 = vadd.f32 %v1177, %v1199
          %v1218 = vadd.f32 %v1178, %v1199
          %v1219 = vadd.f32 %v1179, %v1204
          %v1220 = vadd.f32 %v1180, %v1204
          %v1221 = vadd.f32 %v1181, %v1204
          %v1222 = vadd.f32 %v1182, %v1204
          %v1223 = vadd.f32 %v1183, %v1209
          %v1224 = vadd.f32 %v1184, %v1209
          %v1225 = vadd.f32 %v1185, %v1209
          %v1226 = vadd.f32 %v1186, %v1209
          %v1227 = vmax.f32 %v1211, 0.0
          %v1228 = vmax.f32 %v1212, 0.0
          %v1229 = vmax.f32 %v1213, 0.0
          %v1230 = vmax.f32 %v1214, 0.0
          %v1231 = vmax.f32 %v1215, 0.0
          %v1232 = vmax.f32 %v1216, 0.0
          %v1233 = vmax.f32 %v1217, 0.0
          %v1234 = vmax.f32 %v1218, 0.0
          %v1235 = vmax.f32 %v1219, 0.0
          %v1236 = vmax.f32 %v1220, 0.0
          %v1237 = vmax.f32 %v1221, 0.0
          %v1238 = vmax.f32 %v1222, 0.0
          %v1239 = vmax.f32 %v1223, 0.0
          %v1240 = vmax.f32 %v1224, 0.0
          %v1241 = vmax.f32 %v1225, 0.0
          %v1242 = vmax.f32 %v1226, 0.0
          %1243 = vst [vmem:[#allocation2] sm:$0xff] %v1227
          %1244 = vst [vmem:[#allocation2 + $0x8] sm:$0xff] %v1228
          %1245 = vst [vmem:[#allocation2 + $0x10] sm:$0xff] %v1231
          %1246 = vst [vmem:[#allocation2 + $0x18] sm:$0xff] %v1232
          %1247 = vst [vmem:[#allocation2 + $0x20] sm:$0xff] %v1235
          %1248 = vst [vmem:[#allocation2 + $0x28] sm:$0xff] %v1236
          %1249 = vst [vmem:[#allocation2 + $0x30] sm:$0xff] %v1239
          %1250 = vst [vmem:[#allocation2 + $0x38] sm:$0xff] %v1240
          %1251 = vst [vmem:[#allocation2 + $0x40] sm:$0xff] %v1229
          %1252 = vst [vmem:[#allocation2 + $0x48] sm:$0xff] %v1230
          %1253 = vst [vmem:[#allocation2 + $0x50] sm:$0xff] %v1233
          %1254 = vst [vmem:[#allocation2 + $0x58] sm:$0xff] %v1234
          %1255 = vst [vmem:[#allocation2 + $0x60] sm:$0xff] %v1237
          %1256 = vst [vmem:[#allocation2 + $0x68] sm:$0xff] %v1238
          %1257 = vst [vmem:[#allocation2 + $0x70] sm:$0xff] %v1241
          %1258 = vst [vmem:[#allocation2 + $0x78] sm:$0xff] %v1242
          %1259 = vst [vmem:[#allocation3] sm:$0x3] 0.0
        $region60: #{net_forward.1} parent=55 // pred_fallthru
          _
        %s1260 = smul.u32 %s21, 8
        %s1261 = sshra.s32 %s1260, 3
        %s1262 = sand.u32 %s1260, 7
        %s1263 = smul.u32 %s1261, 2
        %s1264 = smul.addr %s1263, 8
        %s1265 = scalar_lea.vmem [#allocation2], %s1264
        %v1266 = vld [vmem:[%s1265] sm:$0xff]
        %v1267 = vld [vmem:[%s1265 + $0x8] sm:$0xff]
        %v1268 = vpack.c.bf16 %v1266, %v1266
        %v1269 = vpack.c.bf16 %v1267, %v1267
        %v1270 = vld [vmem:[%s322] sm:$0xf]
        %v1271 = vld [vmem:[%s322 + $0x4] sm:$0xf]
        %v1272 = vld [vmem:[%s322 + $0x8] sm:$0xf]
        %v1273 = vld [vmem:[%s322 + $0xc] sm:$0xf]
        %v1274 = vld [vmem:[%s322 + $0x10] sm:$0xf]
        %v1275 = vld [vmem:[%s322 + $0x14] sm:$0xf]
        %v1276 = vld [vmem:[%s322 + $0x18] sm:$0xf]
        %v1277 = vld [vmem:[%s322 + $0x1c] sm:$0xf]
        %v1278 = vld [vmem:[%s322 + $0x20] sm:$0xf]
        %v1279 = vld [vmem:[%s322 + $0x24] sm:$0xf]
        %v1280 = vld [vmem:[%s322 + $0x28] sm:$0xf]
        %v1281 = vld [vmem:[%s322 + $0x2c] sm:$0xf]
        %v1282 = vld [vmem:[%s322 + $0x30] sm:$0xf]
        %v1283 = vld [vmem:[%s322 + $0x34] sm:$0xf]
        %v1284 = vld [vmem:[%s322 + $0x38] sm:$0xf]
        %v1285 = vld [vmem:[%s322 + $0x3c] sm:$0xf]
        %v1286 = vld [vmem:[%s322 + $0x40] sm:$0xf]
        %v1287 = vld [vmem:[%s322 + $0x44] sm:$0xf]
        %v1288 = vld [vmem:[%s322 + $0x48] sm:$0xf]
        %v1289 = vld [vmem:[%s322 + $0x4c] sm:$0xf]
        %v1290 = vld [vmem:[%s322 + $0x50] sm:$0xf]
        %v1291 = vld [vmem:[%s322 + $0x54] sm:$0xf]
        %s1292 = scalar_lea.vmem %s322, 88
        %v1293 = vld [vmem:[%s1292] sm:$0xf]
        %v1294 = vld [vmem:[%s1292 + $0x4] sm:$0xf]
        %v1295 = vld [vmem:[%s1292 + $0x8] sm:$0xf]
        %v1296 = vld [vmem:[%s1292 + $0xc] sm:$0xf]
        %v1297 = vld [vmem:[%s1292 + $0x10] sm:$0xf]
        %v1298 = vld [vmem:[%s1292 + $0x14] sm:$0xf]
        %v1299 = vld [vmem:[%s1292 + $0x18] sm:$0xf]
        %v1300 = vld [vmem:[%s1292 + $0x1c] sm:$0xf]
        %v1301 = vld [vmem:[%s1292 + $0x20] sm:$0xf]
        %v1302 = vld [vmem:[%s1292 + $0x24] sm:$0xf]
        %v1303 = vld [vmem:[%s1292 + $0x28] sm:$0xf]
        %v1304 = vld [vmem:[%s1292 + $0x2c] sm:$0xf]
        %v1305 = vld [vmem:[%s1292 + $0x30] sm:$0xf]
        %v1306 = vld [vmem:[%s1292 + $0x34] sm:$0xf]
        %v1307 = vld [vmem:[%s1292 + $0x38] sm:$0xf]
        %v1308 = vld [vmem:[%s1292 + $0x3c] sm:$0xf]
        %v1309 = vld [vmem:[%s1292 + $0x40] sm:$0xf]
        %v1310 = vld [vmem:[%s1292 + $0x44] sm:$0xf]
        %v1311 = vld [vmem:[%s1292 + $0x48] sm:$0xf]
        %v1312 = vld [vmem:[%s1292 + $0x4c] sm:$0xf]
        %v1313 = vld [vmem:[%s1292 + $0x50] sm:$0xf]
        %v1314 = vld [vmem:[%s1292 + $0x54] sm:$0xf]
        %v1316 = vshrl.u32 %v1268, 16
        %v1319 = vshrl.u32 %v1269, 16
        %v1344 = vunpack.c.l.b16 %v1293
        %v1345 = vunpack.c.l.b16 %v1294
        %v1346 = vunpack.c.l.b16 %v1295
        %v1347 = vunpack.c.l.b16 %v1296
        %v1348 = vunpack.c.l.b16 %v1297
        %v1349 = vunpack.c.l.b16 %v1298
        %v1350 = vunpack.c.l.b16 %v1299
        %v1351 = vunpack.c.l.b16 %v1300
        %v1352 = vunpack.c.l.b16 %v1301
        %v1353 = vunpack.c.l.b16 %v1302
        %v1354 = vunpack.c.l.b16 %v1303
        %v1355 = vunpack.c.l.b16 %v1304
        %v1356 = vunpack.c.l.b16 %v1305
        %v1357 = vunpack.c.l.b16 %v1306
        %v1358 = vunpack.c.l.b16 %v1307
        %v1359 = vunpack.c.l.b16 %v1308
        %v1360 = vunpack.c.l.b16 %v1309
        %v1361 = vunpack.c.l.b16 %v1310
        %v1362 = vunpack.c.l.b16 %v1311
        %v1363 = vunpack.c.l.b16 %v1312
        %v1364 = vunpack.c.l.b16 %v1313
        %v1365 = vunpack.c.l.b16 %v1314
        %v1366 = vpack.c.b16 %v1345, %v1344
        %v1367 = vpack.c.b16 %v1347, %v1346
        %v1368 = vpack.c.b16 %v1349, %v1348
        %v1369 = vpack.c.b16 %v1351, %v1350
        %v1370 = vpack.c.b16 %v1353, %v1352
        %v1371 = vpack.c.b16 %v1355, %v1354
        %v1372 = vpack.c.b16 %v1357, %v1356
        %v1373 = vpack.c.b16 %v1359, %v1358
        %v1374 = vpack.c.b16 %v1361, %v1360
        %v1375 = vpack.c.b16 %v1363, %v1362
        %v1376 = vpack.c.b16 %v1365, %v1364
        %vm1388 = vcmask 392192
        %v1390 = vsel %vm1388, %v1319, 0
        %1392 = vmatprep.subr.bf16.mxu0 0
        %1393 = vmatpush1.bf16.msra.mxu0 %v1366
        %1394 = vmatprep.subr.bf16.mxu0 0
        %1395 = vmatpush1.bf16.msra.mxu0 %v1367
        %1396 = vmatprep.subr.bf16.mxu0 0
        %1397 = vmatpush1.bf16.msra.mxu0 %v1368
        %1398 = vmatprep.subr.bf16.mxu0 0
        %1399 = vmatpush1.bf16.msra.mxu0 %v1369
        %1400 = vmatprep.subr.bf16.mxu0 0
        %1401 = vmatpush1.bf16.msra.mxu0 %v1370
        %1402 = vmatprep.subr.bf16.mxu0 0
        %1403 = vmatpush1.bf16.msra.mxu0 %v1371
        %1404 = vmatprep.subr.bf16.mxu0 0
        %1405 = vmatpush1.bf16.msra.mxu0 %v1372
        %1406 = vmatprep.subr.bf16.mxu0 0
        %1407 = vmatpush1.bf16.msra.mxu0 %v1373
        %1408 = vmatprep.subr.bf16.mxu0 0
        %1409 = vmatpush1.bf16.msra.mxu0 %v1374
        %1410 = vmatprep.subr.bf16.mxu0 0
        %1411 = vmatpush1.bf16.msra.mxu0 %v1375
        %1412 = vmatprep.subr.bf16.mxu0 0
        %1413 = vmatpush1.bf16.msra.mxu0 %v1376
        %1414 = vmatprep.subr.bf16.mxu0 0
        %1415 = vmatpush1.bf16.msra.mxu0 0
        %1416 = vmatprep.subr.bf16.mxu0 0
        %1417 = vmatpush1.bf16.msra.mxu0 0
        %1418 = vmatprep.subr.bf16.mxu0 0
        %1419 = vmatpush1.bf16.msra.mxu0 0
        %1420 = vmatprep.subr.bf16.mxu0 0
        %1421 = vmatpush1.bf16.msra.mxu0 0
        %1422 = vmatprep.subr.bf16.mxu0 0
        %1423 = vmatpush1.bf16.msra.mxu0 0
        %1424 = vmatprep.mubr.bf16.mxu0 %v1390
        %1425 = vmatmul.mubr.bf16.gmra.mrb[0].mxu0 %v1316
        %v1426 = vpop.f32.mrb[0].mxu0
        %v1427 = vadd.f32 0.0, %v1426
        %v1428 = vpop.f32.mrb[0].mxu0
        %v1429 = vpop.f32.mrb[0].mxu0
        %v1430 = vpop.f32.mrb[0].mxu0
        %1431 = vdwg.mxu0
        %v1454 = vunpack.c.l.b16 %v1270
        %v1455 = vunpack.c.l.b16 %v1271
        %v1456 = vunpack.c.l.b16 %v1272
        %v1457 = vunpack.c.l.b16 %v1273
        %v1458 = vunpack.c.l.b16 %v1274
        %v1459 = vunpack.c.l.b16 %v1275
        %v1460 = vunpack.c.l.b16 %v1276
        %v1461 = vunpack.c.l.b16 %v1277
        %v1462 = vunpack.c.l.b16 %v1278
        %v1463 = vunpack.c.l.b16 %v1279
        %v1464 = vunpack.c.l.b16 %v1280
        %v1465 = vunpack.c.l.b16 %v1281
        %v1466 = vunpack.c.l.b16 %v1282
        %v1467 = vunpack.c.l.b16 %v1283
        %v1468 = vunpack.c.l.b16 %v1284
        %v1469 = vunpack.c.l.b16 %v1285
        %v1470 = vunpack.c.l.b16 %v1286
        %v1471 = vunpack.c.l.b16 %v1287
        %v1472 = vunpack.c.l.b16 %v1288
        %v1473 = vunpack.c.l.b16 %v1289
        %v1474 = vunpack.c.l.b16 %v1290
        %v1475 = vunpack.c.l.b16 %v1291
        %v1476 = vpack.c.b16 %v1455, %v1454
        %v1477 = vpack.c.b16 %v1457, %v1456
        %v1478 = vpack.c.b16 %v1459, %v1458
        %v1479 = vpack.c.b16 %v1461, %v1460
        %v1480 = vpack.c.b16 %v1463, %v1462
        %v1481 = vpack.c.b16 %v1465, %v1464
        %v1482 = vpack.c.b16 %v1467, %v1466
        %v1483 = vpack.c.b16 %v1469, %v1468
        %v1484 = vpack.c.b16 %v1471, %v1470
        %v1485 = vpack.c.b16 %v1473, %v1472
        %v1486 = vpack.c.b16 %v1475, %v1474
        %v1498 = vsel %vm1388, %v1269, 0
        %1500 = vmatprep.subr.bf16.mxu0 0
        %1501 = vmatpush1.bf16.msra.mxu0 %v1476
        %1502 = vmatprep.subr.bf16.mxu0 0
        %1503 = vmatpush1.bf16.msra.mxu0 %v1477
        %1504 = vmatprep.subr.bf16.mxu0 0
        %1505 = vmatpush1.bf16.msra.mxu0 %v1478
        %1506 = vmatprep.subr.bf16.mxu0 0
        %1507 = vmatpush1.bf16.msra.mxu0 %v1479
        %1508 = vmatprep.subr.bf16.mxu0 0
        %1509 = vmatpush1.bf16.msra.mxu0 %v1480
        %1510 = vmatprep.subr.bf16.mxu0 0
        %1511 = vmatpush1.bf16.msra.mxu0 %v1481
        %1512 = vmatprep.subr.bf16.mxu0 0
        %1513 = vmatpush1.bf16.msra.mxu0 %v1482
        %1514 = vmatprep.subr.bf16.mxu0 0
        %1515 = vmatpush1.bf16.msra.mxu0 %v1483
        %1516 = vmatprep.subr.bf16.mxu0 0
        %1517 = vmatpush1.bf16.msra.mxu0 %v1484
        %1518 = vmatprep.subr.bf16.mxu0 0
        %1519 = vmatpush1.bf16.msra.mxu0 %v1485
        %1520 = vmatprep.subr.bf16.mxu0 0
        %1521 = vmatpush1.bf16.msra.mxu0 %v1486
        %1522 = vmatprep.subr.bf16.mxu0 0
        %1523 = vmatpush1.bf16.msra.mxu0 0
        %1524 = vmatprep.subr.bf16.mxu0 0
        %1525 = vmatpush1.bf16.msra.mxu0 0
        %1526 = vmatprep.subr.bf16.mxu0 0
        %1527 = vmatpush1.bf16.msra.mxu0 0
        %1528 = vmatprep.subr.bf16.mxu0 0
        %1529 = vmatpush1.bf16.msra.mxu0 0
        %1530 = vmatprep.subr.bf16.mxu0 0
        %1531 = vmatpush1.bf16.msra.mxu0 0
        %1532 = vmatprep.mubr.bf16.mxu0 %v1498
        %1533 = vmatmul.mubr.bf16.gmra.mrb[0].mxu0 %v1268
        %v1534 = vpop.f32.mrb[0].mxu0
        %v1535 = vadd.f32 %v1427, %v1534
        %v1536 = vpop.f32.mrb[0].mxu0
        %v1537 = vpop.f32.mrb[0].mxu0
        %v1538 = vpop.f32.mrb[0].mxu0
        %1539 = vdwg.mxu0
        %s1540 = scalar_lea.vmem %s322, 176
        %v1541 = vld [vmem:[%s1540] sm:$0xf]
        %v1542 = vld [vmem:[%s1540 + $0x4] sm:$0xf]
        %v1543 = vld [vmem:[%s1540 + $0x8] sm:$0xf]
        %v1544 = vld [vmem:[%s1540 + $0xc] sm:$0xf]
        %v1545 = vld [vmem:[%s1540 + $0x10] sm:$0xf]
        %v1546 = vld [vmem:[%s1540 + $0x14] sm:$0xf]
        %v1547 = vld [vmem:[%s1540 + $0x18] sm:$0xf]
        %v1548 = vld [vmem:[%s1540 + $0x1c] sm:$0xf]
        %v1549 = vld [vmem:[%s1540 + $0x20] sm:$0xf]
        %v1550 = vld [vmem:[%s1540 + $0x24] sm:$0xf]
        %v1551 = vld [vmem:[%s1540 + $0x28] sm:$0xf]
        %v1552 = vld [vmem:[%s1540 + $0x2c] sm:$0xf]
        %v1553 = vld [vmem:[%s1540 + $0x30] sm:$0xf]
        %v1554 = vld [vmem:[%s1540 + $0x34] sm:$0xf]
        %v1555 = vld [vmem:[%s1540 + $0x38] sm:$0xf]
        %v1556 = vld [vmem:[%s1540 + $0x3c] sm:$0xf]
        %v1557 = vld [vmem:[%s1540 + $0x40] sm:$0xf]
        %v1558 = vld [vmem:[%s1540 + $0x44] sm:$0xf]
        %v1559 = vld [vmem:[%s1540 + $0x48] sm:$0xf]
        %v1560 = vld [vmem:[%s1540 + $0x4c] sm:$0xf]
        %v1561 = vld [vmem:[%s1540 + $0x50] sm:$0xf]
        %v1562 = vld [vmem:[%s1540 + $0x54] sm:$0xf]
        %v1565 = vrot.slane %v1268, 1
        %v1566 = vrot.slane %v1269, 1
        %v1590 = vunpack.c.l.b16 %v1541
        %v1591 = vunpack.c.l.b16 %v1542
        %v1592 = vunpack.c.l.b16 %v1543
        %v1593 = vunpack.c.l.b16 %v1544
        %v1594 = vunpack.c.l.b16 %v1545
        %v1595 = vunpack.c.l.b16 %v1546
        %v1596 = vunpack.c.l.b16 %v1547
        %v1597 = vunpack.c.l.b16 %v1548
        %v1598 = vunpack.c.l.b16 %v1549
        %v1599 = vunpack.c.l.b16 %v1550
        %v1600 = vunpack.c.l.b16 %v1551
        %v1601 = vunpack.c.l.b16 %v1552
        %v1602 = vunpack.c.l.b16 %v1553
        %v1603 = vunpack.c.l.b16 %v1554
        %v1604 = vunpack.c.l.b16 %v1555
        %v1605 = vunpack.c.l.b16 %v1556
        %v1606 = vunpack.c.l.b16 %v1557
        %v1607 = vunpack.c.l.b16 %v1558
        %v1608 = vunpack.c.l.b16 %v1559
        %v1609 = vunpack.c.l.b16 %v1560
        %v1610 = vunpack.c.l.b16 %v1561
        %v1611 = vunpack.c.l.b16 %v1562
        %v1612 = vpack.c.b16 %v1591, %v1590
        %v1613 = vpack.c.b16 %v1593, %v1592
        %v1614 = vpack.c.b16 %v1595, %v1594
        %v1615 = vpack.c.b16 %v1597, %v1596
        %v1616 = vpack.c.b16 %v1599, %v1598
        %v1617 = vpack.c.b16 %v1601, %v1600
        %v1618 = vpack.c.b16 %v1603, %v1602
        %v1619 = vpack.c.b16 %v1605, %v1604
        %v1620 = vpack.c.b16 %v1607, %v1606
        %v1621 = vpack.c.b16 %v1609, %v1608
        %v1622 = vpack.c.b16 %v1611, %v1610
        %v1635 = vsel %vm1388, %v1566, 0
        %1637 = vmatprep.subr.bf16.mxu0 0
        %1638 = vmatpush1.bf16.msra.mxu0 %v1612
        %1639 = vmatprep.subr.bf16.mxu0 0
        %1640 = vmatpush1.bf16.msra.mxu0 %v1613
        %1641 = vmatprep.subr.bf16.mxu0 0
        %1642 = vmatpush1.bf16.msra.mxu0 %v1614
        %1643 = vmatprep.subr.bf16.mxu0 0
        %1644 = vmatpush1.bf16.msra.mxu0 %v1615
        %1645 = vmatprep.subr.bf16.mxu0 0
        %1646 = vmatpush1.bf16.msra.mxu0 %v1616
        %1647 = vmatprep.subr.bf16.mxu0 0
        %1648 = vmatpush1.bf16.msra.mxu0 %v1617
        %1649 = vmatprep.subr.bf16.mxu0 0
        %1650 = vmatpush1.bf16.msra.mxu0 %v1618
        %1651 = vmatprep.subr.bf16.mxu0 0
        %1652 = vmatpush1.bf16.msra.mxu0 %v1619
        %1653 = vmatprep.subr.bf16.mxu0 0
        %1654 = vmatpush1.bf16.msra.mxu0 %v1620
        %1655 = vmatprep.subr.bf16.mxu0 0
        %1656 = vmatpush1.bf16.msra.mxu0 %v1621
        %1657 = vmatprep.subr.bf16.mxu0 0
        %1658 = vmatpush1.bf16.msra.mxu0 %v1622
        %1659 = vmatprep.subr.bf16.mxu0 0
        %1660 = vmatpush1.bf16.msra.mxu0 0
        %1661 = vmatprep.subr.bf16.mxu0 0
        %1662 = vmatpush1.bf16.msra.mxu0 0
        %1663 = vmatprep.subr.bf16.mxu0 0
        %1664 = vmatpush1.bf16.msra.mxu0 0
        %1665 = vmatprep.subr.bf16.mxu0 0
        %1666 = vmatpush1.bf16.msra.mxu0 0
        %1667 = vmatprep.subr.bf16.mxu0 0
        %1668 = vmatpush1.bf16.msra.mxu0 0
        %1669 = vmatprep.mubr.bf16.mxu0 %v1635
        %1670 = vmatmul.mubr.bf16.gmra.mrb[0].mxu0 %v1565
        %v1671 = vpop.f32.mrb[0].mxu0
        %v1672 = vadd.f32 0.0, %v1671
        %v1673 = vpop.f32.mrb[0].mxu0
        %v1674 = vpop.f32.mrb[0].mxu0
        %v1675 = vpop.f32.mrb[0].mxu0
        %1676 = vdwg.mxu0
        %v1677 = vadd.f32 %v1535, %v1672
        %s1678 = scalar_lea.vmem %s322, 264
        %v1679 = vld [vmem:[%s1678] sm:$0xf]
        %v1680 = vld [vmem:[%s1678 + $0x4] sm:$0xf]
        %v1681 = vld [vmem:[%s1678 + $0x8] sm:$0xf]
        %v1682 = vld [vmem:[%s1678 + $0xc] sm:$0xf]
        %v1683 = vld [vmem:[%s1678 + $0x10] sm:$0xf]
        %v1684 = vld [vmem:[%s1678 + $0x14] sm:$0xf]
        %v1685 = vld [vmem:[%s1678 + $0x18] sm:$0xf]
        %v1686 = vld [vmem:[%s1678 + $0x1c] sm:$0xf]
        %v1687 = vld [vmem:[%s1678 + $0x20] sm:$0xf]
        %v1688 = vld [vmem:[%s1678 + $0x24] sm:$0xf]
        %v1689 = vld [vmem:[%s1678 + $0x28] sm:$0xf]
        %v1690 = vld [vmem:[%s1678 + $0x2c] sm:$0xf]
        %v1691 = vld [vmem:[%s1678 + $0x30] sm:$0xf]
        %v1692 = vld [vmem:[%s1678 + $0x34] sm:$0xf]
        %v1693 = vld [vmem:[%s1678 + $0x38] sm:$0xf]
        %v1694 = vld [vmem:[%s1678 + $0x3c] sm:$0xf]
        %v1695 = vld [vmem:[%s1678 + $0x40] sm:$0xf]
        %v1696 = vld [vmem:[%s1678 + $0x44] sm:$0xf]
        %v1697 = vld [vmem:[%s1678 + $0x48] sm:$0xf]
        %v1698 = vld [vmem:[%s1678 + $0x4c] sm:$0xf]
        %v1699 = vld [vmem:[%s1678 + $0x50] sm:$0xf]
        %v1700 = vld [vmem:[%s1678 + $0x54] sm:$0xf]
        %v1701 = vrot.slane %v1316, 1
        %v1702 = vrot.slane %v1319, 1
        %v1726 = vunpack.c.l.b16 %v1679
        %v1727 = vunpack.c.l.b16 %v1680
        %v1728 = vunpack.c.l.b16 %v1681
        %v1729 = vunpack.c.l.b16 %v1682
        %v1730 = vunpack.c.l.b16 %v1683
        %v1731 = vunpack.c.l.b16 %v1684
        %v1732 = vunpack.c.l.b16 %v1685
        %v1733 = vunpack.c.l.b16 %v1686
        %v1734 = vunpack.c.l.b16 %v1687
        %v1735 = vunpack.c.l.b16 %v1688
        %v1736 = vunpack.c.l.b16 %v1689
        %v1737 = vunpack.c.l.b16 %v1690
        %v1738 = vunpack.c.l.b16 %v1691
        %v1739 = vunpack.c.l.b16 %v1692
        %v1740 = vunpack.c.l.b16 %v1693
        %v1741 = vunpack.c.l.b16 %v1694
        %v1742 = vunpack.c.l.b16 %v1695
        %v1743 = vunpack.c.l.b16 %v1696
        %v1744 = vunpack.c.l.b16 %v1697
        %v1745 = vunpack.c.l.b16 %v1698
        %v1746 = vunpack.c.l.b16 %v1699
        %v1747 = vunpack.c.l.b16 %v1700
        %v1748 = vpack.c.b16 %v1727, %v1726
        %v1749 = vpack.c.b16 %v1729, %v1728
        %v1750 = vpack.c.b16 %v1731, %v1730
        %v1751 = vpack.c.b16 %v1733, %v1732
        %v1752 = vpack.c.b16 %v1735, %v1734
        %v1753 = vpack.c.b16 %v1737, %v1736
        %v1754 = vpack.c.b16 %v1739, %v1738
        %v1755 = vpack.c.b16 %v1741, %v1740
        %v1756 = vpack.c.b16 %v1743, %v1742
        %v1757 = vpack.c.b16 %v1745, %v1744
        %v1758 = vpack.c.b16 %v1747, %v1746
        %v1771 = vsel %vm1388, %v1702, 0
        %1773 = vmatprep.subr.bf16.mxu0 0
        %1774 = vmatpush1.bf16.msra.mxu0 %v1748
        %1775 = vmatprep.subr.bf16.mxu0 0
        %1776 = vmatpush1.bf16.msra.mxu0 %v1749
        %1777 = vmatprep.subr.bf16.mxu0 0
        %1778 = vmatpush1.bf16.msra.mxu0 %v1750
        %1779 = vmatprep.subr.bf16.mxu0 0
        %1780 = vmatpush1.bf16.msra.mxu0 %v1751
        %1781 = vmatprep.subr.bf16.mxu0 0
        %1782 = vmatpush1.bf16.msra.mxu0 %v1752
        %1783 = vmatprep.subr.bf16.mxu0 0
        %1784 = vmatpush1.bf16.msra.mxu0 %v1753
        %1785 = vmatprep.subr.bf16.mxu0 0
        %1786 = vmatpush1.bf16.msra.mxu0 %v1754
        %1787 = vmatprep.subr.bf16.mxu0 0
        %1788 = vmatpush1.bf16.msra.mxu0 %v1755
        %1789 = vmatprep.subr.bf16.mxu0 0
        %1790 = vmatpush1.bf16.msra.mxu0 %v1756
        %1791 = vmatprep.subr.bf16.mxu0 0
        %1792 = vmatpush1.bf16.msra.mxu0 %v1757
        %1793 = vmatprep.subr.bf16.mxu0 0
        %1794 = vmatpush1.bf16.msra.mxu0 %v1758
        %1795 = vmatprep.subr.bf16.mxu0 0
        %1796 = vmatpush1.bf16.msra.mxu0 0
        %1797 = vmatprep.subr.bf16.mxu0 0
        %1798 = vmatpush1.bf16.msra.mxu0 0
        %1799 = vmatprep.subr.bf16.mxu0 0
        %1800 = vmatpush1.bf16.msra.mxu0 0
        %1801 = vmatprep.subr.bf16.mxu0 0
        %1802 = vmatpush1.bf16.msra.mxu0 0
        %1803 = vmatprep.subr.bf16.mxu0 0
        %1804 = vmatpush1.bf16.msra.mxu0 0
        %1805 = vmatprep.mubr.bf16.mxu0 %v1771
        %1806 = vmatmul.mubr.bf16.gmra.mrb[0].mxu0 %v1701
        %v1807 = vpop.f32.mrb[0].mxu0
        %v1808 = vadd.f32 0.0, %v1807
        %v1809 = vpop.f32.mrb[0].mxu0
        %v1810 = vpop.f32.mrb[0].mxu0
        %v1811 = vpop.f32.mrb[0].mxu0
        %1812 = vdwg.mxu0
        %v1813 = vadd.f32 %v1677, %v1808
        %s1814 = scalar_lea.vmem %s322, 352
        %v1815 = vld [vmem:[%s1814] sm:$0xf]
        %v1816 = vld [vmem:[%s1814 + $0x4] sm:$0xf]
        %v1817 = vld [vmem:[%s1814 + $0x8] sm:$0xf]
        %v1818 = vld [vmem:[%s1814 + $0xc] sm:$0xf]
        %v1819 = vld [vmem:[%s1814 + $0x10] sm:$0xf]
        %v1820 = vld [vmem:[%s1814 + $0x14] sm:$0xf]
        %v1821 = vld [vmem:[%s1814 + $0x18] sm:$0xf]
        %v1822 = vld [vmem:[%s1814 + $0x1c] sm:$0xf]
        %v1823 = vld [vmem:[%s1814 + $0x20] sm:$0xf]
        %v1824 = vld [vmem:[%s1814 + $0x24] sm:$0xf]
        %v1825 = vld [vmem:[%s1814 + $0x28] sm:$0xf]
        %v1826 = vld [vmem:[%s1814 + $0x2c] sm:$0xf]
        %v1827 = vld [vmem:[%s1814 + $0x30] sm:$0xf]
        %v1828 = vld [vmem:[%s1814 + $0x34] sm:$0xf]
        %v1829 = vld [vmem:[%s1814 + $0x38] sm:$0xf]
        %v1830 = vld [vmem:[%s1814 + $0x3c] sm:$0xf]
        %v1831 = vld [vmem:[%s1814 + $0x40] sm:$0xf]
        %v1832 = vld [vmem:[%s1814 + $0x44] sm:$0xf]
        %v1833 = vld [vmem:[%s1814 + $0x48] sm:$0xf]
        %v1834 = vld [vmem:[%s1814 + $0x4c] sm:$0xf]
        %v1835 = vld [vmem:[%s1814 + $0x50] sm:$0xf]
        %v1836 = vld [vmem:[%s1814 + $0x54] sm:$0xf]
        %v1837 = vrot.slane %v1268, 2
        %v1838 = vrot.slane %v1269, 2
        %v1862 = vunpack.c.l.b16 %v1815
        %v1863 = vunpack.c.l.b16 %v1816
        %v1864 = vunpack.c.l.b16 %v1817
        %v1865 = vunpack.c.l.b16 %v1818
        %v1866 = vunpack.c.l.b16 %v1819
        %v1867 = vunpack.c.l.b16 %v1820
        %v1868 = vunpack.c.l.b16 %v1821
        %v1869 = vunpack.c.l.b16 %v1822
        %v1870 = vunpack.c.l.b16 %v1823
        %v1871 = vunpack.c.l.b16 %v1824
        %v1872 = vunpack.c.l.b16 %v1825
        %v1873 = vunpack.c.l.b16 %v1826
        %v1874 = vunpack.c.l.b16 %v1827
        %v1875 = vunpack.c.l.b16 %v1828
        %v1876 = vunpack.c.l.b16 %v1829
        %v1877 = vunpack.c.l.b16 %v1830
        %v1878 = vunpack.c.l.b16 %v1831
        %v1879 = vunpack.c.l.b16 %v1832
        %v1880 = vunpack.c.l.b16 %v1833
        %v1881 = vunpack.c.l.b16 %v1834
        %v1882 = vunpack.c.l.b16 %v1835
        %v1883 = vunpack.c.l.b16 %v1836
        %v1884 = vpack.c.b16 %v1863, %v1862
        %v1885 = vpack.c.b16 %v1865, %v1864
        %v1886 = vpack.c.b16 %v1867, %v1866
        %v1887 = vpack.c.b16 %v1869, %v1868
        %v1888 = vpack.c.b16 %v1871, %v1870
        %v1889 = vpack.c.b16 %v1873, %v1872
        %v1890 = vpack.c.b16 %v1875, %v1874
        %v1891 = vpack.c.b16 %v1877, %v1876
        %v1892 = vpack.c.b16 %v1879, %v1878
        %v1893 = vpack.c.b16 %v1881, %v1880
        %v1894 = vpack.c.b16 %v1883, %v1882
        %v1907 = vsel %vm1388, %v1838, 0
        %1909 = vmatprep.subr.bf16.mxu0 0
        %1910 = vmatpush1.bf16.msra.mxu0 %v1884
        %1911 = vmatprep.subr.bf16.mxu0 0
        %1912 = vmatpush1.bf16.msra.mxu0 %v1885
        %1913 = vmatprep.subr.bf16.mxu0 0
        %1914 = vmatpush1.bf16.msra.mxu0 %v1886
        %1915 = vmatprep.subr.bf16.mxu0 0
        %1916 = vmatpush1.bf16.msra.mxu0 %v1887
        %1917 = vmatprep.subr.bf16.mxu0 0
        %1918 = vmatpush1.bf16.msra.mxu0 %v1888
        %1919 = vmatprep.subr.bf16.mxu0 0
        %1920 = vmatpush1.bf16.msra.mxu0 %v1889
        %1921 = vmatprep.subr.bf16.mxu0 0
        %1922 = vmatpush1.bf16.msra.mxu0 %v1890
        %1923 = vmatprep.subr.bf16.mxu0 0
        %1924 = vmatpush1.bf16.msra.mxu0 %v1891
        %1925 = vmatprep.subr.bf16.mxu0 0
        %1926 = vmatpush1.bf16.msra.mxu0 %v1892
        %1927 = vmatprep.subr.bf16.mxu0 0
        %1928 = vmatpush1.bf16.msra.mxu0 %v1893
        %1929 = vmatprep.subr.bf16.mxu0 0
        %1930 = vmatpush1.bf16.msra.mxu0 %v1894
        %1931 = vmatprep.subr.bf16.mxu0 0
        %1932 = vmatpush1.bf16.msra.mxu0 0
        %1933 = vmatprep.subr.bf16.mxu0 0
        %1934 = vmatpush1.bf16.msra.mxu0 0
        %1935 = vmatprep.subr.bf16.mxu0 0
        %1936 = vmatpush1.bf16.msra.mxu0 0
        %1937 = vmatprep.subr.bf16.mxu0 0
        %1938 = vmatpush1.bf16.msra.mxu0 0
        %1939 = vmatprep.subr.bf16.mxu0 0
        %1940 = vmatpush1.bf16.msra.mxu0 0
        %1941 = vmatprep.mubr.bf16.mxu0 %v1907
        %1942 = vmatmul.mubr.bf16.gmra.mrb[0].mxu0 %v1837
        %v1943 = vpop.f32.mrb[0].mxu0
        %v1944 = vadd.f32 0.0, %v1943
        %v1945 = vpop.f32.mrb[0].mxu0
        %v1946 = vpop.f32.mrb[0].mxu0
        %v1947 = vpop.f32.mrb[0].mxu0
        %1948 = vdwg.mxu0
        %v1949 = vadd.f32 %v1813, %v1944
        %s1950 = scalar_lea.vmem %s322, 440
        %v1951 = vld [vmem:[%s1950] sm:$0xf]
        %v1952 = vld [vmem:[%s1950 + $0x4] sm:$0xf]
        %v1953 = vld [vmem:[%s1950 + $0x8] sm:$0xf]
        %v1954 = vld [vmem:[%s1950 + $0xc] sm:$0xf]
        %v1955 = vld [vmem:[%s1950 + $0x10] sm:$0xf]
        %v1956 = vld [vmem:[%s1950 + $0x14] sm:$0xf]
        %v1957 = vld [vmem:[%s1950 + $0x18] sm:$0xf]
        %v1958 = vld [vmem:[%s1950 + $0x1c] sm:$0xf]
        %v1959 = vld [vmem:[%s1950 + $0x20] sm:$0xf]
        %v1960 = vld [vmem:[%s1950 + $0x24] sm:$0xf]
        %v1961 = vld [vmem:[%s1950 + $0x28] sm:$0xf]
        %v1962 = vld [vmem:[%s1950 + $0x2c] sm:$0xf]
        %v1963 = vld [vmem:[%s1950 + $0x30] sm:$0xf]
        %v1964 = vld [vmem:[%s1950 + $0x34] sm:$0xf]
        %v1965 = vld [vmem:[%s1950 + $0x38] sm:$0xf]
        %v1966 = vld [vmem:[%s1950 + $0x3c] sm:$0xf]
        %v1967 = vld [vmem:[%s1950 + $0x40] sm:$0xf]
        %v1968 = vld [vmem:[%s1950 + $0x44] sm:$0xf]
        %v1969 = vld [vmem:[%s1950 + $0x48] sm:$0xf]
        %v1970 = vld [vmem:[%s1950 + $0x4c] sm:$0xf]
        %v1971 = vld [vmem:[%s1950 + $0x50] sm:$0xf]
        %v1972 = vld [vmem:[%s1950 + $0x54] sm:$0xf]
        %v1973 = vrot.slane %v1316, 2
        %v1974 = vrot.slane %v1319, 2
        %v1998 = vunpack.c.l.b16 %v1951
        %v1999 = vunpack.c.l.b16 %v1952
        %v2000 = vunpack.c.l.b16 %v1953
        %v2001 = vunpack.c.l.b16 %v1954
        %v2002 = vunpack.c.l.b16 %v1955
        %v2003 = vunpack.c.l.b16 %v1956
        %v2004 = vunpack.c.l.b16 %v1957
        %v2005 = vunpack.c.l.b16 %v1958
        %v2006 = vunpack.c.l.b16 %v1959
        %v2007 = vunpack.c.l.b16 %v1960
        %v2008 = vunpack.c.l.b16 %v1961
        %v2009 = vunpack.c.l.b16 %v1962
        %v2010 = vunpack.c.l.b16 %v1963
        %v2011 = vunpack.c.l.b16 %v1964
        %v2012 = vunpack.c.l.b16 %v1965
        %v2013 = vunpack.c.l.b16 %v1966
        %v2014 = vunpack.c.l.b16 %v1967
        %v2015 = vunpack.c.l.b16 %v1968
        %v2016 = vunpack.c.l.b16 %v1969
        %v2017 = vunpack.c.l.b16 %v1970
        %v2018 = vunpack.c.l.b16 %v1971
        %v2019 = vunpack.c.l.b16 %v1972
        %v2020 = vpack.c.b16 %v1999, %v1998
        %v2021 = vpack.c.b16 %v2001, %v2000
        %v2022 = vpack.c.b16 %v2003, %v2002
        %v2023 = vpack.c.b16 %v2005, %v2004
        %v2024 = vpack.c.b16 %v2007, %v2006
        %v2025 = vpack.c.b16 %v2009, %v2008
        %v2026 = vpack.c.b16 %v2011, %v2010
        %v2027 = vpack.c.b16 %v2013, %v2012
        %v2028 = vpack.c.b16 %v2015, %v2014
        %v2029 = vpack.c.b16 %v2017, %v2016
        %v2030 = vpack.c.b16 %v2019, %v2018
        %v2043 = vsel %vm1388, %v1974, 0
        %2045 = vmatprep.subr.bf16.mxu0 0
        %2046 = vmatpush1.bf16.msra.mxu0 %v2020
        %2047 = vmatprep.subr.bf16.mxu0 0
        %2048 = vmatpush1.bf16.msra.mxu0 %v2021
        %2049 = vmatprep.subr.bf16.mxu0 0
        %2050 = vmatpush1.bf16.msra.mxu0 %v2022
        %2051 = vmatprep.subr.bf16.mxu0 0
        %2052 = vmatpush1.bf16.msra.mxu0 %v2023
        %2053 = vmatprep.subr.bf16.mxu0 0
        %2054 = vmatpush1.bf16.msra.mxu0 %v2024
        %2055 = vmatprep.subr.bf16.mxu0 0
        %2056 = vmatpush1.bf16.msra.mxu0 %v2025
        %2057 = vmatprep.subr.bf16.mxu0 0
        %2058 = vmatpush1.bf16.msra.mxu0 %v2026
        %2059 = vmatprep.subr.bf16.mxu0 0
        %2060 = vmatpush1.bf16.msra.mxu0 %v2027
        %2061 = vmatprep.subr.bf16.mxu0 0
        %2062 = vmatpush1.bf16.msra.mxu0 %v2028
        %2063 = vmatprep.subr.bf16.mxu0 0
        %2064 = vmatpush1.bf16.msra.mxu0 %v2029
        %2065 = vmatprep.subr.bf16.mxu0 0
        %2066 = vmatpush1.bf16.msra.mxu0 %v2030
        %2067 = vmatprep.subr.bf16.mxu0 0
        %2068 = vmatpush1.bf16.msra.mxu0 0
        %2069 = vmatprep.subr.bf16.mxu0 0
        %2070 = vmatpush1.bf16.msra.mxu0 0
        %2071 = vmatprep.subr.bf16.mxu0 0
        %2072 = vmatpush1.bf16.msra.mxu0 0
        %2073 = vmatprep.subr.bf16.mxu0 0
        %2074 = vmatpush1.bf16.msra.mxu0 0
        %2075 = vmatprep.subr.bf16.mxu0 0
        %2076 = vmatpush1.bf16.msra.mxu0 0
        %2077 = vmatprep.mubr.bf16.mxu0 %v2043
        %2078 = vmatmul.mubr.bf16.gmra.mrb[0].mxu0 %v1973
        %v2079 = vpop.f32.mrb[0].mxu0
        %v2080 = vadd.f32 0.0, %v2079
        %v2081 = vpop.f32.mrb[0].mxu0
        %v2082 = vpop.f32.mrb[0].mxu0
        %v2083 = vpop.f32.mrb[0].mxu0
        %2084 = vdwg.mxu0
        %v2085 = vadd.f32 %v1949, %v2080
        %s2086 = scalar_lea.vmem %s322, 528
        %v2087 = vld [vmem:[%s2086] sm:$0xf]
        %v2088 = vld [vmem:[%s2086 + $0x4] sm:$0xf]
        %v2089 = vld [vmem:[%s2086 + $0x8] sm:$0xf]
        %v2090 = vld [vmem:[%s2086 + $0xc] sm:$0xf]
        %v2091 = vld [vmem:[%s2086 + $0x10] sm:$0xf]
        %v2092 = vld [vmem:[%s2086 + $0x14] sm:$0xf]
        %v2093 = vld [vmem:[%s2086 + $0x18] sm:$0xf]
        %v2094 = vld [vmem:[%s2086 + $0x1c] sm:$0xf]
        %v2095 = vld [vmem:[%s2086 + $0x20] sm:$0xf]
        %v2096 = vld [vmem:[%s2086 + $0x24] sm:$0xf]
        %v2097 = vld [vmem:[%s2086 + $0x28] sm:$0xf]
        %v2098 = vld [vmem:[%s2086 + $0x2c] sm:$0xf]
        %v2099 = vld [vmem:[%s2086 + $0x30] sm:$0xf]
        %v2100 = vld [vmem:[%s2086 + $0x34] sm:$0xf]
        %v2101 = vld [vmem:[%s2086 + $0x38] sm:$0xf]
        %v2102 = vld [vmem:[%s2086 + $0x3c] sm:$0xf]
        %v2103 = vld [vmem:[%s2086 + $0x40] sm:$0xf]
        %v2104 = vld [vmem:[%s2086 + $0x44] sm:$0xf]
        %v2105 = vld [vmem:[%s2086 + $0x48] sm:$0xf]
        %v2106 = vld [vmem:[%s2086 + $0x4c] sm:$0xf]
        %v2107 = vld [vmem:[%s2086 + $0x50] sm:$0xf]
        %v2108 = vld [vmem:[%s2086 + $0x54] sm:$0xf]
        %v2109 = vrot.slane %v1268, 3
        %v2110 = vrot.slane %v1269, 3
        %v2134 = vunpack.c.l.b16 %v2087
        %v2135 = vunpack.c.l.b16 %v2088
        %v2136 = vunpack.c.l.b16 %v2089
        %v2137 = vunpack.c.l.b16 %v2090
        %v2138 = vunpack.c.l.b16 %v2091
        %v2139 = vunpack.c.l.b16 %v2092
        %v2140 = vunpack.c.l.b16 %v2093
        %v2141 = vunpack.c.l.b16 %v2094
        %v2142 = vunpack.c.l.b16 %v2095
        %v2143 = vunpack.c.l.b16 %v2096
        %v2144 = vunpack.c.l.b16 %v2097
        %v2145 = vunpack.c.l.b16 %v2098
        %v2146 = vunpack.c.l.b16 %v2099
        %v2147 = vunpack.c.l.b16 %v2100
        %v2148 = vunpack.c.l.b16 %v2101
        %v2149 = vunpack.c.l.b16 %v2102
        %v2150 = vunpack.c.l.b16 %v2103
        %v2151 = vunpack.c.l.b16 %v2104
        %v2152 = vunpack.c.l.b16 %v2105
        %v2153 = vunpack.c.l.b16 %v2106
        %v2154 = vunpack.c.l.b16 %v2107
        %v2155 = vunpack.c.l.b16 %v2108
        %v2156 = vpack.c.b16 %v2135, %v2134
        %v2157 = vpack.c.b16 %v2137, %v2136
        %v2158 = vpack.c.b16 %v2139, %v2138
        %v2159 = vpack.c.b16 %v2141, %v2140
        %v2160 = vpack.c.b16 %v2143, %v2142
        %v2161 = vpack.c.b16 %v2145, %v2144
        %v2162 = vpack.c.b16 %v2147, %v2146
        %v2163 = vpack.c.b16 %v2149, %v2148
        %v2164 = vpack.c.b16 %v2151, %v2150
        %v2165 = vpack.c.b16 %v2153, %v2152
        %v2166 = vpack.c.b16 %v2155, %v2154
        %v2179 = vsel %vm1388, %v2110, 0
        %2181 = vmatprep.subr.bf16.mxu0 0
        %2182 = vmatpush1.bf16.msra.mxu0 %v2156
        %2183 = vmatprep.subr.bf16.mxu0 0
        %2184 = vmatpush1.bf16.msra.mxu0 %v2157
        %2185 = vmatprep.subr.bf16.mxu0 0
        %2186 = vmatpush1.bf16.msra.mxu0 %v2158
        %2187 = vmatprep.subr.bf16.mxu0 0
        %2188 = vmatpush1.bf16.msra.mxu0 %v2159
        %2189 = vmatprep.subr.bf16.mxu0 0
        %2190 = vmatpush1.bf16.msra.mxu0 %v2160
        %2191 = vmatprep.subr.bf16.mxu0 0
        %2192 = vmatpush1.bf16.msra.mxu0 %v2161
        %2193 = vmatprep.subr.bf16.mxu0 0
        %2194 = vmatpush1.bf16.msra.mxu0 %v2162
        %2195 = vmatprep.subr.bf16.mxu0 0
        %2196 = vmatpush1.bf16.msra.mxu0 %v2163
        %2197 = vmatprep.subr.bf16.mxu0 0
        %2198 = vmatpush1.bf16.msra.mxu0 %v2164
        %2199 = vmatprep.subr.bf16.mxu0 0
        %2200 = vmatpush1.bf16.msra.mxu0 %v2165
        %2201 = vmatprep.subr.bf16.mxu0 0
        %2202 = vmatpush1.bf16.msra.mxu0 %v2166
        %2203 = vmatprep.subr.bf16.mxu0 0
        %2204 = vmatpush1.bf16.msra.mxu0 0
        %2205 = vmatprep.subr.bf16.mxu0 0
        %2206 = vmatpush1.bf16.msra.mxu0 0
        %2207 = vmatprep.subr.bf16.mxu0 0
        %2208 = vmatpush1.bf16.msra.mxu0 0
        %2209 = vmatprep.subr.bf16.mxu0 0
        %2210 = vmatpush1.bf16.msra.mxu0 0
        %2211 = vmatprep.subr.bf16.mxu0 0
        %2212 = vmatpush1.bf16.msra.mxu0 0
        %2213 = vmatprep.mubr.bf16.mxu0 %v2179
        %2214 = vmatmul.mubr.bf16.gmra.mrb[0].mxu0 %v2109
        %v2215 = vpop.f32.mrb[0].mxu0
        %v2216 = vadd.f32 0.0, %v2215
        %v2217 = vpop.f32.mrb[0].mxu0
        %v2218 = vpop.f32.mrb[0].mxu0
        %v2219 = vpop.f32.mrb[0].mxu0
        %2220 = vdwg.mxu0
        %v2221 = vadd.f32 %v2085, %v2216
        %s2222 = scalar_lea.vmem %s322, 616
        %v2223 = vld [vmem:[%s2222] sm:$0xf]
        %v2224 = vld [vmem:[%s2222 + $0x4] sm:$0xf]
        %v2225 = vld [vmem:[%s2222 + $0x8] sm:$0xf]
        %v2226 = vld [vmem:[%s2222 + $0xc] sm:$0xf]
        %v2227 = vld [vmem:[%s2222 + $0x10] sm:$0xf]
        %v2228 = vld [vmem:[%s2222 + $0x14] sm:$0xf]
        %v2229 = vld [vmem:[%s2222 + $0x18] sm:$0xf]
        %v2230 = vld [vmem:[%s2222 + $0x1c] sm:$0xf]
        %v2231 = vld [vmem:[%s2222 + $0x20] sm:$0xf]
        %v2232 = vld [vmem:[%s2222 + $0x24] sm:$0xf]
        %v2233 = vld [vmem:[%s2222 + $0x28] sm:$0xf]
        %v2234 = vld [vmem:[%s2222 + $0x2c] sm:$0xf]
        %v2235 = vld [vmem:[%s2222 + $0x30] sm:$0xf]
        %v2236 = vld [vmem:[%s2222 + $0x34] sm:$0xf]
        %v2237 = vld [vmem:[%s2222 + $0x38] sm:$0xf]
        %v2238 = vld [vmem:[%s2222 + $0x3c] sm:$0xf]
        %v2239 = vld [vmem:[%s2222 + $0x40] sm:$0xf]
        %v2240 = vld [vmem:[%s2222 + $0x44] sm:$0xf]
        %v2241 = vld [vmem:[%s2222 + $0x48] sm:$0xf]
        %v2242 = vld [vmem:[%s2222 + $0x4c] sm:$0xf]
        %v2243 = vld [vmem:[%s2222 + $0x50] sm:$0xf]
        %v2244 = vld [vmem:[%s2222 + $0x54] sm:$0xf]
        %v2245 = vrot.slane %v1316, 3
        %v2246 = vrot.slane %v1319, 3
        %v2270 = vunpack.c.l.b16 %v2223
        %v2271 = vunpack.c.l.b16 %v2224
        %v2272 = vunpack.c.l.b16 %v2225
        %v2273 = vunpack.c.l.b16 %v2226
        %v2274 = vunpack.c.l.b16 %v2227
        %v2275 = vunpack.c.l.b16 %v2228
        %v2276 = vunpack.c.l.b16 %v2229
        %v2277 = vunpack.c.l.b16 %v2230
        %v2278 = vunpack.c.l.b16 %v2231
        %v2279 = vunpack.c.l.b16 %v2232
        %v2280 = vunpack.c.l.b16 %v2233
        %v2281 = vunpack.c.l.b16 %v2234
        %v2282 = vunpack.c.l.b16 %v2235
        %v2283 = vunpack.c.l.b16 %v2236
        %v2284 = vunpack.c.l.b16 %v2237
        %v2285 = vunpack.c.l.b16 %v2238
        %v2286 = vunpack.c.l.b16 %v2239
        %v2287 = vunpack.c.l.b16 %v2240
        %v2288 = vunpack.c.l.b16 %v2241
        %v2289 = vunpack.c.l.b16 %v2242
        %v2290 = vunpack.c.l.b16 %v2243
        %v2291 = vunpack.c.l.b16 %v2244
        %v2292 = vpack.c.b16 %v2271, %v2270
        %v2293 = vpack.c.b16 %v2273, %v2272
        %v2294 = vpack.c.b16 %v2275, %v2274
        %v2295 = vpack.c.b16 %v2277, %v2276
        %v2296 = vpack.c.b16 %v2279, %v2278
        %v2297 = vpack.c.b16 %v2281, %v2280
        %v2298 = vpack.c.b16 %v2283, %v2282
        %v2299 = vpack.c.b16 %v2285, %v2284
        %v2300 = vpack.c.b16 %v2287, %v2286
        %v2301 = vpack.c.b16 %v2289, %v2288
        %v2302 = vpack.c.b16 %v2291, %v2290
        %v2315 = vsel %vm1388, %v2246, 0
        %2317 = vmatprep.subr.bf16.mxu0 0
        %2318 = vmatpush1.bf16.msra.mxu0 %v2292
        %2319 = vmatprep.subr.bf16.mxu0 0
        %2320 = vmatpush1.bf16.msra.mxu0 %v2293
        %2321 = vmatprep.subr.bf16.mxu0 0
        %2322 = vmatpush1.bf16.msra.mxu0 %v2294
        %2323 = vmatprep.subr.bf16.mxu0 0
        %2324 = vmatpush1.bf16.msra.mxu0 %v2295
        %2325 = vmatprep.subr.bf16.mxu0 0
        %2326 = vmatpush1.bf16.msra.mxu0 %v2296
        %2327 = vmatprep.subr.bf16.mxu0 0
        %2328 = vmatpush1.bf16.msra.mxu0 %v2297
        %2329 = vmatprep.subr.bf16.mxu0 0
        %2330 = vmatpush1.bf16.msra.mxu0 %v2298
        %2331 = vmatprep.subr.bf16.mxu0 0
        %2332 = vmatpush1.bf16.msra.mxu0 %v2299
        %2333 = vmatprep.subr.bf16.mxu0 0
        %2334 = vmatpush1.bf16.msra.mxu0 %v2300
        %2335 = vmatprep.subr.bf16.mxu0 0
        %2336 = vmatpush1.bf16.msra.mxu0 %v2301
        %2337 = vmatprep.subr.bf16.mxu0 0
        %2338 = vmatpush1.bf16.msra.mxu0 %v2302
        %2339 = vmatprep.subr.bf16.mxu0 0
        %2340 = vmatpush1.bf16.msra.mxu0 0
        %2341 = vmatprep.subr.bf16.mxu0 0
        %2342 = vmatpush1.bf16.msra.mxu0 0
        %2343 = vmatprep.subr.bf16.mxu0 0
        %2344 = vmatpush1.bf16.msra.mxu0 0
        %2345 = vmatprep.subr.bf16.mxu0 0
        %2346 = vmatpush1.bf16.msra.mxu0 0
        %2347 = vmatprep.subr.bf16.mxu0 0
        %2348 = vmatpush1.bf16.msra.mxu0 0
        %2349 = vmatprep.mubr.bf16.mxu0 %v2315
        %2350 = vmatmul.mubr.bf16.gmra.mrb[0].mxu0 %v2245
        %v2351 = vpop.f32.mrb[0].mxu0
        %v2352 = vadd.f32 0.0, %v2351
        %v2353 = vpop.f32.mrb[0].mxu0
        %v2354 = vpop.f32.mrb[0].mxu0
        %v2355 = vpop.f32.mrb[0].mxu0
        %2356 = vdwg.mxu0
        %v2357 = vadd.f32 %v2221, %v2352
        %v2358 = vld [vmem:[#allocation3] sm:$0x1]
        %v2359 = vadd.f32 %v2358, %v2357
        %2360 = vst [vmem:[#allocation3] sm:$0x1] %v2359
        %s2361 = sadd.s32 %s1260, 32
        %s2362 = sshra.s32 %s2361, 3
        %s2363 = sand.u32 %s2361, 7
        %s2364 = smul.u32 %s2362, 2
        %s2365 = smul.addr %s2364, 8
        %s2366 = scalar_lea.vmem [#allocation2], %s2365
        %v2367 = vld [vmem:[%s2366] sm:$0xff]
        %v2368 = vld [vmem:[%s2366 + $0x8] sm:$0xff]
        %v2369 = vpack.c.bf16 %v2367, %v2367
        %v2370 = vpack.c.bf16 %v2368, %v2368
        %v2371 = vld [vmem:[%s322] sm:$0xf]
        %v2372 = vld [vmem:[%s322 + $0x4] sm:$0xf]
        %v2373 = vld [vmem:[%s322 + $0x8] sm:$0xf]
        %v2374 = vld [vmem:[%s322 + $0xc] sm:$0xf]
        %v2375 = vld [vmem:[%s322 + $0x10] sm:$0xf]
        %v2376 = vld [vmem:[%s322 + $0x14] sm:$0xf]
        %v2377 = vld [vmem:[%s322 + $0x18] sm:$0xf]
        %v2378 = vld [vmem:[%s322 + $0x1c] sm:$0xf]
        %v2379 = vld [vmem:[%s322 + $0x20] sm:$0xf]
        %v2380 = vld [vmem:[%s322 + $0x24] sm:$0xf]
        %v2381 = vld [vmem:[%s322 + $0x28] sm:$0xf]
        %v2382 = vld [vmem:[%s322 + $0x2c] sm:$0xf]
        %v2383 = vld [vmem:[%s322 + $0x30] sm:$0xf]
        %v2384 = vld [vmem:[%s322 + $0x34] sm:$0xf]
        %v2385 = vld [vmem:[%s322 + $0x38] sm:$0xf]
        %v2386 = vld [vmem:[%s322 + $0x3c] sm:$0xf]
        %v2387 = vld [vmem:[%s322 + $0x40] sm:$0xf]
        %v2388 = vld [vmem:[%s322 + $0x44] sm:$0xf]
        %v2389 = vld [vmem:[%s322 + $0x48] sm:$0xf]
        %v2390 = vld [vmem:[%s322 + $0x4c] sm:$0xf]
        %v2391 = vld [vmem:[%s322 + $0x50] sm:$0xf]
        %v2392 = vld [vmem:[%s322 + $0x54] sm:$0xf]
        %v2393 = vld [vmem:[%s1292] sm:$0xf]
        %v2394 = vld [vmem:[%s1292 + $0x4] sm:$0xf]
        %v2395 = vld [vmem:[%s1292 + $0x8] sm:$0xf]
        %v2396 = vld [vmem:[%s1292 + $0xc] sm:$0xf]
        %v2397 = vld [vmem:[%s1292 + $0x10] sm:$0xf]
        %v2398 = vld [vmem:[%s1292 + $0x14] sm:$0xf]
        %v2399 = vld [vmem:[%s1292 + $0x18] sm:$0xf]
        %v2400 = vld [vmem:[%s1292 + $0x1c] sm:$0xf]
        %v2401 = vld [vmem:[%s1292 + $0x20] sm:$0xf]
        %v2402 = vld [vmem:[%s1292 + $0x24] sm:$0xf]
        %v2403 = vld [vmem:[%s1292 + $0x28] sm:$0xf]
        %v2404 = vld [vmem:[%s1292 + $0x2c] sm:$0xf]
        %v2405 = vld [vmem:[%s1292 + $0x30] sm:$0xf]
        %v2406 = vld [vmem:[%s1292 + $0x34] sm:$0xf]
        %v2407 = vld [vmem:[%s1292 + $0x38] sm:$0xf]
        %v2408 = vld [vmem:[%s1292 + $0x3c] sm:$0xf]
        %v2409 = vld [vmem:[%s1292 + $0x40] sm:$0xf]
        %v2410 = vld [vmem:[%s1292 + $0x44] sm:$0xf]
        %v2411 = vld [vmem:[%s1292 + $0x48] sm:$0xf]
        %v2412 = vld [vmem:[%s1292 + $0x4c] sm:$0xf]
        %v2413 = vld [vmem:[%s1292 + $0x50] sm:$0xf]
        %v2414 = vld [vmem:[%s1292 + $0x54] sm:$0xf]
        %v2416 = vshrl.u32 %v2369, 16
        %v2419 = vshrl.u32 %v2370, 16
        %v2444 = vunpack.c.l.b16 %v2393
        %v2445 = vunpack.c.l.b16 %v2394
        %v2446 = vunpack.c.l.b16 %v2395
        %v2447 = vunpack.c.l.b16 %v2396
        %v2448 = vunpack.c.l.b16 %v2397
        %v2449 = vunpack.c.l.b16 %v2398
        %v2450 = vunpack.c.l.b16 %v2399
        %v2451 = vunpack.c.l.b16 %v2400
        %v2452 = vunpack.c.l.b16 %v2401
        %v2453 = vunpack.c.l.b16 %v2402
        %v2454 = vunpack.c.l.b16 %v2403
        %v2455 = vunpack.c.l.b16 %v2404
        %v2456 = vunpack.c.l.b16 %v2405
        %v2457 = vunpack.c.l.b16 %v2406
        %v2458 = vunpack.c.l.b16 %v2407
        %v2459 = vunpack.c.l.b16 %v2408
        %v2460 = vunpack.c.l.b16 %v2409
        %v2461 = vunpack.c.l.b16 %v2410
        %v2462 = vunpack.c.l.b16 %v2411
        %v2463 = vunpack.c.l.b16 %v2412
        %v2464 = vunpack.c.l.b16 %v2413
        %v2465 = vunpack.c.l.b16 %v2414
        %v2466 = vpack.c.b16 %v2445, %v2444
        %v2467 = vpack.c.b16 %v2447, %v2446
        %v2468 = vpack.c.b16 %v2449, %v2448
        %v2469 = vpack.c.b16 %v2451, %v2450
        %v2470 = vpack.c.b16 %v2453, %v2452
        %v2471 = vpack.c.b16 %v2455, %v2454
        %v2472 = vpack.c.b16 %v2457, %v2456
        %v2473 = vpack.c.b16 %v2459, %v2458
        %v2474 = vpack.c.b16 %v2461, %v2460
        %v2475 = vpack.c.b16 %v2463, %v2462
        %v2476 = vpack.c.b16 %v2465, %v2464
        %v2489 = vsel %vm1388, %v2419, 0
        %2491 = vmatprep.subr.bf16.mxu0 0
        %2492 = vmatpush1.bf16.msra.mxu0 %v2466
        %2493 = vmatprep.subr.bf16.mxu0 0
        %2494 = vmatpush1.bf16.msra.mxu0 %v2467
        %2495 = vmatprep.subr.bf16.mxu0 0
        %2496 = vmatpush1.bf16.msra.mxu0 %v2468
        %2497 = vmatprep.subr.bf16.mxu0 0
        %2498 = vmatpush1.bf16.msra.mxu0 %v2469
        %2499 = vmatprep.subr.bf16.mxu0 0
        %2500 = vmatpush1.bf16.msra.mxu0 %v2470
        %2501 = vmatprep.subr.bf16.mxu0 0
        %2502 = vmatpush1.bf16.msra.mxu0 %v2471
        %2503 = vmatprep.subr.bf16.mxu0 0
        %2504 = vmatpush1.bf16.msra.mxu0 %v2472
        %2505 = vmatprep.subr.bf16.mxu0 0
        %2506 = vmatpush1.bf16.msra.mxu0 %v2473
        %2507 = vmatprep.subr.bf16.mxu0 0
        %2508 = vmatpush1.bf16.msra.mxu0 %v2474
        %2509 = vmatprep.subr.bf16.mxu0 0
        %2510 = vmatpush1.bf16.msra.mxu0 %v2475
        %2511 = vmatprep.subr.bf16.mxu0 0
        %2512 = vmatpush1.bf16.msra.mxu0 %v2476
        %2513 = vmatprep.subr.bf16.mxu0 0
        %2514 = vmatpush1.bf16.msra.mxu0 0
        %2515 = vmatprep.subr.bf16.mxu0 0
        %2516 = vmatpush1.bf16.msra.mxu0 0
        %2517 = vmatprep.subr.bf16.mxu0 0
        %2518 = vmatpush1.bf16.msra.mxu0 0
        %2519 = vmatprep.subr.bf16.mxu0 0
        %2520 = vmatpush1.bf16.msra.mxu0 0
        %2521 = vmatprep.subr.bf16.mxu0 0
        %2522 = vmatpush1.bf16.msra.mxu0 0
        %2523 = vmatprep.mubr.bf16.mxu0 %v2489
        %2524 = vmatmul.mubr.bf16.gmra.mrb[0].mxu0 %v2416
        %v2525 = vpop.f32.mrb[0].mxu0
        %v2526 = vadd.f32 0.0, %v2525
        %v2527 = vpop.f32.mrb[0].mxu0
        %v2528 = vpop.f32.mrb[0].mxu0
        %v2529 = vpop.f32.mrb[0].mxu0
        %2530 = vdwg.mxu0
        %v2553 = vunpack.c.l.b16 %v2371
        %v2554 = vunpack.c.l.b16 %v2372
        %v2555 = vunpack.c.l.b16 %v2373
        %v2556 = vunpack.c.l.b16 %v2374
        %v2557 = vunpack.c.l.b16 %v2375
        %v2558 = vunpack.c.l.b16 %v2376
        %v2559 = vunpack.c.l.b16 %v2377
        %v2560 = vunpack.c.l.b16 %v2378
        %v2561 = vunpack.c.l.b16 %v2379
        %v2562 = vunpack.c.l.b16 %v2380
        %v2563 = vunpack.c.l.b16 %v2381
        %v2564 = vunpack.c.l.b16 %v2382
        %v2565 = vunpack.c.l.b16 %v2383
        %v2566 = vunpack.c.l.b16 %v2384
        %v2567 = vunpack.c.l.b16 %v2385
        %v2568 = vunpack.c.l.b16 %v2386
        %v2569 = vunpack.c.l.b16 %v2387
        %v2570 = vunpack.c.l.b16 %v2388
        %v2571 = vunpack.c.l.b16 %v2389
        %v2572 = vunpack.c.l.b16 %v2390
        %v2573 = vunpack.c.l.b16 %v2391
        %v2574 = vunpack.c.l.b16 %v2392
        %v2575 = vpack.c.b16 %v2554, %v2553
        %v2576 = vpack.c.b16 %v2556, %v2555
        %v2577 = vpack.c.b16 %v2558, %v2557
        %v2578 = vpack.c.b16 %v2560, %v2559
        %v2579 = vpack.c.b16 %v2562, %v2561
        %v2580 = vpack.c.b16 %v2564, %v2563
        %v2581 = vpack.c.b16 %v2566, %v2565
        %v2582 = vpack.c.b16 %v2568, %v2567
        %v2583 = vpack.c.b16 %v2570, %v2569
        %v2584 = vpack.c.b16 %v2572, %v2571
        %v2585 = vpack.c.b16 %v2574, %v2573
        %v2597 = vsel %vm1388, %v2370, 0
        %2599 = vmatprep.subr.bf16.mxu0 0
        %2600 = vmatpush1.bf16.msra.mxu0 %v2575
        %2601 = vmatprep.subr.bf16.mxu0 0
        %2602 = vmatpush1.bf16.msra.mxu0 %v2576
        %2603 = vmatprep.subr.bf16.mxu0 0
        %2604 = vmatpush1.bf16.msra.mxu0 %v2577
        %2605 = vmatprep.subr.bf16.mxu0 0
        %2606 = vmatpush1.bf16.msra.mxu0 %v2578
        %2607 = vmatprep.subr.bf16.mxu0 0
        %2608 = vmatpush1.bf16.msra.mxu0 %v2579
        %2609 = vmatprep.subr.bf16.mxu0 0
        %2610 = vmatpush1.bf16.msra.mxu0 %v2580
        %2611 = vmatprep.subr.bf16.mxu0 0
        %2612 = vmatpush1.bf16.msra.mxu0 %v2581
        %2613 = vmatprep.subr.bf16.mxu0 0
        %2614 = vmatpush1.bf16.msra.mxu0 %v2582
        %2615 = vmatprep.subr.bf16.mxu0 0
        %2616 = vmatpush1.bf16.msra.mxu0 %v2583
        %2617 = vmatprep.subr.bf16.mxu0 0
        %2618 = vmatpush1.bf16.msra.mxu0 %v2584
        %2619 = vmatprep.subr.bf16.mxu0 0
        %2620 = vmatpush1.bf16.msra.mxu0 %v2585
        %2621 = vmatprep.subr.bf16.mxu0 0
        %2622 = vmatpush1.bf16.msra.mxu0 0
        %2623 = vmatprep.subr.bf16.mxu0 0
        %2624 = vmatpush1.bf16.msra.mxu0 0
        %2625 = vmatprep.subr.bf16.mxu0 0
        %2626 = vmatpush1.bf16.msra.mxu0 0
        %2627 = vmatprep.subr.bf16.mxu0 0
        %2628 = vmatpush1.bf16.msra.mxu0 0
        %2629 = vmatprep.subr.bf16.mxu0 0
        %2630 = vmatpush1.bf16.msra.mxu0 0
        %2631 = vmatprep.mubr.bf16.mxu0 %v2597
        %2632 = vmatmul.mubr.bf16.gmra.mrb[0].mxu0 %v2369
        %v2633 = vpop.f32.mrb[0].mxu0
        %v2634 = vadd.f32 %v2526, %v2633
        %v2635 = vpop.f32.mrb[0].mxu0
        %v2636 = vpop.f32.mrb[0].mxu0
        %v2637 = vpop.f32.mrb[0].mxu0
        %2638 = vdwg.mxu0
        %v2639 = vld [vmem:[%s1540] sm:$0xf]
        %v2640 = vld [vmem:[%s1540 + $0x4] sm:$0xf]
        %v2641 = vld [vmem:[%s1540 + $0x8] sm:$0xf]
        %v2642 = vld [vmem:[%s1540 + $0xc] sm:$0xf]
        %v2643 = vld [vmem:[%s1540 + $0x10] sm:$0xf]
        %v2644 = vld [vmem:[%s1540 + $0x14] sm:$0xf]
        %v2645 = vld [vmem:[%s1540 + $0x18] sm:$0xf]
        %v2646 = vld [vmem:[%s1540 + $0x1c] sm:$0xf]
        %v2647 = vld [vmem:[%s1540 + $0x20] sm:$0xf]
        %v2648 = vld [vmem:[%s1540 + $0x24] sm:$0xf]
        %v2649 = vld [vmem:[%s1540 + $0x28] sm:$0xf]
        %v2650 = vld [vmem:[%s1540 + $0x2c] sm:$0xf]
        %v2651 = vld [vmem:[%s1540 + $0x30] sm:$0xf]
        %v2652 = vld [vmem:[%s1540 + $0x34] sm:$0xf]
        %v2653 = vld [vmem:[%s1540 + $0x38] sm:$0xf]
        %v2654 = vld [vmem:[%s1540 + $0x3c] sm:$0xf]
        %v2655 = vld [vmem:[%s1540 + $0x40] sm:$0xf]
        %v2656 = vld [vmem:[%s1540 + $0x44] sm:$0xf]
        %v2657 = vld [vmem:[%s1540 + $0x48] sm:$0xf]
        %v2658 = vld [vmem:[%s1540 + $0x4c] sm:$0xf]
        %v2659 = vld [vmem:[%s1540 + $0x50] sm:$0xf]
        %v2660 = vld [vmem:[%s1540 + $0x54] sm:$0xf]
        %v2663 = vrot.slane %v2369, 1
        %v2664 = vrot.slane %v2370, 1
        %v2688 = vunpack.c.l.b16 %v2639
        %v2689 = vunpack.c.l.b16 %v2640
        %v2690 = vunpack.c.l.b16 %v2641
        %v2691 = vunpack.c.l.b16 %v2642
        %v2692 = vunpack.c.l.b16 %v2643
        %v2693 = vunpack.c.l.b16 %v2644
        %v2694 = vunpack.c.l.b16 %v2645
        %v2695 = vunpack.c.l.b16 %v2646
        %v2696 = vunpack.c.l.b16 %v2647
        %v2697 = vunpack.c.l.b16 %v2648
        %v2698 = vunpack.c.l.b16 %v2649
        %v2699 = vunpack.c.l.b16 %v2650
        %v2700 = vunpack.c.l.b16 %v2651
        %v2701 = vunpack.c.l.b16 %v2652
        %v2702 = vunpack.c.l.b16 %v2653
        %v2703 = vunpack.c.l.b16 %v2654
        %v2704 = vunpack.c.l.b16 %v2655
        %v2705 = vunpack.c.l.b16 %v2656
        %v2706 = vunpack.c.l.b16 %v2657
        %v2707 = vunpack.c.l.b16 %v2658
        %v2708 = vunpack.c.l.b16 %v2659
        %v2709 = vunpack.c.l.b16 %v2660
        %v2710 = vpack.c.b16 %v2689, %v2688
        %v2711 = vpack.c.b16 %v2691, %v2690
        %v2712 = vpack.c.b16 %v2693, %v2692
        %v2713 = vpack.c.b16 %v2695, %v2694
        %v2714 = vpack.c.b16 %v2697, %v2696
        %v2715 = vpack.c.b16 %v2699, %v2698
        %v2716 = vpack.c.b16 %v2701, %v2700
        %v2717 = vpack.c.b16 %v2703, %v2702
        %v2718 = vpack.c.b16 %v2705, %v2704
        %v2719 = vpack.c.b16 %v2707, %v2706
        %v2720 = vpack.c.b16 %v2709, %v2708
        %v2733 = vsel %vm1388, %v2664, 0
        %2735 = vmatprep.subr.bf16.mxu0 0
        %2736 = vmatpush1.bf16.msra.mxu0 %v2710
        %2737 = vmatprep.subr.bf16.mxu0 0
        %2738 = vmatpush1.bf16.msra.mxu0 %v2711
        %2739 = vmatprep.subr.bf16.mxu0 0
        %2740 = vmatpush1.bf16.msra.mxu0 %v2712
        %2741 = vmatprep.subr.bf16.mxu0 0
        %2742 = vmatpush1.bf16.msra.mxu0 %v2713
        %2743 = vmatprep.subr.bf16.mxu0 0
        %2744 = vmatpush1.bf16.msra.mxu0 %v2714
        %2745 = vmatprep.subr.bf16.mxu0 0
        %2746 = vmatpush1.bf16.msra.mxu0 %v2715
        %2747 = vmatprep.subr.bf16.mxu0 0
        %2748 = vmatpush1.bf16.msra.mxu0 %v2716
        %2749 = vmatprep.subr.bf16.mxu0 0
        %2750 = vmatpush1.bf16.msra.mxu0 %v2717
        %2751 = vmatprep.subr.bf16.mxu0 0
        %2752 = vmatpush1.bf16.msra.mxu0 %v2718
        %2753 = vmatprep.subr.bf16.mxu0 0
        %2754 = vmatpush1.bf16.msra.mxu0 %v2719
        %2755 = vmatprep.subr.bf16.mxu0 0
        %2756 = vmatpush1.bf16.msra.mxu0 %v2720
        %2757 = vmatprep.subr.bf16.mxu0 0
        %2758 = vmatpush1.bf16.msra.mxu0 0
        %2759 = vmatprep.subr.bf16.mxu0 0
        %2760 = vmatpush1.bf16.msra.mxu0 0
        %2761 = vmatprep.subr.bf16.mxu0 0
        %2762 = vmatpush1.bf16.msra.mxu0 0
        %2763 = vmatprep.subr.bf16.mxu0 0
        %2764 = vmatpush1.bf16.msra.mxu0 0
        %2765 = vmatprep.subr.bf16.mxu0 0
        %2766 = vmatpush1.bf16.msra.mxu0 0
        %2767 = vmatprep.mubr.bf16.mxu0 %v2733
        %2768 = vmatmul.mubr.bf16.gmra.mrb[0].mxu0 %v2663
        %v2769 = vpop.f32.mrb[0].mxu0
        %v2770 = vadd.f32 0.0, %v2769
        %v2771 = vpop.f32.mrb[0].mxu0
        %v2772 = vpop.f32.mrb[0].mxu0
        %v2773 = vpop.f32.mrb[0].mxu0
        %2774 = vdwg.mxu0
        %v2775 = vadd.f32 %v2634, %v2770
        %v2776 = vld [vmem:[%s1678] sm:$0xf]
        %v2777 = vld [vmem:[%s1678 + $0x4] sm:$0xf]
        %v2778 = vld [vmem:[%s1678 + $0x8] sm:$0xf]
        %v2779 = vld [vmem:[%s1678 + $0xc] sm:$0xf]
        %v2780 = vld [vmem:[%s1678 + $0x10] sm:$0xf]
        %v2781 = vld [vmem:[%s1678 + $0x14] sm:$0xf]
        %v2782 = vld [vmem:[%s1678 + $0x18] sm:$0xf]
        %v2783 = vld [vmem:[%s1678 + $0x1c] sm:$0xf]
        %v2784 = vld [vmem:[%s1678 + $0x20] sm:$0xf]
        %v2785 = vld [vmem:[%s1678 + $0x24] sm:$0xf]
        %v2786 = vld [vmem:[%s1678 + $0x28] sm:$0xf]
        %v2787 = vld [vmem:[%s1678 + $0x2c] sm:$0xf]
        %v2788 = vld [vmem:[%s1678 + $0x30] sm:$0xf]
        %v2789 = vld [vmem:[%s1678 + $0x34] sm:$0xf]
        %v2790 = vld [vmem:[%s1678 + $0x38] sm:$0xf]
        %v2791 = vld [vmem:[%s1678 + $0x3c] sm:$0xf]
        %v2792 = vld [vmem:[%s1678 + $0x40] sm:$0xf]
        %v2793 = vld [vmem:[%s1678 + $0x44] sm:$0xf]
        %v2794 = vld [vmem:[%s1678 + $0x48] sm:$0xf]
        %v2795 = vld [vmem:[%s1678 + $0x4c] sm:$0xf]
        %v2796 = vld [vmem:[%s1678 + $0x50] sm:$0xf]
        %v2797 = vld [vmem:[%s1678 + $0x54] sm:$0xf]
        %v2798 = vrot.slane %v2416, 1
        %v2799 = vrot.slane %v2419, 1
        %v2823 = vunpack.c.l.b16 %v2776
        %v2824 = vunpack.c.l.b16 %v2777
        %v2825 = vunpack.c.l.b16 %v2778
        %v2826 = vunpack.c.l.b16 %v2779
        %v2827 = vunpack.c.l.b16 %v2780
        %v2828 = vunpack.c.l.b16 %v2781
        %v2829 = vunpack.c.l.b16 %v2782
        %v2830 = vunpack.c.l.b16 %v2783
        %v2831 = vunpack.c.l.b16 %v2784
        %v2832 = vunpack.c.l.b16 %v2785
        %v2833 = vunpack.c.l.b16 %v2786
        %v2834 = vunpack.c.l.b16 %v2787
        %v2835 = vunpack.c.l.b16 %v2788
        %v2836 = vunpack.c.l.b16 %v2789
        %v2837 = vunpack.c.l.b16 %v2790
        %v2838 = vunpack.c.l.b16 %v2791
        %v2839 = vunpack.c.l.b16 %v2792
        %v2840 = vunpack.c.l.b16 %v2793
        %v2841 = vunpack.c.l.b16 %v2794
        %v2842 = vunpack.c.l.b16 %v2795
        %v2843 = vunpack.c.l.b16 %v2796
        %v2844 = vunpack.c.l.b16 %v2797
        %v2845 = vpack.c.b16 %v2824, %v2823
        %v2846 = vpack.c.b16 %v2826, %v2825
        %v2847 = vpack.c.b16 %v2828, %v2827
        %v2848 = vpack.c.b16 %v2830, %v2829
        %v2849 = vpack.c.b16 %v2832, %v2831
        %v2850 = vpack.c.b16 %v2834, %v2833
        %v2851 = vpack.c.b16 %v2836, %v2835
        %v2852 = vpack.c.b16 %v2838, %v2837
        %v2853 = vpack.c.b16 %v2840, %v2839
        %v2854 = vpack.c.b16 %v2842, %v2841
        %v2855 = vpack.c.b16 %v2844, %v2843
        %v2868 = vsel %vm1388, %v2799, 0
        %2870 = vmatprep.subr.bf16.mxu0 0
        %2871 = vmatpush1.bf16.msra.mxu0 %v2845
        %2872 = vmatprep.subr.bf16.mxu0 0
        %2873 = vmatpush1.bf16.msra.mxu0 %v2846
        %2874 = vmatprep.subr.bf16.mxu0 0
        %2875 = vmatpush1.bf16.msra.mxu0 %v2847
        %2876 = vmatprep.subr.bf16.mxu0 0
        %2877 = vmatpush1.bf16.msra.mxu0 %v2848
        %2878 = vmatprep.subr.bf16.mxu0 0
        %2879 = vmatpush1.bf16.msra.mxu0 %v2849
        %2880 = vmatprep.subr.bf16.mxu0 0
        %2881 = vmatpush1.bf16.msra.mxu0 %v2850
        %2882 = vmatprep.subr.bf16.mxu0 0
        %2883 = vmatpush1.bf16.msra.mxu0 %v2851
        %2884 = vmatprep.subr.bf16.mxu0 0
        %2885 = vmatpush1.bf16.msra.mxu0 %v2852
        %2886 = vmatprep.subr.bf16.mxu0 0
        %2887 = vmatpush1.bf16.msra.mxu0 %v2853
        %2888 = vmatprep.subr.bf16.mxu0 0
        %2889 = vmatpush1.bf16.msra.mxu0 %v2854
        %2890 = vmatprep.subr.bf16.mxu0 0
        %2891 = vmatpush1.bf16.msra.mxu0 %v2855
        %2892 = vmatprep.subr.bf16.mxu0 0
        %2893 = vmatpush1.bf16.msra.mxu0 0
        %2894 = vmatprep.subr.bf16.mxu0 0
        %2895 = vmatpush1.bf16.msra.mxu0 0
        %2896 = vmatprep.subr.bf16.mxu0 0
        %2897 = vmatpush1.bf16.msra.mxu0 0
        %2898 = vmatprep.subr.bf16.mxu0 0
        %2899 = vmatpush1.bf16.msra.mxu0 0
        %2900 = vmatprep.subr.bf16.mxu0 0
        %2901 = vmatpush1.bf16.msra.mxu0 0
        %2902 = vmatprep.mubr.bf16.mxu0 %v2868
        %2903 = vmatmul.mubr.bf16.gmra.mrb[0].mxu0 %v2798
        %v2904 = vpop.f32.mrb[0].mxu0
        %v2905 = vadd.f32 0.0, %v2904
        %v2906 = vpop.f32.mrb[0].mxu0
        %v2907 = vpop.f32.mrb[0].mxu0
        %v2908 = vpop.f32.mrb[0].mxu0
        %2909 = vdwg.mxu0
        %v2910 = vadd.f32 %v2775, %v2905
        %v2911 = vld [vmem:[%s1814] sm:$0xf]
        %v2912 = vld [vmem:[%s1814 + $0x4] sm:$0xf]
        %v2913 = vld [vmem:[%s1814 + $0x8] sm:$0xf]
        %v2914 = vld [vmem:[%s1814 + $0xc] sm:$0xf]
        %v2915 = vld [vmem:[%s1814 + $0x10] sm:$0xf]
        %v2916 = vld [vmem:[%s1814 + $0x14] sm:$0xf]
        %v2917 = vld [vmem:[%s1814 + $0x18] sm:$0xf]
        %v2918 = vld [vmem:[%s1814 + $0x1c] sm:$0xf]
        %v2919 = vld [vmem:[%s1814 + $0x20] sm:$0xf]
        %v2920 = vld [vmem:[%s1814 + $0x24] sm:$0xf]
        %v2921 = vld [vmem:[%s1814 + $0x28] sm:$0xf]
        %v2922 = vld [vmem:[%s1814 + $0x2c] sm:$0xf]
        %v2923 = vld [vmem:[%s1814 + $0x30] sm:$0xf]
        %v2924 = vld [vmem:[%s1814 + $0x34] sm:$0xf]
        %v2925 = vld [vmem:[%s1814 + $0x38] sm:$0xf]
        %v2926 = vld [vmem:[%s1814 + $0x3c] sm:$0xf]
        %v2927 = vld [vmem:[%s1814 + $0x40] sm:$0xf]
        %v2928 = vld [vmem:[%s1814 + $0x44] sm:$0xf]
        %v2929 = vld [vmem:[%s1814 + $0x48] sm:$0xf]
        %v2930 = vld [vmem:[%s1814 + $0x4c] sm:$0xf]
        %v2931 = vld [vmem:[%s1814 + $0x50] sm:$0xf]
        %v2932 = vld [vmem:[%s1814 + $0x54] sm:$0xf]
        %v2933 = vrot.slane %v2369, 2
        %v2934 = vrot.slane %v2370, 2
        %v2958 = vunpack.c.l.b16 %v2911
        %v2959 = vunpack.c.l.b16 %v2912
        %v2960 = vunpack.c.l.b16 %v2913
        %v2961 = vunpack.c.l.b16 %v2914
        %v2962 = vunpack.c.l.b16 %v2915
        %v2963 = vunpack.c.l.b16 %v2916
        %v2964 = vunpack.c.l.b16 %v2917
        %v2965 = vunpack.c.l.b16 %v2918
        %v2966 = vunpack.c.l.b16 %v2919
        %v2967 = vunpack.c.l.b16 %v2920
        %v2968 = vunpack.c.l.b16 %v2921
        %v2969 = vunpack.c.l.b16 %v2922
        %v2970 = vunpack.c.l.b16 %v2923
        %v2971 = vunpack.c.l.b16 %v2924
        %v2972 = vunpack.c.l.b16 %v2925
        %v2973 = vunpack.c.l.b16 %v2926
        %v2974 = vunpack.c.l.b16 %v2927
        %v2975 = vunpack.c.l.b16 %v2928
        %v2976 = vunpack.c.l.b16 %v2929
        %v2977 = vunpack.c.l.b16 %v2930
        %v2978 = vunpack.c.l.b16 %v2931
        %v2979 = vunpack.c.l.b16 %v2932
        %v2980 = vpack.c.b16 %v2959, %v2958
        %v2981 = vpack.c.b16 %v2961, %v2960
        %v2982 = vpack.c.b16 %v2963, %v2962
        %v2983 = vpack.c.b16 %v2965, %v2964
        %v2984 = vpack.c.b16 %v2967, %v2966
        %v2985 = vpack.c.b16 %v2969, %v2968
        %v2986 = vpack.c.b16 %v2971, %v2970
        %v2987 = vpack.c.b16 %v2973, %v2972
        %v2988 = vpack.c.b16 %v2975, %v2974
        %v2989 = vpack.c.b16 %v2977, %v2976
        %v2990 = vpack.c.b16 %v2979, %v2978
        %v3003 = vsel %vm1388, %v2934, 0
        %3005 = vmatprep.subr.bf16.mxu0 0
        %3006 = vmatpush1.bf16.msra.mxu0 %v2980
        %3007 = vmatprep.subr.bf16.mxu0 0
        %3008 = vmatpush1.bf16.msra.mxu0 %v2981
        %3009 = vmatprep.subr.bf16.mxu0 0
        %3010 = vmatpush1.bf16.msra.mxu0 %v2982
        %3011 = vmatprep.subr.bf16.mxu0 0
        %3012 = vmatpush1.bf16.msra.mxu0 %v2983
        %3013 = vmatprep.subr.bf16.mxu0 0
        %3014 = vmatpush1.bf16.msra.mxu0 %v2984
        %3015 = vmatprep.subr.bf16.mxu0 0
        %3016 = vmatpush1.bf16.msra.mxu0 %v2985
        %3017 = vmatprep.subr.bf16.mxu0 0
        %3018 = vmatpush1.bf16.msra.mxu0 %v2986
        %3019 = vmatprep.subr.bf16.mxu0 0
        %3020 = vmatpush1.bf16.msra.mxu0 %v2987
        %3021 = vmatprep.subr.bf16.mxu0 0
        %3022 = vmatpush1.bf16.msra.mxu0 %v2988
        %3023 = vmatprep.subr.bf16.mxu0 0
        %3024 = vmatpush1.bf16.msra.mxu0 %v2989
        %3025 = vmatprep.subr.bf16.mxu0 0
        %3026 = vmatpush1.bf16.msra.mxu0 %v2990
        %3027 = vmatprep.subr.bf16.mxu0 0
        %3028 = vmatpush1.bf16.msra.mxu0 0
        %3029 = vmatprep.subr.bf16.mxu0 0
        %3030 = vmatpush1.bf16.msra.mxu0 0
        %3031 = vmatprep.subr.bf16.mxu0 0
        %3032 = vmatpush1.bf16.msra.mxu0 0
        %3033 = vmatprep.subr.bf16.mxu0 0
        %3034 = vmatpush1.bf16.msra.mxu0 0
        %3035 = vmatprep.subr.bf16.mxu0 0
        %3036 = vmatpush1.bf16.msra.mxu0 0
        %3037 = vmatprep.mubr.bf16.mxu0 %v3003
        %3038 = vmatmul.mubr.bf16.gmra.mrb[0].mxu0 %v2933
        %v3039 = vpop.f32.mrb[0].mxu0
        %v3040 = vadd.f32 0.0, %v3039
        %v3041 = vpop.f32.mrb[0].mxu0
        %v3042 = vpop.f32.mrb[0].mxu0
        %v3043 = vpop.f32.mrb[0].mxu0
        %3044 = vdwg.mxu0
        %v3045 = vadd.f32 %v2910, %v3040
        %v3046 = vld [vmem:[%s1950] sm:$0xf]
        %v3047 = vld [vmem:[%s1950 + $0x4] sm:$0xf]
        %v3048 = vld [vmem:[%s1950 + $0x8] sm:$0xf]
        %v3049 = vld [vmem:[%s1950 + $0xc] sm:$0xf]
        %v3050 = vld [vmem:[%s1950 + $0x10] sm:$0xf]
        %v3051 = vld [vmem:[%s1950 + $0x14] sm:$0xf]
        %v3052 = vld [vmem:[%s1950 + $0x18] sm:$0xf]
        %v3053 = vld [vmem:[%s1950 + $0x1c] sm:$0xf]
        %v3054 = vld [vmem:[%s1950 + $0x20] sm:$0xf]
        %v3055 = vld [vmem:[%s1950 + $0x24] sm:$0xf]
        %v3056 = vld [vmem:[%s1950 + $0x28] sm:$0xf]
        %v3057 = vld [vmem:[%s1950 + $0x2c] sm:$0xf]
        %v3058 = vld [vmem:[%s1950 + $0x30] sm:$0xf]
        %v3059 = vld [vmem:[%s1950 + $0x34] sm:$0xf]
        %v3060 = vld [vmem:[%s1950 + $0x38] sm:$0xf]
        %v3061 = vld [vmem:[%s1950 + $0x3c] sm:$0xf]
        %v3062 = vld [vmem:[%s1950 + $0x40] sm:$0xf]
        %v3063 = vld [vmem:[%s1950 + $0x44] sm:$0xf]
        %v3064 = vld [vmem:[%s1950 + $0x48] sm:$0xf]
        %v3065 = vld [vmem:[%s1950 + $0x4c] sm:$0xf]
        %v3066 = vld [vmem:[%s1950 + $0x50] sm:$0xf]
        %v3067 = vld [vmem:[%s1950 + $0x54] sm:$0xf]
        %v3068 = vrot.slane %v2416, 2
        %v3069 = vrot.slane %v2419, 2
        %v3093 = vunpack.c.l.b16 %v3046
        %v3094 = vunpack.c.l.b16 %v3047
        %v3095 = vunpack.c.l.b16 %v3048
        %v3096 = vunpack.c.l.b16 %v3049
        %v3097 = vunpack.c.l.b16 %v3050
        %v3098 = vunpack.c.l.b16 %v3051
        %v3099 = vunpack.c.l.b16 %v3052
        %v3100 = vunpack.c.l.b16 %v3053
        %v3101 = vunpack.c.l.b16 %v3054
        %v3102 = vunpack.c.l.b16 %v3055
        %v3103 = vunpack.c.l.b16 %v3056
        %v3104 = vunpack.c.l.b16 %v3057
        %v3105 = vunpack.c.l.b16 %v3058
        %v3106 = vunpack.c.l.b16 %v3059
        %v3107 = vunpack.c.l.b16 %v3060
        %v3108 = vunpack.c.l.b16 %v3061
        %v3109 = vunpack.c.l.b16 %v3062
        %v3110 = vunpack.c.l.b16 %v3063
        %v3111 = vunpack.c.l.b16 %v3064
        %v3112 = vunpack.c.l.b16 %v3065
        %v3113 = vunpack.c.l.b16 %v3066
        %v3114 = vunpack.c.l.b16 %v3067
        %v3115 = vpack.c.b16 %v3094, %v3093
        %v3116 = vpack.c.b16 %v3096, %v3095
        %v3117 = vpack.c.b16 %v3098, %v3097
        %v3118 = vpack.c.b16 %v3100, %v3099
        %v3119 = vpack.c.b16 %v3102, %v3101
        %v3120 = vpack.c.b16 %v3104, %v3103
        %v3121 = vpack.c.b16 %v3106, %v3105
        %v3122 = vpack.c.b16 %v3108, %v3107
        %v3123 = vpack.c.b16 %v3110, %v3109
        %v3124 = vpack.c.b16 %v3112, %v3111
        %v3125 = vpack.c.b16 %v3114, %v3113
        %v3138 = vsel %vm1388, %v3069, 0
        %3140 = vmatprep.subr.bf16.mxu0 0
        %3141 = vmatpush1.bf16.msra.mxu0 %v3115
        %3142 = vmatprep.subr.bf16.mxu0 0
        %3143 = vmatpush1.bf16.msra.mxu0 %v3116
        %3144 = vmatprep.subr.bf16.mxu0 0
        %3145 = vmatpush1.bf16.msra.mxu0 %v3117
        %3146 = vmatprep.subr.bf16.mxu0 0
        %3147 = vmatpush1.bf16.msra.mxu0 %v3118
        %3148 = vmatprep.subr.bf16.mxu0 0
        %3149 = vmatpush1.bf16.msra.mxu0 %v3119
        %3150 = vmatprep.subr.bf16.mxu0 0
        %3151 = vmatpush1.bf16.msra.mxu0 %v3120
        %3152 = vmatprep.subr.bf16.mxu0 0
        %3153 = vmatpush1.bf16.msra.mxu0 %v3121
        %3154 = vmatprep.subr.bf16.mxu0 0
        %3155 = vmatpush1.bf16.msra.mxu0 %v3122
        %3156 = vmatprep.subr.bf16.mxu0 0
        %3157 = vmatpush1.bf16.msra.mxu0 %v3123
        %3158 = vmatprep.subr.bf16.mxu0 0
        %3159 = vmatpush1.bf16.msra.mxu0 %v3124
        %3160 = vmatprep.subr.bf16.mxu0 0
        %3161 = vmatpush1.bf16.msra.mxu0 %v3125
        %3162 = vmatprep.subr.bf16.mxu0 0
        %3163 = vmatpush1.bf16.msra.mxu0 0
        %3164 = vmatprep.subr.bf16.mxu0 0
        %3165 = vmatpush1.bf16.msra.mxu0 0
        %3166 = vmatprep.subr.bf16.mxu0 0
        %3167 = vmatpush1.bf16.msra.mxu0 0
        %3168 = vmatprep.subr.bf16.mxu0 0
        %3169 = vmatpush1.bf16.msra.mxu0 0
        %3170 = vmatprep.subr.bf16.mxu0 0
        %3171 = vmatpush1.bf16.msra.mxu0 0
        %3172 = vmatprep.mubr.bf16.mxu0 %v3138
        %3173 = vmatmul.mubr.bf16.gmra.mrb[0].mxu0 %v3068
        %v3174 = vpop.f32.mrb[0].mxu0
        %v3175 = vadd.f32 0.0, %v3174
        %v3176 = vpop.f32.mrb[0].mxu0
        %v3177 = vpop.f32.mrb[0].mxu0
        %v3178 = vpop.f32.mrb[0].mxu0
        %3179 = vdwg.mxu0
        %v3180 = vadd.f32 %v3045, %v3175
        %v3181 = vld [vmem:[%s2086] sm:$0xf]
        %v3182 = vld [vmem:[%s2086 + $0x4] sm:$0xf]
        %v3183 = vld [vmem:[%s2086 + $0x8] sm:$0xf]
        %v3184 = vld [vmem:[%s2086 + $0xc] sm:$0xf]
        %v3185 = vld [vmem:[%s2086 + $0x10] sm:$0xf]
        %v3186 = vld [vmem:[%s2086 + $0x14] sm:$0xf]
        %v3187 = vld [vmem:[%s2086 + $0x18] sm:$0xf]
        %v3188 = vld [vmem:[%s2086 + $0x1c] sm:$0xf]
        %v3189 = vld [vmem:[%s2086 + $0x20] sm:$0xf]
        %v3190 = vld [vmem:[%s2086 + $0x24] sm:$0xf]
        %v3191 = vld [vmem:[%s2086 + $0x28] sm:$0xf]
        %v3192 = vld [vmem:[%s2086 + $0x2c] sm:$0xf]
        %v3193 = vld [vmem:[%s2086 + $0x30] sm:$0xf]
        %v3194 = vld [vmem:[%s2086 + $0x34] sm:$0xf]
        %v3195 = vld [vmem:[%s2086 + $0x38] sm:$0xf]
        %v3196 = vld [vmem:[%s2086 + $0x3c] sm:$0xf]
        %v3197 = vld [vmem:[%s2086 + $0x40] sm:$0xf]
        %v3198 = vld [vmem:[%s2086 + $0x44] sm:$0xf]
        %v3199 = vld [vmem:[%s2086 + $0x48] sm:$0xf]
        %v3200 = vld [vmem:[%s2086 + $0x4c] sm:$0xf]
        %v3201 = vld [vmem:[%s2086 + $0x50] sm:$0xf]
        %v3202 = vld [vmem:[%s2086 + $0x54] sm:$0xf]
        %v3203 = vrot.slane %v2369, 3
        %v3204 = vrot.slane %v2370, 3
        %v3228 = vunpack.c.l.b16 %v3181
        %v3229 = vunpack.c.l.b16 %v3182
        %v3230 = vunpack.c.l.b16 %v3183
        %v3231 = vunpack.c.l.b16 %v3184
        %v3232 = vunpack.c.l.b16 %v3185
        %v3233 = vunpack.c.l.b16 %v3186
        %v3234 = vunpack.c.l.b16 %v3187
        %v3235 = vunpack.c.l.b16 %v3188
        %v3236 = vunpack.c.l.b16 %v3189
        %v3237 = vunpack.c.l.b16 %v3190
        %v3238 = vunpack.c.l.b16 %v3191
        %v3239 = vunpack.c.l.b16 %v3192
        %v3240 = vunpack.c.l.b16 %v3193
        %v3241 = vunpack.c.l.b16 %v3194
        %v3242 = vunpack.c.l.b16 %v3195
        %v3243 = vunpack.c.l.b16 %v3196
        %v3244 = vunpack.c.l.b16 %v3197
        %v3245 = vunpack.c.l.b16 %v3198
        %v3246 = vunpack.c.l.b16 %v3199
        %v3247 = vunpack.c.l.b16 %v3200
        %v3248 = vunpack.c.l.b16 %v3201
        %v3249 = vunpack.c.l.b16 %v3202
        %v3250 = vpack.c.b16 %v3229, %v3228
        %v3251 = vpack.c.b16 %v3231, %v3230
        %v3252 = vpack.c.b16 %v3233, %v3232
        %v3253 = vpack.c.b16 %v3235, %v3234
        %v3254 = vpack.c.b16 %v3237, %v3236
        %v3255 = vpack.c.b16 %v3239, %v3238
        %v3256 = vpack.c.b16 %v3241, %v3240
        %v3257 = vpack.c.b16 %v3243, %v3242
        %v3258 = vpack.c.b16 %v3245, %v3244
        %v3259 = vpack.c.b16 %v3247, %v3246
        %v3260 = vpack.c.b16 %v3249, %v3248
        %v3273 = vsel %vm1388, %v3204, 0
        %3275 = vmatprep.subr.bf16.mxu0 0
        %3276 = vmatpush1.bf16.msra.mxu0 %v3250
        %3277 = vmatprep.subr.bf16.mxu0 0
        %3278 = vmatpush1.bf16.msra.mxu0 %v3251
        %3279 = vmatprep.subr.bf16.mxu0 0
        %3280 = vmatpush1.bf16.msra.mxu0 %v3252
        %3281 = vmatprep.subr.bf16.mxu0 0
        %3282 = vmatpush1.bf16.msra.mxu0 %v3253
        %3283 = vmatprep.subr.bf16.mxu0 0
        %3284 = vmatpush1.bf16.msra.mxu0 %v3254
        %3285 = vmatprep.subr.bf16.mxu0 0
        %3286 = vmatpush1.bf16.msra.mxu0 %v3255
        %3287 = vmatprep.subr.bf16.mxu0 0
        %3288 = vmatpush1.bf16.msra.mxu0 %v3256
        %3289 = vmatprep.subr.bf16.mxu0 0
        %3290 = vmatpush1.bf16.msra.mxu0 %v3257
        %3291 = vmatprep.subr.bf16.mxu0 0
        %3292 = vmatpush1.bf16.msra.mxu0 %v3258
        %3293 = vmatprep.subr.bf16.mxu0 0
        %3294 = vmatpush1.bf16.msra.mxu0 %v3259
        %3295 = vmatprep.subr.bf16.mxu0 0
        %3296 = vmatpush1.bf16.msra.mxu0 %v3260
        %3297 = vmatprep.subr.bf16.mxu0 0
        %3298 = vmatpush1.bf16.msra.mxu0 0
        %3299 = vmatprep.subr.bf16.mxu0 0
        %3300 = vmatpush1.bf16.msra.mxu0 0
        %3301 = vmatprep.subr.bf16.mxu0 0
        %3302 = vmatpush1.bf16.msra.mxu0 0
        %3303 = vmatprep.subr.bf16.mxu0 0
        %3304 = vmatpush1.bf16.msra.mxu0 0
        %3305 = vmatprep.subr.bf16.mxu0 0
        %3306 = vmatpush1.bf16.msra.mxu0 0
        %3307 = vmatprep.mubr.bf16.mxu0 %v3273
        %3308 = vmatmul.mubr.bf16.gmra.mrb[0].mxu0 %v3203
        %v3309 = vpop.f32.mrb[0].mxu0
        %v3310 = vadd.f32 0.0, %v3309
        %v3311 = vpop.f32.mrb[0].mxu0
        %v3312 = vpop.f32.mrb[0].mxu0
        %v3313 = vpop.f32.mrb[0].mxu0
        %3314 = vdwg.mxu0
        %v3315 = vadd.f32 %v3180, %v3310
        %v3316 = vld [vmem:[%s2222] sm:$0xf]
        %v3317 = vld [vmem:[%s2222 + $0x4] sm:$0xf]
        %v3318 = vld [vmem:[%s2222 + $0x8] sm:$0xf]
        %v3319 = vld [vmem:[%s2222 + $0xc] sm:$0xf]
        %v3320 = vld [vmem:[%s2222 + $0x10] sm:$0xf]
        %v3321 = vld [vmem:[%s2222 + $0x14] sm:$0xf]
        %v3322 = vld [vmem:[%s2222 + $0x18] sm:$0xf]
        %v3323 = vld [vmem:[%s2222 + $0x1c] sm:$0xf]
        %v3324 = vld [vmem:[%s2222 + $0x20] sm:$0xf]
        %v3325 = vld [vmem:[%s2222 + $0x24] sm:$0xf]
        %v3326 = vld [vmem:[%s2222 + $0x28] sm:$0xf]
        %v3327 = vld [vmem:[%s2222 + $0x2c] sm:$0xf]
        %v3328 = vld [vmem:[%s2222 + $0x30] sm:$0xf]
        %v3329 = vld [vmem:[%s2222 + $0x34] sm:$0xf]
        %v3330 = vld [vmem:[%s2222 + $0x38] sm:$0xf]
        %v3331 = vld [vmem:[%s2222 + $0x3c] sm:$0xf]
        %v3332 = vld [vmem:[%s2222 + $0x40] sm:$0xf]
        %v3333 = vld [vmem:[%s2222 + $0x44] sm:$0xf]
        %v3334 = vld [vmem:[%s2222 + $0x48] sm:$0xf]
        %v3335 = vld [vmem:[%s2222 + $0x4c] sm:$0xf]
        %v3336 = vld [vmem:[%s2222 + $0x50] sm:$0xf]
        %v3337 = vld [vmem:[%s2222 + $0x54] sm:$0xf]
        %v3338 = vrot.slane %v2416, 3
        %v3339 = vrot.slane %v2419, 3
        %v3363 = vunpack.c.l.b16 %v3316
        %v3364 = vunpack.c.l.b16 %v3317
        %v3365 = vunpack.c.l.b16 %v3318
        %v3366 = vunpack.c.l.b16 %v3319
        %v3367 = vunpack.c.l.b16 %v3320
        %v3368 = vunpack.c.l.b16 %v3321
        %v3369 = vunpack.c.l.b16 %v3322
        %v3370 = vunpack.c.l.b16 %v3323
        %v3371 = vunpack.c.l.b16 %v3324
        %v3372 = vunpack.c.l.b16 %v3325
        %v3373 = vunpack.c.l.b16 %v3326
        %v3374 = vunpack.c.l.b16 %v3327
        %v3375 = vunpack.c.l.b16 %v3328
        %v3376 = vunpack.c.l.b16 %v3329
        %v3377 = vunpack.c.l.b16 %v3330
        %v3378 = vunpack.c.l.b16 %v3331
        %v3379 = vunpack.c.l.b16 %v3332
        %v3380 = vunpack.c.l.b16 %v3333
        %v3381 = vunpack.c.l.b16 %v3334
        %v3382 = vunpack.c.l.b16 %v3335
        %v3383 = vunpack.c.l.b16 %v3336
        %v3384 = vunpack.c.l.b16 %v3337
        %v3385 = vpack.c.b16 %v3364, %v3363
        %v3386 = vpack.c.b16 %v3366, %v3365
        %v3387 = vpack.c.b16 %v3368, %v3367
        %v3388 = vpack.c.b16 %v3370, %v3369
        %v3389 = vpack.c.b16 %v3372, %v3371
        %v3390 = vpack.c.b16 %v3374, %v3373
        %v3391 = vpack.c.b16 %v3376, %v3375
        %v3392 = vpack.c.b16 %v3378, %v3377
        %v3393 = vpack.c.b16 %v3380, %v3379
        %v3394 = vpack.c.b16 %v3382, %v3381
        %v3395 = vpack.c.b16 %v3384, %v3383
        %v3408 = vsel %vm1388, %v3339, 0
        %3410 = vmatprep.subr.bf16.mxu0 0
        %3411 = vmatpush1.bf16.msra.mxu0 %v3385
        %3412 = vmatprep.subr.bf16.mxu0 0
        %3413 = vmatpush1.bf16.msra.mxu0 %v3386
        %3414 = vmatprep.subr.bf16.mxu0 0
        %3415 = vmatpush1.bf16.msra.mxu0 %v3387
        %3416 = vmatprep.subr.bf16.mxu0 0
        %3417 = vmatpush1.bf16.msra.mxu0 %v3388
        %3418 = vmatprep.subr.bf16.mxu0 0
        %3419 = vmatpush1.bf16.msra.mxu0 %v3389
        %3420 = vmatprep.subr.bf16.mxu0 0
        %3421 = vmatpush1.bf16.msra.mxu0 %v3390
        %3422 = vmatprep.subr.bf16.mxu0 0
        %3423 = vmatpush1.bf16.msra.mxu0 %v3391
        %3424 = vmatprep.subr.bf16.mxu0 0
        %3425 = vmatpush1.bf16.msra.mxu0 %v3392
        %3426 = vmatprep.subr.bf16.mxu0 0
        %3427 = vmatpush1.bf16.msra.mxu0 %v3393
        %3428 = vmatprep.subr.bf16.mxu0 0
        %3429 = vmatpush1.bf16.msra.mxu0 %v3394
        %3430 = vmatprep.subr.bf16.mxu0 0
        %3431 = vmatpush1.bf16.msra.mxu0 %v3395
        %3432 = vmatprep.subr.bf16.mxu0 0
        %3433 = vmatpush1.bf16.msra.mxu0 0
        %3434 = vmatprep.subr.bf16.mxu0 0
        %3435 = vmatpush1.bf16.msra.mxu0 0
        %3436 = vmatprep.subr.bf16.mxu0 0
        %3437 = vmatpush1.bf16.msra.mxu0 0
        %3438 = vmatprep.subr.bf16.mxu0 0
        %3439 = vmatpush1.bf16.msra.mxu0 0
        %3440 = vmatprep.subr.bf16.mxu0 0
        %3441 = vmatpush1.bf16.msra.mxu0 0
        %3442 = vmatprep.mubr.bf16.mxu0 %v3408
        %3443 = vmatmul.mubr.bf16.gmra.mrb[0].mxu0 %v3338
        %v3444 = vpop.f32.mrb[0].mxu0
        %v3445 = vadd.f32 0.0, %v3444
        %v3446 = vpop.f32.mrb[0].mxu0
        %v3447 = vpop.f32.mrb[0].mxu0
        %v3448 = vpop.f32.mrb[0].mxu0
        %3449 = vdwg.mxu0
        %v3450 = vadd.f32 %v3315, %v3445
        %v3451 = vld [vmem:[#allocation3 + $0x1] sm:$0x1]
        %v3452 = vadd.f32 %v3451, %v3450
        %3453 = vst [vmem:[#allocation3 + $0x1] sm:$0x1] %v3452
        %p3454 = scmp.eq.s32.totalorder %s21, 3
        // Predicated region
        $region61: #{net_forward.1} parent=55 // pred_check
          %p3455 = pneg %p3454
        $region62: #{net_forward.1} parent=55 // pred_check_branch
          %3457 = sbr.rel (%p3455) target = $region64
        $region63: #{net_forward.1} parent=55 // pred_region
          %v3458 = vld [vmem:[#allocation3] sm:$0x3]
          %v3459 = vld [vmem:[%s4] sm:$0x1]
          %v3461 = vlaneseq
          %v3462 = vshrl.u32 %v3461, 7
          %v3463 = vsub.s32 0, %v3462
          %v3464 = vrot.slane %v3459, %v3463
          %v3466 = vadd.f32 %v3458, %v3464
          %v3467 = vmax.f32 %v3466, 0.0
          %v3468 = vld [vmem:[%s5] sm:$0xff]
          %v3469 = vld [vmem:[%s5 + $0x8] sm:$0xff]
          %v3470 = vld [vmem:[%s5 + $0x10] sm:$0xff]
          %v3471 = vld [vmem:[%s5 + $0x18] sm:$0xff]
          %v3472 = vld [vmem:[%s5 + $0x20] sm:$0xff]
          %v3473 = vld [vmem:[%s5 + $0x28] sm:$0xff]
          %v3474 = vld [vmem:[%s5 + $0x30] sm:$0xff]
          %v3475 = vld [vmem:[%s5 + $0x38] sm:$0xff]
          %v3476 = vld [vmem:[%s5 + $0x40] sm:$0xff]
          %v3477 = vld [vmem:[%s5 + $0x48] sm:$0xff]
          %v3478 = vld [vmem:[%s5 + $0x50] sm:$0xff]
          %v3479 = vld [vmem:[%s5 + $0x58] sm:$0xff]
          %v3480 = vld [vmem:[%s5 + $0x60] sm:$0xff]
          %v3481 = vld [vmem:[%s5 + $0x68] sm:$0xff]
          %v3482 = vld [vmem:[%s5 + $0x70] sm:$0xff]
          %v3483 = vld [vmem:[%s5 + $0x78] sm:$0xff]
          %v3484 = vld [vmem:[%s6] sm:$0x1]
          %v3486 = vlaneseq
          %v3487 = vshrl.u32 %v3486, 7
          %v3488 = vsub.s32 0, %v3487
          %v3489 = vrot.slane %v3484, %v3488
          %3491 = vmatprep.subr.mxu0 0.0
          %3492 = vmatpush1.msra.mxu0 %v3468
          %3493 = vmatprep.subr.mxu0 0.0
          %3494 = vmatpush1.msra.mxu0 %v3469
          %3495 = vmatprep.subr.mxu0 0.0
          %3496 = vmatpush1.msra.mxu0 %v3470
          %3497 = vmatprep.subr.mxu0 0.0
          %3498 = vmatpush1.msra.mxu0 %v3471
          %3499 = vmatprep.subr.mxu0 0.0
          %3500 = vmatpush1.msra.mxu0 %v3472
          %3501 = vmatprep.subr.mxu0 0.0
          %3502 = vmatpush1.msra.mxu0 %v3473
          %3503 = vmatprep.subr.mxu0 0.0
          %3504 = vmatpush1.msra.mxu0 %v3474
          %3505 = vmatprep.subr.mxu0 0.0
          %3506 = vmatpush1.msra.mxu0 %v3475
          %3507 = vmatprep.subr.mxu0 0.0
          %3508 = vmatpush1.msra.mxu0 %v3476
          %3509 = vmatprep.subr.mxu0 0.0
          %3510 = vmatpush1.msra.mxu0 %v3477
          %3511 = vmatprep.subr.mxu0 0.0
          %3512 = vmatpush1.msra.mxu0 %v3478
          %3513 = vmatprep.subr.mxu0 0.0
          %3514 = vmatpush1.msra.mxu0 %v3479
          %3515 = vmatprep.subr.mxu0 0.0
          %3516 = vmatpush1.msra.mxu0 %v3480
          %3517 = vmatprep.subr.mxu0 0.0
          %3518 = vmatpush1.msra.mxu0 %v3481
          %3519 = vmatprep.subr.mxu0 0.0
          %3520 = vmatpush1.msra.mxu0 %v3482
          %3521 = vmatprep.subr.mxu0 0.0
          %3522 = vmatpush1.msra.mxu0 %v3483
          %3523 = vmatprep.subr.mxu0 0.0
          %3524 = vmatpush1.msra.mxu0 0.0
          %3525 = vmatprep.subr.mxu0 0.0
          %3526 = vmatpush1.msra.mxu0 0.0
          %3527 = vmatprep.subr.mxu0 0.0
          %3528 = vmatpush1.msra.mxu0 0.0
          %3529 = vmatprep.subr.mxu0 0.0
          %3530 = vmatpush1.msra.mxu0 0.0
          %3531 = vmatprep.subr.mxu0 0.0
          %3532 = vmatpush1.msra.mxu0 0.0
          %3533 = vmatprep.subr.mxu0 0.0
          %3534 = vmatpush1.msra.mxu0 0.0
          %3535 = vmatprep.subr.mxu0 0.0
          %3536 = vmatpush1.msra.mxu0 0.0
          %3537 = vmatprep.subr.mxu0 0.0
          %3538 = vmatpush1.msra.mxu0 0.0
          %3539 = vmatprep.subr.mxu0 0.0
          %3540 = vmatpush1.msra.mxu0 0.0
          %3541 = vmatprep.subr.mxu0 0.0
          %3542 = vmatpush1.msra.mxu0 0.0
          %3543 = vmatprep.subr.mxu0 0.0
          %3544 = vmatpush1.msra.mxu0 0.0
          %3545 = vmatprep.subr.mxu0 0.0
          %3546 = vmatpush1.msra.mxu0 0.0
          %3547 = vmatprep.subr.mxu0 0.0
          %3548 = vmatpush1.msra.mxu0 0.0
          %3549 = vmatprep.subr.mxu0 0.0
          %3550 = vmatpush1.msra.mxu0 0.0
          %3551 = vmatprep.subr.mxu0 0.0
          %3552 = vmatpush1.msra.mxu0 0.0
          %3553 = vmatprep.subr.mxu0 0.0
          %3554 = vmatpush1.msra.mxu0 0.0
          %3555 = vmatprep.mubr.f32.mxu0 0.0
          %3556 = vmatmul.mubr.f32.gmra.mrb[0].mxu0 %v3467
          %v3557 = vpop.f32.mrb[0].mxu0
          %v3558 = vadd.f32 %v3489, %v3557
          %v3559 = vpop.f32.mrb[0].mxu0
          %3560 = vdwg.mxu0
          %v3561 = vmul.f32 %v3558, %v3558
          %v3562 = vmul.f32 %v3561, 1.442695
          %v3563 = vpow.pop %v3562
          %v3564 = vmul.f32 %v3558, 1.442695
          %v3565 = vpow.pop %v3564
          %v3566 = vadd.f32 %v3565, 1.0
          %v3567 = vld [vmem:[%s7] sm:$0x3]
          %3569 = vset.pattern.permute.xlu0 0
          %3570 = vperm.xlu0 %3569, %v3567
          %v3571 = vpop.permute.xlu0 %3570
          %v3573 = vlaneseq
          %v3574 = vshrl.u32 %v3573, 7
          %v3575 = vsub.s32 0, %v3574
          %v3576 = vrot.slane %v3563, %v3575
          %v3577 = vmul.f32 %v3571, %v3576
          %3578 = vset.pattern.permute.xlu0 1
          %3579 = vperm.xlu0 %3578, %v3567
          %v3580 = vpop.permute.xlu0 %3579
          %v3582 = vlaneseq
          %v3583 = vshrl.u32 %v3582, 7
          %v3584 = vsub.s32 1, %v3583
          %v3585 = vrot.slane %v3563, %v3584
          %v3586 = vmul.f32 %v3580, %v3585
          %v3587 = vadd.f32 %v3577, %v3586
          %v3588 = vrcp.pop %v3566
          %v3589 = vmul.f32 %v3587, %v3588
          %v3590 = vld [vmem:[%s8] sm:$0x3]
          %v3591 = vadd.f32 %v3589, %v3590
          %vm3592 = vcmask 9216
          %v3593 = vsel %vm3592, %v3591, -inf
          %3594 = vmax.xlane.f32.xlu0 %v3593
          %v3595 = vpop.xlane.xlu0 %3594
          %v3596 = vsub.f32 %v3591, %v3595
          %v3597 = vmul.f32 %v3596, 1.442695
          %v3598 = vpow.pop %v3597
          %v3599 = vsel %vm3592, %v3598, 0.0
          %3600 = vadd.xlane.f32.xlu0 %v3599
          %v3601 = vpop.xlane.xlu0 %3600
          %v3602 = vrcp.pop %v3601
          %v3603 = vmul.f32 %v3598, %v3602
          %3604 = vst.msk [vmem:[#allocation4] sm:$0x3] %vm3592, %v3603
        $region64: #{net_forward.1} parent=55 // pred_fallthru
          _
        // Predicated region
        $region65: #{net_forward.1} parent=55 // pred_check
          %p3605 = pneg %p228
        $region66: #{net_forward.1} parent=55 // pred_check_branch
          %3607 = sbr.rel (%p3605) target = $region68
        $region67: #{net_forward.1} parent=55 // pred_region
          %s3609 = ssub.s32 32, 32
          %3610 = vsyncadd [#allocation5], %s3609
          %s3612 = sshll.u32 [#allocation4], 4
          %s3613 = int_to_ptr.vmem [resolvable:$true] %s3612
          %3615 = dma.vmem_to_hbm [thread:$0]  %s3613, 32, %s9, [#allocation5]
        $region68: #{net_forward.1} parent=55 // pred_fallthru
          _
        // Predicated region
        $region69: #{net_forward.1} parent=55 // pred_check
          %p3616 = pneg %p228
        $region70: #{net_forward.1} parent=55 // pred_check_branch
          %3618 = sbr.rel (%p3616) target = $region72
        $region71: #{net_forward.1} parent=55 // pred_region
          %3619 = dma.done [#allocation5], 32
        $region72: #{net_forward.1} parent=55 // pred_fallthru
          _
      $region56: #{net_forward.1} parent=5 // pred_fallthru
        _
      %p3620 = scmp.le.s32.totalorder 2, %s16
      // Predicated region
      $region73: #{net_forward.1} parent=5 // pred_check
        %p3621 = pneg %p3620
      $region74: #{net_forward.1} parent=5 // pred_check_branch
        %3623 = sbr.rel (%p3621) target = $region76
      $region75: #{net_forward.1} parent=5 // pred_region
        %s3624 = ssub.s32 %s16, 2
      $region76: #{net_forward.1} parent=5 // pred_fallthru
        _
    $region6: #{net_forward.1} parent=1 // loop_footer
      %s20 = sadd.s32 1, %s16
    $region7: #{net_forward.1} parent=1 // loop_footer_branch
      %15 = sbr.rel target = $region3
    $region8: #{net_forward.1} parent=1 // loop_exit
      _
    %3625 = vsyncpa [#allocation5], 1
    %s3626 = scalar_lea.sflag [#allocation5], 1
    %3627 = vsyncpa %s3626, 1

</llo_original>
